<compile_context>
chip_gen: v7x
topology: tpu7x:2x2x1
jax: 0.10.0
libtpu: 0.0.40
codegen_flags: <defaults>
</compile_context>

<pallas_src>
import jax
import jax.numpy as jnp
from jax import lax
from jax.experimental import pallas as pl
from jax.experimental.pallas import tpu as pltpu


def _make_kernel(T_total, TT, need_t_mask):
    """Online-softmax pooling kernel over T-tiles.

    Refs:
      x_ref : (BB, D, TT) tile of channels-first input
      w_ref : (D, 1)      attn_vector weight column (f32)
      o_ref : (BB, D)     pooled output, lane-dense (D on lanes)
    Scratch (persist across the T grid axis):
      m_sc  : (BB, 1) running max
      l_sc  : (BB, 1) running softmax denominator
      acc_sc: (BB, D) running weighted sum (f32)
    """

    def kernel(x_ref, w_ref, o_ref, m_sc, l_sc, acc_sc):
        kv = pl.program_id(1)

        @pl.when(kv == 0)
        def _():
            m_sc[...] = jnp.full_like(m_sc, -jnp.inf)
            l_sc[...] = jnp.zeros_like(l_sc)
            acc_sc[...] = jnp.zeros_like(acc_sc)

        w = w_ref[...]                                            # (D, 1) f32

        # Pass 1 over the VMEM tile: logits over tokens (reduce D, sublane axis).
        # VPU multiply + XLU reduce instead of an M=1 MXU matmul.
        logits = jnp.sum(x_ref[...].astype(jnp.float32) * w, axis=1)  # (BB, TT)

        if need_t_mask:
            t0 = kv * TT
            tidx = t0 + lax.broadcasted_iota(jnp.int32, logits.shape, 1)
            logits = jnp.where(tidx < T_total, logits, -jnp.inf)

        # Online (streaming) softmax update.
        m_new = jnp.maximum(m_sc[...], jnp.max(logits, axis=-1, keepdims=True))
        alpha = jnp.exp(m_sc[...] - m_new)                        # (BB, 1)
        p = jnp.exp(logits - m_new)                               # (BB, TT)
        l_sc[...] = alpha * l_sc[...] + jnp.sum(p, axis=-1, keepdims=True)

        # Pass 2 over the VMEM tile: weighted sum over tokens (reduce T, lane
        # axis). VPU multiply + XLU reduce instead of an N=1 MXU matmul.
        acc_sc[...] = alpha * acc_sc[...] + jnp.sum(
            x_ref[...].astype(jnp.float32) * p[:, None, :], axis=-1)  # (BB, D)
        m_sc[...] = m_new

        @pl.when(kv == pl.num_programs(1) - 1)
        def _():
            inv_l = pl.reciprocal(l_sc[...], approx=True)         # EUP slot
            o_ref[...] = (acc_sc[...] * inv_l).astype(o_ref.dtype)

    return kernel


def _chip_config():
    """Chip-aware VMEM budgets: (multi_core, x_buffer_budget, vmem_limit)."""
    try:
        kind = jax.devices()[0].device_kind.lower()
    except Exception:  # pragma: no cover - defensive
        kind = ""
    # Chips with 2 TensorCores sharing the grid via "parallel" axes.
    multi_core = any(s in kind for s in ("v7", "v4", "v5p"))
    vmem_cap = None
    try:
        vmem_cap = int(getattr(pltpu.get_tpu_info(), "vmem_capacity_bytes", 0)) or None
    except Exception:  # pragma: no cover - defensive
        vmem_cap = None
    if vmem_cap is None:
        vmem_cap = (64 if multi_core else 128) * 1024 * 1024

    if multi_core or vmem_cap <= 64 * 1024 * 1024:
        # v7x-class: 64 MiB physical VMEM per core -> conservative budgets
        # (double-buffered x tiles + f32 temporaries must still fit).
        x_buf_budget = 4 * 1024 * 1024
        vmem_limit = min(48 * 1024 * 1024, (vmem_cap * 3) // 4)
    else:
        # v5e / v6e: single TC, 128 MiB physical -> bigger blocks, fewer steps.
        x_buf_budget = 8 * 1024 * 1024
        vmem_limit = 64 * 1024 * 1024
    return multi_core, x_buf_budget, int(vmem_limit)


def _pick_tiles(B, D, T, itemsize, *, multi_core, x_buf_budget):
    """Choose (BB, TT):
       - TT is T if an 8-row tile fits the per-buffer budget, else the largest
         multiple of 128 that does (keeps the last block dim lane-aligned),
       - BB is as large as the budget allows; only on multi-TC chips is it
         capped so the parallel batch axis has >= 2 blocks,
       - BB is a multiple of 8 dividing B when possible (unmasked stores)."""
    if 8 * D * T * itemsize <= x_buf_budget:
        TT = T
    else:
        TT = (x_buf_budget // (8 * D * itemsize)) // 128 * 128
        TT = int(max(128, min(TT, T)))

    BB = int(x_buf_budget // max(D * TT * itemsize, 1))
    BB = max(1, min(BB, B))
    if multi_core and B >= 16:
        BB = min(BB, B // 2)      # keep both TensorCores fed on v7x/v4/v5p
    if B < 8:
        BB = B                    # tiny batch: one (masked-store) block
    else:
        BB = max(8, (BB // 8) * 8)
        while BB > 8 and B % BB != 0:
            BB -= 8
    return BB, TT


def self_attn_pooler(x, weight, bias=None, *, block_b=None, block_t=None):
    """x: (B, D, T) channels-first, weight: (1, D) = nn.Linear(D, 1).weight.
    `bias` is accepted for API parity but unused: softmax is shift-invariant,
    so the Linear bias cannot change the output. Accumulation is f32 even for
    bf16 inputs (pass bf16 x to halve HBM traffic). Returns (B, D, 1)."""
    del bias
    B, D, T = x.shape
    multi_core, x_budget, vmem_limit = _chip_config()
    BB, TT = _pick_tiles(B, D, T, x.dtype.itemsize,
                         multi_core=multi_core, x_buf_budget=x_budget)
    if block_b is not None:
        BB = block_b
    if block_t is not None:
        TT = block_t

    grid = (pl.cdiv(B, BB), pl.cdiv(T, TT))
    need_t_mask = (T % TT) != 0

    # Weight as a (D, 1) f32 column so it broadcasts over (BB, D, TT) in-kernel.
    w_col = weight.reshape(D, 1).astype(jnp.float32)

    pooled = pl.pallas_call(
        _make_kernel(T, TT, need_t_mask),
        out_shape=jax.ShapeDtypeStruct((B, D), x.dtype),
        grid_spec=pltpu.PrefetchScalarGridSpec(
            num_scalar_prefetch=0,
            grid=grid,
            in_specs=[
                pl.BlockSpec((BB, D, TT), lambda i, kv: (i, 0, kv)),
                pl.BlockSpec((D, 1), lambda i, kv: (0, 0)),
            ],
            out_specs=pl.BlockSpec((BB, D), lambda i, kv: (i, 0)),
            scratch_shapes=[
                pltpu.VMEM((BB, 1), jnp.float32),   # running max
                pltpu.VMEM((BB, 1), jnp.float32),   # running denominator
                pltpu.VMEM((BB, D), jnp.float32),   # weighted-sum accumulator
            ],
        ),
        compiler_params=pltpu.CompilerParams(
            dimension_semantics=("parallel", "arbitrary"),
            vmem_limit_bytes=vmem_limit,
        ),
    )(x, w_col)

    # Trailing unsqueeze to (B, D, 1) is a free wrapper-side reshape.
    return pooled[:, :, None]


def _reference(x, weight, bias):
    # Pure-JAX reference mirroring the PyTorch forward (bias included).
    xt = jnp.transpose(x, (0, 2, 1))                             # (B, T, D)
    logits = jnp.einsum("btd,od->bt", xt, weight) + bias[0, 0]   # (B, T)
    attn = jax.nn.softmax(logits, axis=-1)                       # (B, T)
    pooled = jnp.einsum("bt,btd->bd", attn, xt)                  # (B, D)
    return pooled[:, :, None]                                    # (B, D, 1)


if __name__ == "__main__":
    # (batch, output_dim, num_tokens): D (output) and T lane-friendly sizes.
    B, D, T = 16, 128, 256

    key = jax.random.PRNGKey(0)
    kx, kw, kb = jax.random.split(key, 3)

    x = jax.random.normal(kx, (B, D, T), dtype=jnp.float32)
    # nn.Linear(D, 1): weight (1, D), bias (1,) -- deterministic synthetic init.
    bound = 1.0 / (D ** 0.5)
    weight = jax.random.uniform(kw, (1, D), jnp.float32, -bound, bound)
    bias = jax.random.uniform(kb, (1, 1), jnp.float32, -bound, bound)

    ref = _reference(x, weight, bias)

    # Auto-tiled path (single T tile on these small shapes).
    out = jax.block_until_ready(self_attn_pooler(x, weight, bias))
    assert out.shape == (B, D, 1), out.shape
    assert jnp.allclose(out, ref, atol=2e-3, rtol=2e-3), "auto-tiled mismatch"

    # Explicitly exercise the T-tiled online-softmax path (2 batch x 2 T tiles).
    out_tiled = jax.block_until_ready(
        self_attn_pooler(x, weight, bias, block_b=8, block_t=128))
    assert jnp.allclose(out_tiled, ref, atol=2e-3, rtol=2e-3), "T-tiled mismatch"

    print("KERNEL_OK")
</pallas_src>

<mosaic_0001>
module attributes {stable_mosaic.version = 11 : i64} {
  func.func @kernel(%arg0: i32, %arg1: i32, %arg2: memref<16x128x256xf32, #tpu.memory_space<vmem>>, %arg3: memref<128x1xf32, #tpu.memory_space<vmem>>, %arg4: memref<16x128xf32, #tpu.memory_space<vmem>>, %arg5: memref<16x1xf32, #tpu.memory_space<vmem>>, %arg6: memref<16x1xf32, #tpu.memory_space<vmem>>, %arg7: memref<16x128xf32, #tpu.memory_space<vmem>>) attributes {dimension_semantics = [#tpu.dimension_semantics<parallel>, #tpu.dimension_semantics<arbitrary>], iteration_bounds = array<i64: 1, 1>, scalar_prefetch = 0 : i64, scratch_operands = 3 : i64, tpu.core_type = #tpu.core_type<tc>, window_params = [{transform_indices = @transform_0, window_bounds = array<i64: 16, 128, 256>}, {pipeline_mode = #tpu.pipeline_mode<synchronous>, transform_indices = @transform_1, window_bounds = array<i64: 128, 1>}, {transform_indices = @transform_2, window_bounds = array<i64: 16, 128>}]} {
    %c0_i32 = arith.constant 0 : i32
    %0 = arith.cmpi eq, %arg1, %c0_i32 : i32
    %1 = arith.extui %0 : i1 to i32
    %c0_i32_0 = arith.constant 0 : i32
    %2 = arith.cmpi ne, %1, %c0_i32_0 : i32
    scf.if %2 {
      %cst_27 = arith.constant 0xFF800000 : f32
      %39 = vector.broadcast %cst_27 : f32 to vector<16x1xf32>
      %c0_28 = arith.constant 0 : index
      %c0_29 = arith.constant 0 : index
      %40 = vector.load %arg5[%c0_28, %c0_29] : memref<16x1xf32, #tpu.memory_space<vmem>>, vector<16x1xf32>
      tpu.vector_store %arg5[%c0_28, %c0_29], %39 {strides = array<i32>} : memref<16x1xf32, #tpu.memory_space<vmem>>, vector<16x1xf32>,
      %cst_30 = arith.constant 0.000000e+00 : f32
      %41 = vector.broadcast %cst_30 : f32 to vector<16x1xf32>
      %c0_31 = arith.constant 0 : index
      %c0_32 = arith.constant 0 : index
      %42 = vector.load %arg6[%c0_31, %c0_32] : memref<16x1xf32, #tpu.memory_space<vmem>>, vector<16x1xf32>
      tpu.vector_store %arg6[%c0_31, %c0_32], %41 {strides = array<i32>} : memref<16x1xf32, #tpu.memory_space<vmem>>, vector<16x1xf32>,
      %cst_33 = arith.constant 0.000000e+00 : f32
      %43 = vector.broadcast %cst_33 : f32 to vector<16x128xf32>
      %c0_34 = arith.constant 0 : index
      %c0_35 = arith.constant 0 : index
      %44 = vector.load %arg7[%c0_34, %c0_35] : memref<16x128xf32, #tpu.memory_space<vmem>>, vector<16x128xf32>
      tpu.vector_store %arg7[%c0_34, %c0_35], %43 {strides = array<i32>} : memref<16x128xf32, #tpu.memory_space<vmem>>, vector<16x128xf32>,
    } else {
    }
    %c0 = arith.constant 0 : index
    %c0_1 = arith.constant 0 : index
    %3 = vector.load %arg3[%c0, %c0_1] : memref<128x1xf32, #tpu.memory_space<vmem>>, vector<128x1xf32>
    %c0_2 = arith.constant 0 : index
    %c0_3 = arith.constant 0 : index
    %c0_4 = arith.constant 0 : index
    %4 = vector.load %arg2[%c0_2, %c0_3, %c0_4] : memref<16x128x256xf32, #tpu.memory_space<vmem>>, vector<16x128x256xf32>
    %5 = vector.shape_cast %3 : vector<128x1xf32> to vector<1x128x1xf32>
    %6 = vector.broadcast %5 : vector<1x128x1xf32> to vector<16x128x256xf32>
    %7 = arith.mulf %4, %6 : vector<16x128x256xf32>
    %cst = arith.constant dense<0.000000e+00> : vector<16x256xf32>
    %8 = vector.multi_reduction <add>, %7, %cst [1] : vector<16x128x256xf32> to vector<16x256xf32>
    %c0_5 = arith.constant 0 : index
    %c0_6 = arith.constant 0 : index
    %9 = vector.load %arg5[%c0_5, %c0_6] : memref<16x1xf32, #tpu.memory_space<vmem>>, vector<16x1xf32>
    %cst_7 = arith.constant dense<0xFF800000> : vector<16xf32>
    %10 = vector.multi_reduction <maximumf>, %8, %cst_7 [1] : vector<16x256xf32> to vector<16xf32>
    %11 = vector.shape_cast %10 : vector<16xf32> to vector<16x1xf32>
    %12 = arith.maximumf %9, %11 : vector<16x1xf32>
    %c0_8 = arith.constant 0 : index
    %c0_9 = arith.constant 0 : index
    %13 = vector.load %arg5[%c0_8, %c0_9] : memref<16x1xf32, #tpu.memory_space<vmem>>, vector<16x1xf32>
    %14 = arith.subf %13, %12 : vector<16x1xf32>
    %15 = math.exp %14 : vector<16x1xf32>
    %16 = vector.broadcast %12 : vector<16x1xf32> to vector<16x256xf32>
    %17 = arith.subf %8, %16 : vector<16x256xf32>
    %18 = math.exp %17 : vector<16x256xf32>
    %c0_10 = arith.constant 0 : index
    %c0_11 = arith.constant 0 : index
    %19 = vector.load %arg6[%c0_10, %c0_11] : memref<16x1xf32, #tpu.memory_space<vmem>>, vector<16x1xf32>
    %20 = arith.mulf %15, %19 : vector<16x1xf32>
    %cst_12 = arith.constant dense<0.000000e+00> : vector<16xf32>
    %21 = vector.multi_reduction <add>, %18, %cst_12 [1] : vector<16x256xf32> to vector<16xf32>
    %22 = vector.shape_cast %21 : vector<16xf32> to vector<16x1xf32>
    %23 = arith.addf %20, %22 : vector<16x1xf32>
    %c0_13 = arith.constant 0 : index
    %c0_14 = arith.constant 0 : index
    %24 = vector.load %arg6[%c0_13, %c0_14] : memref<16x1xf32, #tpu.memory_space<vmem>>, vector<16x1xf32>
    tpu.vector_store %arg6[%c0_13, %c0_14], %23 {strides = array<i32>} : memref<16x1xf32, #tpu.memory_space<vmem>>, vector<16x1xf32>,
    %c0_15 = arith.constant 0 : index
    %c0_16 = arith.constant 0 : index
    %25 = vector.load %arg7[%c0_15, %c0_16] : memref<16x128xf32, #tpu.memory_space<vmem>>, vector<16x128xf32>
    %26 = vector.broadcast %15 : vector<16x1xf32> to vector<16x128xf32>
    %27 = arith.mulf %26, %25 : vector<16x128xf32>
    %c0_17 = arith.constant 0 : index
    %c0_18 = arith.constant 0 : index
    %c0_19 = arith.constant 0 : index
    %28 = vector.load %arg2[%c0_17, %c0_18, %c0_19] : memref<16x128x256xf32, #tpu.memory_space<vmem>>, vector<16x128x256xf32>
    %29 = vector.shape_cast %18 : vector<16x256xf32> to vector<16x1x256xf32>
    %30 = vector.broadcast %29 : vector<16x1x256xf32> to vector<16x128x256xf32>
    %31 = arith.mulf %28, %30 : vector<16x128x256xf32>
    %cst_20 = arith.constant dense<0.000000e+00> : vector<16x128xf32>
    %32 = vector.multi_reduction <add>, %31, %cst_20 [2] : vector<16x128x256xf32> to vector<16x128xf32>
    %33 = arith.addf %27, %32 : vector<16x128xf32>
    %c0_21 = arith.constant 0 : index
    %c0_22 = arith.constant 0 : index
    %34 = vector.load %arg7[%c0_21, %c0_22] : memref<16x128xf32, #tpu.memory_space<vmem>>, vector<16x128xf32>
    tpu.vector_store %arg7[%c0_21, %c0_22], %33 {strides = array<i32>} : memref<16x128xf32, #tpu.memory_space<vmem>>, vector<16x128xf32>,
    %c0_23 = arith.constant 0 : index
    %c0_24 = arith.constant 0 : index
    %35 = vector.load %arg5[%c0_23, %c0_24] : memref<16x1xf32, #tpu.memory_space<vmem>>, vector<16x1xf32>
    tpu.vector_store %arg5[%c0_23, %c0_24], %12 {strides = array<i32>} : memref<16x1xf32, #tpu.memory_space<vmem>>, vector<16x1xf32>,
    %c0_i32_25 = arith.constant 0 : i32
    %36 = arith.cmpi eq, %arg1, %c0_i32_25 : i32
    %37 = arith.extui %36 : i1 to i32
    %c0_i32_26 = arith.constant 0 : i32
    %38 = arith.cmpi ne, %37, %c0_i32_26 : i32
    scf.if %38 {
      %c0_27 = arith.constant 0 : index
      %c0_28 = arith.constant 0 : index
      %39 = vector.load %arg6[%c0_27, %c0_28] : memref<16x1xf32, #tpu.memory_space<vmem>>, vector<16x1xf32>
      %40 = tpu.reciprocal %39 {approx = true} : vector<16x1xf32> -> vector<16x1xf32>
      %c0_29 = arith.constant 0 : index
      %c0_30 = arith.constant 0 : index
      %41 = vector.load %arg7[%c0_29, %c0_30] : memref<16x128xf32, #tpu.memory_space<vmem>>, vector<16x128xf32>
      %42 = vector.broadcast %40 : vector<16x1xf32> to vector<16x128xf32>
      %43 = arith.mulf %41, %42 : vector<16x128xf32>
      %c0_31 = arith.constant 0 : index
      %c0_32 = arith.constant 0 : index
      %44 = vector.load %arg4[%c0_31, %c0_32] : memref<16x128xf32, #tpu.memory_space<vmem>>, vector<16x128xf32>
      tpu.vector_store %arg4[%c0_31, %c0_32], %43 {strides = array<i32>} : memref<16x128xf32, #tpu.memory_space<vmem>>, vector<16x128xf32>,
    } else {
    }
    return
  }
  func.func @transform_0(%arg0: i32, %arg1: i32) -> (i32, i32, i32) {
    %c0_i32 = arith.constant 0 : i32
    %c0_i32_0 = arith.constant 0 : i32
    return %arg0, %c0_i32, %arg1 : i32, i32, i32
  }
  func.func @transform_1(%arg0: i32, %arg1: i32) -> (i32, i32) {
    %c0_i32 = arith.constant 0 : i32
    %c0_i32_0 = arith.constant 0 : i32
    %c0_i32_1 = arith.constant 0 : i32
    return %c0_i32, %c0_i32_0 : i32, i32
  }
  func.func @transform_2(%arg0: i32, %arg1: i32) -> (i32, i32) {
    %c0_i32 = arith.constant 0 : i32
    %c0_i32_0 = arith.constant 0 : i32
    return %arg0, %c0_i32 : i32, i32
  }
}

</mosaic_0001>

<llo_original>
// kernel: tpu_custom_call.1
$region0: #{tpu_custom_call.1}
  #allocation0 [shape = 'u32[]', space=smem, size = 0x4, offset = 0x4, fixed_abs, tag = 'smem constant byte address 0x4 - core index']
  #allocation1 [shape = 'u32[144,128]{1,0:T(1,128)}', space=vmem, size = 0x12000, scoped, tag = 'internal scratch']
  #allocation2 [shape = 'f32[16,1]{1,0:T(8,128)}', space=vmem, size = 0x2000, scoped, tag = 'scratch operand']
  #allocation3 [shape = 'f32[16,1]{1,0:T(8,128)}', space=vmem, size = 0x2000, scoped, tag = 'scratch operand']
  #allocation4 [shape = 'f32[16,128]{1,0:T(8,128)}', space=vmem, size = 0x2000, scoped, tag = 'scratch operand']
  %s0 = inlined_call_operand.hbm [shape: f32[16,128,256], index: 0, kind: input, shape index: {}]
  %s1 = inlined_call_operand.hbm [shape: f32[128,1], index: 1, kind: input, shape index: {}]
  %s2 = inlined_call_operand.hbm [shape: f32[16,128], index: 2, kind: output, shape index: {}]
  %s3 = sld [smem:[#allocation0]]
  $region34: #{tpu_custom_call.1} parent=0
    _
  %s5 = ssub.s32 1, %s3
  %s6 = scalar_select 0, %s5, %s3
  $region1: #{tpu_custom_call.1} parent=0
    #allocation5 [shape = 'u8[2097152]{0}', space=vmem, size = 0x200000, scoped, tag = 'input window, operand 0, single buffered']
    #allocation6 [shape = 's32[1]{0}', space=sflag, size = 0x4, scoped, tag = 'scoped memory for tpu_custom_call.1']
    #allocation7 [shape = 's32[1]{0}', space=sflag, size = 0x4, scoped, tag = 'scoped memory for tpu_custom_call.1']
    #allocation8 [shape = 'u8[65536]{0}', space=vmem, size = 0x10000, scoped, tag = 'input window, operand 1, single buffered']
    #allocation9 [shape = 's32[1]{0}', space=sflag, size = 0x4, scoped, tag = 'scoped memory for tpu_custom_call.1']
    #allocation10 [shape = 'u8[8192]{0}', space=vmem, size = 0x2000, scoped, tag = 'output window, operand 0, single buffered']
    %7 = vsyncpa [#allocation6], 0
    %8 = vsyncpa [#allocation9], 0
    %9 = vsyncpa [#allocation7], 0
    // Predicated region
    $region2: #{tpu_custom_call.1} parent=1 // pred_check
      _
    $region3: #{tpu_custom_call.1} parent=1 // pred_check_branch
      %11 = sbr.rel (0) target = $region5
    $region4: #{tpu_custom_call.1} parent=1 // pred_region
      %s13 = ssub.s32 65536, 65536
      %14 = vsyncadd [#allocation6], %s13
      %s15 = sshll.u32 [#allocation5], 4
      %s16 = int_to_ptr.vmem [resolvable:$true] %s15
      %21 = dma.hbm_to_vmem [thread:$0]  %s0, 65536, %s16, [#allocation6], 256, 256, 16
    $region5: #{tpu_custom_call.1} parent=1 // pred_fallthru
      _
    // Predicated region
    $region6: #{tpu_custom_call.1} parent=1 // pred_check
      _
    $region7: #{tpu_custom_call.1} parent=1 // pred_check_branch
      %23 = sbr.rel (0) target = $region9
    $region8: #{tpu_custom_call.1} parent=1 // pred_region
      %s25 = ssub.s32 2048, 2048
      %26 = vsyncadd [#allocation9], %s25
      %s27 = sshll.u32 [#allocation8], 4
      %s28 = int_to_ptr.vmem [resolvable:$true] %s27
      %33 = dma.hbm_to_vmem [thread:$0]  %s1, 2048, %s28, [#allocation9], 128, 128, 8
    $region9: #{tpu_custom_call.1} parent=1 // pred_fallthru
      _
    // Predicated region
    $region10: #{tpu_custom_call.1} parent=1 // pred_check
      _
    $region11: #{tpu_custom_call.1} parent=1 // pred_check_branch
      %35 = sbr.rel (0) target = $region13
    $region12: #{tpu_custom_call.1} parent=1 // pred_region
      %36 = dma.done [#allocation6], 65536
    $region13: #{tpu_custom_call.1} parent=1 // pred_fallthru
      _
    // Predicated region
    $region14: #{tpu_custom_call.1} parent=1 // pred_check
      _
    $region15: #{tpu_custom_call.1} parent=1 // pred_check_branch
      %38 = sbr.rel (0) target = $region17
    $region16: #{tpu_custom_call.1} parent=1 // pred_region
      %39 = dma.done [#allocation9], 2048
    $region17: #{tpu_custom_call.1} parent=1 // pred_fallthru
      _
    %p40 = scmp.eq.s32.totalorder 0, 0
    // Predicated region
    $region18: #{tpu_custom_call.1} parent=1 // pred_check
      %p41 = pneg %p40
    $region19: #{tpu_custom_call.1} parent=1 // pred_check_branch
      %43 = sbr.rel (%p41) target = $region21
    $region20: #{tpu_custom_call.1} parent=1 // pred_region
      %vm44 = vcmask 7168
      %45 = vst.msk [vmem:[#allocation2] sm:$0xff] %vm44, -inf
      %46 = vst.msk [vmem:[#allocation2 + $0x8] sm:$0xff] %vm44, -inf
      %47 = vst.msk [vmem:[#allocation3] sm:$0xff] %vm44, 0.0
      %48 = vst.msk [vmem:[#allocation3 + $0x8] sm:$0xff] %vm44, 0.0
      %49 = vst [vmem:[#allocation4] sm:$0xff] 0.0
      %50 = vst [vmem:[#allocation4 + $0x8] sm:$0xff] 0.0
    $region21: #{tpu_custom_call.1} parent=1 // pred_fallthru
      _
    %v51 = vld [vmem:[#allocation8] sm:$0xff]
    %v52 = vld [vmem:[#allocation8 + $0x8] sm:$0xff]
    %v53 = vld [vmem:[#allocation8 + $0x10] sm:$0xff]
    %v54 = vld [vmem:[#allocation8 + $0x18] sm:$0xff]
    %v55 = vld [vmem:[#allocation8 + $0x20] sm:$0xff]
    %v56 = vld [vmem:[#allocation8 + $0x28] sm:$0xff]
    %v57 = vld [vmem:[#allocation8 + $0x30] sm:$0xff]
    %v58 = vld [vmem:[#allocation8 + $0x38] sm:$0xff]
    %v59 = vld [vmem:[#allocation8 + $0x40] sm:$0xff]
    %v60 = vld [vmem:[#allocation8 + $0x48] sm:$0xff]
    %v61 = vld [vmem:[#allocation8 + $0x50] sm:$0xff]
    %v62 = vld [vmem:[#allocation8 + $0x58] sm:$0xff]
    %v63 = vld [vmem:[#allocation8 + $0x60] sm:$0xff]
    %v64 = vld [vmem:[#allocation8 + $0x68] sm:$0xff]
    %v65 = vld [vmem:[#allocation8 + $0x70] sm:$0xff]
    %v66 = vld [vmem:[#allocation8 + $0x78] sm:$0xff]
    %v67 = vld [vmem:[#allocation5] sm:$0xff]
    %v68 = vld [vmem:[#allocation5 + $0x8] sm:$0xff]
    %v69 = vld [vmem:[#allocation5 + $0x10] sm:$0xff]
    %v70 = vld [vmem:[#allocation5 + $0x18] sm:$0xff]
    %v71 = vld [vmem:[#allocation5 + $0x20] sm:$0xff]
    %v72 = vld [vmem:[#allocation5 + $0x28] sm:$0xff]
    %v73 = vld [vmem:[#allocation5 + $0x30] sm:$0xff]
    %v74 = vld [vmem:[#allocation5 + $0x38] sm:$0xff]
    %v75 = vld [vmem:[#allocation5 + $0x40] sm:$0xff]
    %v76 = vld [vmem:[#allocation5 + $0x48] sm:$0xff]
    %v77 = vld [vmem:[#allocation5 + $0x50] sm:$0xff]
    %v78 = vld [vmem:[#allocation5 + $0x58] sm:$0xff]
    %v79 = vld [vmem:[#allocation5 + $0x60] sm:$0xff]
    %v80 = vld [vmem:[#allocation5 + $0x68] sm:$0xff]
    %v81 = vld [vmem:[#allocation5 + $0x70] sm:$0xff]
    %v82 = vld [vmem:[#allocation5 + $0x78] sm:$0xff]
    %v83 = vld [vmem:[#allocation5 + $0x80] sm:$0xff]
    %v84 = vld [vmem:[#allocation5 + $0x88] sm:$0xff]
    %v85 = vld [vmem:[#allocation5 + $0x90] sm:$0xff]
    %v86 = vld [vmem:[#allocation5 + $0x98] sm:$0xff]
    %v87 = vld [vmem:[#allocation5 + $0xa0] sm:$0xff]
    %v88 = vld [vmem:[#allocation5 + $0xa8] sm:$0xff]
    %v89 = vld [vmem:[#allocation5 + $0xb0] sm:$0xff]
    %v90 = vld [vmem:[#allocation5 + $0xb8] sm:$0xff]
    %v91 = vld [vmem:[#allocation5 + $0xc0] sm:$0xff]
    %v92 = vld [vmem:[#allocation5 + $0xc8] sm:$0xff]
    %v93 = vld [vmem:[#allocation5 + $0xd0] sm:$0xff]
    %v94 = vld [vmem:[#allocation5 + $0xd8] sm:$0xff]
    %v95 = vld [vmem:[#allocation5 + $0xe0] sm:$0xff]
    %v96 = vld [vmem:[#allocation5 + $0xe8] sm:$0xff]
    %v97 = vld [vmem:[#allocation5 + $0xf0] sm:$0xff]
    %v98 = vld [vmem:[#allocation5 + $0xf8] sm:$0xff]
    %v99 = vld [vmem:[#allocation5 + $0x100] sm:$0xff]
    %v100 = vld [vmem:[#allocation5 + $0x108] sm:$0xff]
    %v101 = vld [vmem:[#allocation5 + $0x110] sm:$0xff]
    %v102 = vld [vmem:[#allocation5 + $0x118] sm:$0xff]
    %v103 = vld [vmem:[#allocation5 + $0x120] sm:$0xff]
    %v104 = vld [vmem:[#allocation5 + $0x128] sm:$0xff]
    %v105 = vld [vmem:[#allocation5 + $0x130] sm:$0xff]
    %v106 = vld [vmem:[#allocation5 + $0x138] sm:$0xff]
    %v107 = vld [vmem:[#allocation5 + $0x140] sm:$0xff]
    %v108 = vld [vmem:[#allocation5 + $0x148] sm:$0xff]
    %v109 = vld [vmem:[#allocation5 + $0x150] sm:$0xff]
    %v110 = vld [vmem:[#allocation5 + $0x158] sm:$0xff]
    %v111 = vld [vmem:[#allocation5 + $0x160] sm:$0xff]
    %v112 = vld [vmem:[#allocation5 + $0x168] sm:$0xff]
    %v113 = vld [vmem:[#allocation5 + $0x170] sm:$0xff]
    %v114 = vld [vmem:[#allocation5 + $0x178] sm:$0xff]
    %v115 = vld [vmem:[#allocation5 + $0x180] sm:$0xff]
    %v116 = vld [vmem:[#allocation5 + $0x188] sm:$0xff]
    %v117 = vld [vmem:[#allocation5 + $0x190] sm:$0xff]
    %v118 = vld [vmem:[#allocation5 + $0x198] sm:$0xff]
    %v119 = vld [vmem:[#allocation5 + $0x1a0] sm:$0xff]
    %v120 = vld [vmem:[#allocation5 + $0x1a8] sm:$0xff]
    %v121 = vld [vmem:[#allocation5 + $0x1b0] sm:$0xff]
    %v122 = vld [vmem:[#allocation5 + $0x1b8] sm:$0xff]
    %v123 = vld [vmem:[#allocation5 + $0x1c0] sm:$0xff]
    %v124 = vld [vmem:[#allocation5 + $0x1c8] sm:$0xff]
    %v125 = vld [vmem:[#allocation5 + $0x1d0] sm:$0xff]
    %v126 = vld [vmem:[#allocation5 + $0x1d8] sm:$0xff]
    %v127 = vld [vmem:[#allocation5 + $0x1e0] sm:$0xff]
    %v128 = vld [vmem:[#allocation5 + $0x1e8] sm:$0xff]
    %v129 = vld [vmem:[#allocation5 + $0x1f0] sm:$0xff]
    %v130 = vld [vmem:[#allocation5 + $0x1f8] sm:$0xff]
    %v131 = vld [vmem:[#allocation5 + $0x200] sm:$0xff]
    %v132 = vld [vmem:[#allocation5 + $0x208] sm:$0xff]
    %v133 = vld [vmem:[#allocation5 + $0x210] sm:$0xff]
    %v134 = vld [vmem:[#allocation5 + $0x218] sm:$0xff]
    %v135 = vld [vmem:[#allocation5 + $0x220] sm:$0xff]
    %v136 = vld [vmem:[#allocation5 + $0x228] sm:$0xff]
    %v137 = vld [vmem:[#allocation5 + $0x230] sm:$0xff]
    %v138 = vld [vmem:[#allocation5 + $0x238] sm:$0xff]
    %v139 = vld [vmem:[#allocation5 + $0x240] sm:$0xff]
    %v140 = vld [vmem:[#allocation5 + $0x248] sm:$0xff]
    %v141 = vld [vmem:[#allocation5 + $0x250] sm:$0xff]
    %v142 = vld [vmem:[#allocation5 + $0x258] sm:$0xff]
    %v143 = vld [vmem:[#allocation5 + $0x260] sm:$0xff]
    %v144 = vld [vmem:[#allocation5 + $0x268] sm:$0xff]
    %v145 = vld [vmem:[#allocation5 + $0x270] sm:$0xff]
    %v146 = vld [vmem:[#allocation5 + $0x278] sm:$0xff]
    %v147 = vld [vmem:[#allocation5 + $0x280] sm:$0xff]
    %v148 = vld [vmem:[#allocation5 + $0x288] sm:$0xff]
    %v149 = vld [vmem:[#allocation5 + $0x290] sm:$0xff]
    %v150 = vld [vmem:[#allocation5 + $0x298] sm:$0xff]
    %v151 = vld [vmem:[#allocation5 + $0x2a0] sm:$0xff]
    %v152 = vld [vmem:[#allocation5 + $0x2a8] sm:$0xff]
    %v153 = vld [vmem:[#allocation5 + $0x2b0] sm:$0xff]
    %v154 = vld [vmem:[#allocation5 + $0x2b8] sm:$0xff]
    %v155 = vld [vmem:[#allocation5 + $0x2c0] sm:$0xff]
    %v156 = vld [vmem:[#allocation5 + $0x2c8] sm:$0xff]
    %v157 = vld [vmem:[#allocation5 + $0x2d0] sm:$0xff]
    %v158 = vld [vmem:[#allocation5 + $0x2d8] sm:$0xff]
    %v159 = vld [vmem:[#allocation5 + $0x2e0] sm:$0xff]
    %v160 = vld [vmem:[#allocation5 + $0x2e8] sm:$0xff]
    %v161 = vld [vmem:[#allocation5 + $0x2f0] sm:$0xff]
    %v162 = vld [vmem:[#allocation5 + $0x2f8] sm:$0xff]
    %v163 = vld [vmem:[#allocation5 + $0x300] sm:$0xff]
    %v164 = vld [vmem:[#allocation5 + $0x308] sm:$0xff]
    %v165 = vld [vmem:[#allocation5 + $0x310] sm:$0xff]
    %v166 = vld [vmem:[#allocation5 + $0x318] sm:$0xff]
    %v167 = vld [vmem:[#allocation5 + $0x320] sm:$0xff]
    %v168 = vld [vmem:[#allocation5 + $0x328] sm:$0xff]
    %v169 = vld [vmem:[#allocation5 + $0x330] sm:$0xff]
    %v170 = vld [vmem:[#allocation5 + $0x338] sm:$0xff]
    %v171 = vld [vmem:[#allocation5 + $0x340] sm:$0xff]
    %v172 = vld [vmem:[#allocation5 + $0x348] sm:$0xff]
    %v173 = vld [vmem:[#allocation5 + $0x350] sm:$0xff]
    %v174 = vld [vmem:[#allocation5 + $0x358] sm:$0xff]
    %v175 = vld [vmem:[#allocation5 + $0x360] sm:$0xff]
    %v176 = vld [vmem:[#allocation5 + $0x368] sm:$0xff]
    %v177 = vld [vmem:[#allocation5 + $0x370] sm:$0xff]
    %v178 = vld [vmem:[#allocation5 + $0x378] sm:$0xff]
    %v179 = vld [vmem:[#allocation5 + $0x380] sm:$0xff]
    %v180 = vld [vmem:[#allocation5 + $0x388] sm:$0xff]
    %v181 = vld [vmem:[#allocation5 + $0x390] sm:$0xff]
    %v182 = vld [vmem:[#allocation5 + $0x398] sm:$0xff]
    %v183 = vld [vmem:[#allocation5 + $0x3a0] sm:$0xff]
    %v184 = vld [vmem:[#allocation5 + $0x3a8] sm:$0xff]
    %v185 = vld [vmem:[#allocation5 + $0x3b0] sm:$0xff]
    %v186 = vld [vmem:[#allocation5 + $0x3b8] sm:$0xff]
    %v187 = vld [vmem:[#allocation5 + $0x3c0] sm:$0xff]
    %v188 = vld [vmem:[#allocation5 + $0x3c8] sm:$0xff]
    %v189 = vld [vmem:[#allocation5 + $0x3d0] sm:$0xff]
    %v190 = vld [vmem:[#allocation5 + $0x3d8] sm:$0xff]
    %v191 = vld [vmem:[#allocation5 + $0x3e0] sm:$0xff]
    %v192 = vld [vmem:[#allocation5 + $0x3e8] sm:$0xff]
    %v193 = vld [vmem:[#allocation5 + $0x3f0] sm:$0xff]
    %v194 = vld [vmem:[#allocation5 + $0x3f8] sm:$0xff]
    %v195 = vld [vmem:[#allocation5 + $0x400] sm:$0xff]
    %v196 = vld [vmem:[#allocation5 + $0x408] sm:$0xff]
    %v197 = vld [vmem:[#allocation5 + $0x410] sm:$0xff]
    %v198 = vld [vmem:[#allocation5 + $0x418] sm:$0xff]
    %v199 = vld [vmem:[#allocation5 + $0x420] sm:$0xff]
    %v200 = vld [vmem:[#allocation5 + $0x428] sm:$0xff]
    %v201 = vld [vmem:[#allocation5 + $0x430] sm:$0xff]
    %v202 = vld [vmem:[#allocation5 + $0x438] sm:$0xff]
    %v203 = vld [vmem:[#allocation5 + $0x440] sm:$0xff]
    %v204 = vld [vmem:[#allocation5 + $0x448] sm:$0xff]
    %v205 = vld [vmem:[#allocation5 + $0x450] sm:$0xff]
    %v206 = vld [vmem:[#allocation5 + $0x458] sm:$0xff]
    %v207 = vld [vmem:[#allocation5 + $0x460] sm:$0xff]
    %v208 = vld [vmem:[#allocation5 + $0x468] sm:$0xff]
    %v209 = vld [vmem:[#allocation5 + $0x470] sm:$0xff]
    %v210 = vld [vmem:[#allocation5 + $0x478] sm:$0xff]
    %v211 = vld [vmem:[#allocation5 + $0x480] sm:$0xff]
    %v212 = vld [vmem:[#allocation5 + $0x488] sm:$0xff]
    %v213 = vld [vmem:[#allocation5 + $0x490] sm:$0xff]
    %v214 = vld [vmem:[#allocation5 + $0x498] sm:$0xff]
    %v215 = vld [vmem:[#allocation5 + $0x4a0] sm:$0xff]
    %v216 = vld [vmem:[#allocation5 + $0x4a8] sm:$0xff]
    %v217 = vld [vmem:[#allocation5 + $0x4b0] sm:$0xff]
    %v218 = vld [vmem:[#allocation5 + $0x4b8] sm:$0xff]
    %v219 = vld [vmem:[#allocation5 + $0x4c0] sm:$0xff]
    %v220 = vld [vmem:[#allocation5 + $0x4c8] sm:$0xff]
    %v221 = vld [vmem:[#allocation5 + $0x4d0] sm:$0xff]
    %v222 = vld [vmem:[#allocation5 + $0x4d8] sm:$0xff]
    %v223 = vld [vmem:[#allocation5 + $0x4e0] sm:$0xff]
    %v224 = vld [vmem:[#allocation5 + $0x4e8] sm:$0xff]
    %v225 = vld [vmem:[#allocation5 + $0x4f0] sm:$0xff]
    %v226 = vld [vmem:[#allocation5 + $0x4f8] sm:$0xff]
    %v227 = vld [vmem:[#allocation5 + $0x500] sm:$0xff]
    %v228 = vld [vmem:[#allocation5 + $0x508] sm:$0xff]
    %v229 = vld [vmem:[#allocation5 + $0x510] sm:$0xff]
    %v230 = vld [vmem:[#allocation5 + $0x518] sm:$0xff]
    %v231 = vld [vmem:[#allocation5 + $0x520] sm:$0xff]
    %v232 = vld [vmem:[#allocation5 + $0x528] sm:$0xff]
    %v233 = vld [vmem:[#allocation5 + $0x530] sm:$0xff]
    %v234 = vld [vmem:[#allocation5 + $0x538] sm:$0xff]
    %v235 = vld [vmem:[#allocation5 + $0x540] sm:$0xff]
    %v236 = vld [vmem:[#allocation5 + $0x548] sm:$0xff]
    %v237 = vld [vmem:[#allocation5 + $0x550] sm:$0xff]
    %v238 = vld [vmem:[#allocation5 + $0x558] sm:$0xff]
    %v239 = vld [vmem:[#allocation5 + $0x560] sm:$0xff]
    %v240 = vld [vmem:[#allocation5 + $0x568] sm:$0xff]
    %v241 = vld [vmem:[#allocation5 + $0x570] sm:$0xff]
    %v242 = vld [vmem:[#allocation5 + $0x578] sm:$0xff]
    %v243 = vld [vmem:[#allocation5 + $0x580] sm:$0xff]
    %v244 = vld [vmem:[#allocation5 + $0x588] sm:$0xff]
    %v245 = vld [vmem:[#allocation5 + $0x590] sm:$0xff]
    %v246 = vld [vmem:[#allocation5 + $0x598] sm:$0xff]
    %v247 = vld [vmem:[#allocation5 + $0x5a0] sm:$0xff]
    %v248 = vld [vmem:[#allocation5 + $0x5a8] sm:$0xff]
    %v249 = vld [vmem:[#allocation5 + $0x5b0] sm:$0xff]
    %v250 = vld [vmem:[#allocation5 + $0x5b8] sm:$0xff]
    %v251 = vld [vmem:[#allocation5 + $0x5c0] sm:$0xff]
    %v252 = vld [vmem:[#allocation5 + $0x5c8] sm:$0xff]
    %v253 = vld [vmem:[#allocation5 + $0x5d0] sm:$0xff]
    %v254 = vld [vmem:[#allocation5 + $0x5d8] sm:$0xff]
    %v255 = vld [vmem:[#allocation5 + $0x5e0] sm:$0xff]
    %v256 = vld [vmem:[#allocation5 + $0x5e8] sm:$0xff]
    %v257 = vld [vmem:[#allocation5 + $0x5f0] sm:$0xff]
    %v258 = vld [vmem:[#allocation5 + $0x5f8] sm:$0xff]
    %v259 = vld [vmem:[#allocation5 + $0x600] sm:$0xff]
    %v260 = vld [vmem:[#allocation5 + $0x608] sm:$0xff]
    %v261 = vld [vmem:[#allocation5 + $0x610] sm:$0xff]
    %v262 = vld [vmem:[#allocation5 + $0x618] sm:$0xff]
    %v263 = vld [vmem:[#allocation5 + $0x620] sm:$0xff]
    %v264 = vld [vmem:[#allocation5 + $0x628] sm:$0xff]
    %v265 = vld [vmem:[#allocation5 + $0x630] sm:$0xff]
    %v266 = vld [vmem:[#allocation5 + $0x638] sm:$0xff]
    %v267 = vld [vmem:[#allocation5 + $0x640] sm:$0xff]
    %v268 = vld [vmem:[#allocation5 + $0x648] sm:$0xff]
    %v269 = vld [vmem:[#allocation5 + $0x650] sm:$0xff]
    %v270 = vld [vmem:[#allocation5 + $0x658] sm:$0xff]
    %v271 = vld [vmem:[#allocation5 + $0x660] sm:$0xff]
    %v272 = vld [vmem:[#allocation5 + $0x668] sm:$0xff]
    %v273 = vld [vmem:[#allocation5 + $0x670] sm:$0xff]
    %v274 = vld [vmem:[#allocation5 + $0x678] sm:$0xff]
    %v275 = vld [vmem:[#allocation5 + $0x680] sm:$0xff]
    %v276 = vld [vmem:[#allocation5 + $0x688] sm:$0xff]
    %v277 = vld [vmem:[#allocation5 + $0x690] sm:$0xff]
    %v278 = vld [vmem:[#allocation5 + $0x698] sm:$0xff]
    %v279 = vld [vmem:[#allocation5 + $0x6a0] sm:$0xff]
    %v280 = vld [vmem:[#allocation5 + $0x6a8] sm:$0xff]
    %v281 = vld [vmem:[#allocation5 + $0x6b0] sm:$0xff]
    %v282 = vld [vmem:[#allocation5 + $0x6b8] sm:$0xff]
    %v283 = vld [vmem:[#allocation5 + $0x6c0] sm:$0xff]
    %v284 = vld [vmem:[#allocation5 + $0x6c8] sm:$0xff]
    %v285 = vld [vmem:[#allocation5 + $0x6d0] sm:$0xff]
    %v286 = vld [vmem:[#allocation5 + $0x6d8] sm:$0xff]
    %v287 = vld [vmem:[#allocation5 + $0x6e0] sm:$0xff]
    %v288 = vld [vmem:[#allocation5 + $0x6e8] sm:$0xff]
    %v289 = vld [vmem:[#allocation5 + $0x6f0] sm:$0xff]
    %v290 = vld [vmem:[#allocation5 + $0x6f8] sm:$0xff]
    %v291 = vld [vmem:[#allocation5 + $0x700] sm:$0xff]
    %v292 = vld [vmem:[#allocation5 + $0x708] sm:$0xff]
    %v293 = vld [vmem:[#allocation5 + $0x710] sm:$0xff]
    %v294 = vld [vmem:[#allocation5 + $0x718] sm:$0xff]
    %v295 = vld [vmem:[#allocation5 + $0x720] sm:$0xff]
    %v296 = vld [vmem:[#allocation5 + $0x728] sm:$0xff]
    %v297 = vld [vmem:[#allocation5 + $0x730] sm:$0xff]
    %v298 = vld [vmem:[#allocation5 + $0x738] sm:$0xff]
    %v299 = vld [vmem:[#allocation5 + $0x740] sm:$0xff]
    %v300 = vld [vmem:[#allocation5 + $0x748] sm:$0xff]
    %v301 = vld [vmem:[#allocation5 + $0x750] sm:$0xff]
    %v302 = vld [vmem:[#allocation5 + $0x758] sm:$0xff]
    %v303 = vld [vmem:[#allocation5 + $0x760] sm:$0xff]
    %v304 = vld [vmem:[#allocation5 + $0x768] sm:$0xff]
    %v305 = vld [vmem:[#allocation5 + $0x770] sm:$0xff]
    %v306 = vld [vmem:[#allocation5 + $0x778] sm:$0xff]
    %v307 = vld [vmem:[#allocation5 + $0x780] sm:$0xff]
    %v308 = vld [vmem:[#allocation5 + $0x788] sm:$0xff]
    %v309 = vld [vmem:[#allocation5 + $0x790] sm:$0xff]
    %v310 = vld [vmem:[#allocation5 + $0x798] sm:$0xff]
    %v311 = vld [vmem:[#allocation5 + $0x7a0] sm:$0xff]
    %v312 = vld [vmem:[#allocation5 + $0x7a8] sm:$0xff]
    %v313 = vld [vmem:[#allocation5 + $0x7b0] sm:$0xff]
    %v314 = vld [vmem:[#allocation5 + $0x7b8] sm:$0xff]
    %v315 = vld [vmem:[#allocation5 + $0x7c0] sm:$0xff]
    %v316 = vld [vmem:[#allocation5 + $0x7c8] sm:$0xff]
    %v317 = vld [vmem:[#allocation5 + $0x7d0] sm:$0xff]
    %v318 = vld [vmem:[#allocation5 + $0x7d8] sm:$0xff]
    %v319 = vld [vmem:[#allocation5 + $0x7e0] sm:$0xff]
    %v320 = vld [vmem:[#allocation5 + $0x7e8] sm:$0xff]
    %v321 = vld [vmem:[#allocation5 + $0x7f0] sm:$0xff]
    %v322 = vld [vmem:[#allocation5 + $0x7f8] sm:$0xff]
    %v323 = vld [vmem:[#allocation5 + $0x800] sm:$0xff]
    %v324 = vld [vmem:[#allocation5 + $0x808] sm:$0xff]
    %v325 = vld [vmem:[#allocation5 + $0x810] sm:$0xff]
    %v326 = vld [vmem:[#allocation5 + $0x818] sm:$0xff]
    %v327 = vld [vmem:[#allocation5 + $0x820] sm:$0xff]
    %v328 = vld [vmem:[#allocation5 + $0x828] sm:$0xff]
    %v329 = vld [vmem:[#allocation5 + $0x830] sm:$0xff]
    %v330 = vld [vmem:[#allocation5 + $0x838] sm:$0xff]
    %v331 = vld [vmem:[#allocation5 + $0x840] sm:$0xff]
    %v332 = vld [vmem:[#allocation5 + $0x848] sm:$0xff]
    %v333 = vld [vmem:[#allocation5 + $0x850] sm:$0xff]
    %v334 = vld [vmem:[#allocation5 + $0x858] sm:$0xff]
    %v335 = vld [vmem:[#allocation5 + $0x860] sm:$0xff]
    %v336 = vld [vmem:[#allocation5 + $0x868] sm:$0xff]
    %v337 = vld [vmem:[#allocation5 + $0x870] sm:$0xff]
    %v338 = vld [vmem:[#allocation5 + $0x878] sm:$0xff]
    %v339 = vld [vmem:[#allocation5 + $0x880] sm:$0xff]
    %v340 = vld [vmem:[#allocation5 + $0x888] sm:$0xff]
    %v341 = vld [vmem:[#allocation5 + $0x890] sm:$0xff]
    %v342 = vld [vmem:[#allocation5 + $0x898] sm:$0xff]
    %v343 = vld [vmem:[#allocation5 + $0x8a0] sm:$0xff]
    %v344 = vld [vmem:[#allocation5 + $0x8a8] sm:$0xff]
    %v345 = vld [vmem:[#allocation5 + $0x8b0] sm:$0xff]
    %v346 = vld [vmem:[#allocation5 + $0x8b8] sm:$0xff]
    %v347 = vld [vmem:[#allocation5 + $0x8c0] sm:$0xff]
    %v348 = vld [vmem:[#allocation5 + $0x8c8] sm:$0xff]
    %v349 = vld [vmem:[#allocation5 + $0x8d0] sm:$0xff]
    %v350 = vld [vmem:[#allocation5 + $0x8d8] sm:$0xff]
    %v351 = vld [vmem:[#allocation5 + $0x8e0] sm:$0xff]
    %v352 = vld [vmem:[#allocation5 + $0x8e8] sm:$0xff]
    %v353 = vld [vmem:[#allocation5 + $0x8f0] sm:$0xff]
    %v354 = vld [vmem:[#allocation5 + $0x8f8] sm:$0xff]
    %v355 = vld [vmem:[#allocation5 + $0x900] sm:$0xff]
    %v356 = vld [vmem:[#allocation5 + $0x908] sm:$0xff]
    %v357 = vld [vmem:[#allocation5 + $0x910] sm:$0xff]
    %v358 = vld [vmem:[#allocation5 + $0x918] sm:$0xff]
    %v359 = vld [vmem:[#allocation5 + $0x920] sm:$0xff]
    %v360 = vld [vmem:[#allocation5 + $0x928] sm:$0xff]
    %v361 = vld [vmem:[#allocation5 + $0x930] sm:$0xff]
    %v362 = vld [vmem:[#allocation5 + $0x938] sm:$0xff]
    %v363 = vld [vmem:[#allocation5 + $0x940] sm:$0xff]
    %v364 = vld [vmem:[#allocation5 + $0x948] sm:$0xff]
    %v365 = vld [vmem:[#allocation5 + $0x950] sm:$0xff]
    %v366 = vld [vmem:[#allocation5 + $0x958] sm:$0xff]
    %v367 = vld [vmem:[#allocation5 + $0x960] sm:$0xff]
    %v368 = vld [vmem:[#allocation5 + $0x968] sm:$0xff]
    %v369 = vld [vmem:[#allocation5 + $0x970] sm:$0xff]
    %v370 = vld [vmem:[#allocation5 + $0x978] sm:$0xff]
    %v371 = vld [vmem:[#allocation5 + $0x980] sm:$0xff]
    %v372 = vld [vmem:[#allocation5 + $0x988] sm:$0xff]
    %v373 = vld [vmem:[#allocation5 + $0x990] sm:$0xff]
    %v374 = vld [vmem:[#allocation5 + $0x998] sm:$0xff]
    %v375 = vld [vmem:[#allocation5 + $0x9a0] sm:$0xff]
    %v376 = vld [vmem:[#allocation5 + $0x9a8] sm:$0xff]
    %v377 = vld [vmem:[#allocation5 + $0x9b0] sm:$0xff]
    %v378 = vld [vmem:[#allocation5 + $0x9b8] sm:$0xff]
    %v379 = vld [vmem:[#allocation5 + $0x9c0] sm:$0xff]
    %v380 = vld [vmem:[#allocation5 + $0x9c8] sm:$0xff]
    %v381 = vld [vmem:[#allocation5 + $0x9d0] sm:$0xff]
    %v382 = vld [vmem:[#allocation5 + $0x9d8] sm:$0xff]
    %v383 = vld [vmem:[#allocation5 + $0x9e0] sm:$0xff]
    %v384 = vld [vmem:[#allocation5 + $0x9e8] sm:$0xff]
    %v385 = vld [vmem:[#allocation5 + $0x9f0] sm:$0xff]
    %v386 = vld [vmem:[#allocation5 + $0x9f8] sm:$0xff]
    %v387 = vld [vmem:[#allocation5 + $0xa00] sm:$0xff]
    %v388 = vld [vmem:[#allocation5 + $0xa08] sm:$0xff]
    %v389 = vld [vmem:[#allocation5 + $0xa10] sm:$0xff]
    %v390 = vld [vmem:[#allocation5 + $0xa18] sm:$0xff]
    %v391 = vld [vmem:[#allocation5 + $0xa20] sm:$0xff]
    %v392 = vld [vmem:[#allocation5 + $0xa28] sm:$0xff]
    %v393 = vld [vmem:[#allocation5 + $0xa30] sm:$0xff]
    %v394 = vld [vmem:[#allocation5 + $0xa38] sm:$0xff]
    %v395 = vld [vmem:[#allocation5 + $0xa40] sm:$0xff]
    %v396 = vld [vmem:[#allocation5 + $0xa48] sm:$0xff]
    %v397 = vld [vmem:[#allocation5 + $0xa50] sm:$0xff]
    %v398 = vld [vmem:[#allocation5 + $0xa58] sm:$0xff]
    %v399 = vld [vmem:[#allocation5 + $0xa60] sm:$0xff]
    %v400 = vld [vmem:[#allocation5 + $0xa68] sm:$0xff]
    %v401 = vld [vmem:[#allocation5 + $0xa70] sm:$0xff]
    %v402 = vld [vmem:[#allocation5 + $0xa78] sm:$0xff]
    %v403 = vld [vmem:[#allocation5 + $0xa80] sm:$0xff]
    %v404 = vld [vmem:[#allocation5 + $0xa88] sm:$0xff]
    %v405 = vld [vmem:[#allocation5 + $0xa90] sm:$0xff]
    %v406 = vld [vmem:[#allocation5 + $0xa98] sm:$0xff]
    %v407 = vld [vmem:[#allocation5 + $0xaa0] sm:$0xff]
    %v408 = vld [vmem:[#allocation5 + $0xaa8] sm:$0xff]
    %v409 = vld [vmem:[#allocation5 + $0xab0] sm:$0xff]
    %v410 = vld [vmem:[#allocation5 + $0xab8] sm:$0xff]
    %v411 = vld [vmem:[#allocation5 + $0xac0] sm:$0xff]
    %v412 = vld [vmem:[#allocation5 + $0xac8] sm:$0xff]
    %v413 = vld [vmem:[#allocation5 + $0xad0] sm:$0xff]
    %v414 = vld [vmem:[#allocation5 + $0xad8] sm:$0xff]
    %v415 = vld [vmem:[#allocation5 + $0xae0] sm:$0xff]
    %v416 = vld [vmem:[#allocation5 + $0xae8] sm:$0xff]
    %v417 = vld [vmem:[#allocation5 + $0xaf0] sm:$0xff]
    %v418 = vld [vmem:[#allocation5 + $0xaf8] sm:$0xff]
    %v419 = vld [vmem:[#allocation5 + $0xb00] sm:$0xff]
    %v420 = vld [vmem:[#allocation5 + $0xb08] sm:$0xff]
    %v421 = vld [vmem:[#allocation5 + $0xb10] sm:$0xff]
    %v422 = vld [vmem:[#allocation5 + $0xb18] sm:$0xff]
    %v423 = vld [vmem:[#allocation5 + $0xb20] sm:$0xff]
    %v424 = vld [vmem:[#allocation5 + $0xb28] sm:$0xff]
    %v425 = vld [vmem:[#allocation5 + $0xb30] sm:$0xff]
    %v426 = vld [vmem:[#allocation5 + $0xb38] sm:$0xff]
    %v427 = vld [vmem:[#allocation5 + $0xb40] sm:$0xff]
    %v428 = vld [vmem:[#allocation5 + $0xb48] sm:$0xff]
    %v429 = vld [vmem:[#allocation5 + $0xb50] sm:$0xff]
    %v430 = vld [vmem:[#allocation5 + $0xb58] sm:$0xff]
    %v431 = vld [vmem:[#allocation5 + $0xb60] sm:$0xff]
    %v432 = vld [vmem:[#allocation5 + $0xb68] sm:$0xff]
    %v433 = vld [vmem:[#allocation5 + $0xb70] sm:$0xff]
    %v434 = vld [vmem:[#allocation5 + $0xb78] sm:$0xff]
    %v435 = vld [vmem:[#allocation5 + $0xb80] sm:$0xff]
    %v436 = vld [vmem:[#allocation5 + $0xb88] sm:$0xff]
    %v437 = vld [vmem:[#allocation5 + $0xb90] sm:$0xff]
    %v438 = vld [vmem:[#allocation5 + $0xb98] sm:$0xff]
    %v439 = vld [vmem:[#allocation5 + $0xba0] sm:$0xff]
    %v440 = vld [vmem:[#allocation5 + $0xba8] sm:$0xff]
    %v441 = vld [vmem:[#allocation5 + $0xbb0] sm:$0xff]
    %v442 = vld [vmem:[#allocation5 + $0xbb8] sm:$0xff]
    %v443 = vld [vmem:[#allocation5 + $0xbc0] sm:$0xff]
    %v444 = vld [vmem:[#allocation5 + $0xbc8] sm:$0xff]
    %v445 = vld [vmem:[#allocation5 + $0xbd0] sm:$0xff]
    %v446 = vld [vmem:[#allocation5 + $0xbd8] sm:$0xff]
    %v447 = vld [vmem:[#allocation5 + $0xbe0] sm:$0xff]
    %v448 = vld [vmem:[#allocation5 + $0xbe8] sm:$0xff]
    %v449 = vld [vmem:[#allocation5 + $0xbf0] sm:$0xff]
    %v450 = vld [vmem:[#allocation5 + $0xbf8] sm:$0xff]
    %v451 = vld [vmem:[#allocation5 + $0xc00] sm:$0xff]
    %v452 = vld [vmem:[#allocation5 + $0xc08] sm:$0xff]
    %v453 = vld [vmem:[#allocation5 + $0xc10] sm:$0xff]
    %v454 = vld [vmem:[#allocation5 + $0xc18] sm:$0xff]
    %v455 = vld [vmem:[#allocation5 + $0xc20] sm:$0xff]
    %v456 = vld [vmem:[#allocation5 + $0xc28] sm:$0xff]
    %v457 = vld [vmem:[#allocation5 + $0xc30] sm:$0xff]
    %v458 = vld [vmem:[#allocation5 + $0xc38] sm:$0xff]
    %v459 = vld [vmem:[#allocation5 + $0xc40] sm:$0xff]
    %v460 = vld [vmem:[#allocation5 + $0xc48] sm:$0xff]
    %v461 = vld [vmem:[#allocation5 + $0xc50] sm:$0xff]
    %v462 = vld [vmem:[#allocation5 + $0xc58] sm:$0xff]
    %v463 = vld [vmem:[#allocation5 + $0xc60] sm:$0xff]
    %v464 = vld [vmem:[#allocation5 + $0xc68] sm:$0xff]
    %v465 = vld [vmem:[#allocation5 + $0xc70] sm:$0xff]
    %v466 = vld [vmem:[#allocation5 + $0xc78] sm:$0xff]
    %v467 = vld [vmem:[#allocation5 + $0xc80] sm:$0xff]
    %v468 = vld [vmem:[#allocation5 + $0xc88] sm:$0xff]
    %v469 = vld [vmem:[#allocation5 + $0xc90] sm:$0xff]
    %v470 = vld [vmem:[#allocation5 + $0xc98] sm:$0xff]
    %v471 = vld [vmem:[#allocation5 + $0xca0] sm:$0xff]
    %v472 = vld [vmem:[#allocation5 + $0xca8] sm:$0xff]
    %v473 = vld [vmem:[#allocation5 + $0xcb0] sm:$0xff]
    %v474 = vld [vmem:[#allocation5 + $0xcb8] sm:$0xff]
    %v475 = vld [vmem:[#allocation5 + $0xcc0] sm:$0xff]
    %v476 = vld [vmem:[#allocation5 + $0xcc8] sm:$0xff]
    %v477 = vld [vmem:[#allocation5 + $0xcd0] sm:$0xff]
    %v478 = vld [vmem:[#allocation5 + $0xcd8] sm:$0xff]
    %v479 = vld [vmem:[#allocation5 + $0xce0] sm:$0xff]
    %v480 = vld [vmem:[#allocation5 + $0xce8] sm:$0xff]
    %v481 = vld [vmem:[#allocation5 + $0xcf0] sm:$0xff]
    %v482 = vld [vmem:[#allocation5 + $0xcf8] sm:$0xff]
    %v483 = vld [vmem:[#allocation5 + $0xd00] sm:$0xff]
    %v484 = vld [vmem:[#allocation5 + $0xd08] sm:$0xff]
    %v485 = vld [vmem:[#allocation5 + $0xd10] sm:$0xff]
    %v486 = vld [vmem:[#allocation5 + $0xd18] sm:$0xff]
    %v487 = vld [vmem:[#allocation5 + $0xd20] sm:$0xff]
    %v488 = vld [vmem:[#allocation5 + $0xd28] sm:$0xff]
    %v489 = vld [vmem:[#allocation5 + $0xd30] sm:$0xff]
    %v490 = vld [vmem:[#allocation5 + $0xd38] sm:$0xff]
    %v491 = vld [vmem:[#allocation5 + $0xd40] sm:$0xff]
    %v492 = vld [vmem:[#allocation5 + $0xd48] sm:$0xff]
    %v493 = vld [vmem:[#allocation5 + $0xd50] sm:$0xff]
    %v494 = vld [vmem:[#allocation5 + $0xd58] sm:$0xff]
    %v495 = vld [vmem:[#allocation5 + $0xd60] sm:$0xff]
    %v496 = vld [vmem:[#allocation5 + $0xd68] sm:$0xff]
    %v497 = vld [vmem:[#allocation5 + $0xd70] sm:$0xff]
    %v498 = vld [vmem:[#allocation5 + $0xd78] sm:$0xff]
    %v499 = vld [vmem:[#allocation5 + $0xd80] sm:$0xff]
    %v500 = vld [vmem:[#allocation5 + $0xd88] sm:$0xff]
    %v501 = vld [vmem:[#allocation5 + $0xd90] sm:$0xff]
    %v502 = vld [vmem:[#allocation5 + $0xd98] sm:$0xff]
    %v503 = vld [vmem:[#allocation5 + $0xda0] sm:$0xff]
    %v504 = vld [vmem:[#allocation5 + $0xda8] sm:$0xff]
    %v505 = vld [vmem:[#allocation5 + $0xdb0] sm:$0xff]
    %v506 = vld [vmem:[#allocation5 + $0xdb8] sm:$0xff]
    %v507 = vld [vmem:[#allocation5 + $0xdc0] sm:$0xff]
    %v508 = vld [vmem:[#allocation5 + $0xdc8] sm:$0xff]
    %v509 = vld [vmem:[#allocation5 + $0xdd0] sm:$0xff]
    %v510 = vld [vmem:[#allocation5 + $0xdd8] sm:$0xff]
    %v511 = vld [vmem:[#allocation5 + $0xde0] sm:$0xff]
    %v512 = vld [vmem:[#allocation5 + $0xde8] sm:$0xff]
    %v513 = vld [vmem:[#allocation5 + $0xdf0] sm:$0xff]
    %v514 = vld [vmem:[#allocation5 + $0xdf8] sm:$0xff]
    %v515 = vld [vmem:[#allocation5 + $0xe00] sm:$0xff]
    %v516 = vld [vmem:[#allocation5 + $0xe08] sm:$0xff]
    %v517 = vld [vmem:[#allocation5 + $0xe10] sm:$0xff]
    %v518 = vld [vmem:[#allocation5 + $0xe18] sm:$0xff]
    %v519 = vld [vmem:[#allocation5 + $0xe20] sm:$0xff]
    %v520 = vld [vmem:[#allocation5 + $0xe28] sm:$0xff]
    %v521 = vld [vmem:[#allocation5 + $0xe30] sm:$0xff]
    %v522 = vld [vmem:[#allocation5 + $0xe38] sm:$0xff]
    %v523 = vld [vmem:[#allocation5 + $0xe40] sm:$0xff]
    %v524 = vld [vmem:[#allocation5 + $0xe48] sm:$0xff]
    %v525 = vld [vmem:[#allocation5 + $0xe50] sm:$0xff]
    %v526 = vld [vmem:[#allocation5 + $0xe58] sm:$0xff]
    %v527 = vld [vmem:[#allocation5 + $0xe60] sm:$0xff]
    %v528 = vld [vmem:[#allocation5 + $0xe68] sm:$0xff]
    %v529 = vld [vmem:[#allocation5 + $0xe70] sm:$0xff]
    %v530 = vld [vmem:[#allocation5 + $0xe78] sm:$0xff]
    %v531 = vld [vmem:[#allocation5 + $0xe80] sm:$0xff]
    %v532 = vld [vmem:[#allocation5 + $0xe88] sm:$0xff]
    %v533 = vld [vmem:[#allocation5 + $0xe90] sm:$0xff]
    %v534 = vld [vmem:[#allocation5 + $0xe98] sm:$0xff]
    %v535 = vld [vmem:[#allocation5 + $0xea0] sm:$0xff]
    %v536 = vld [vmem:[#allocation5 + $0xea8] sm:$0xff]
    %v537 = vld [vmem:[#allocation5 + $0xeb0] sm:$0xff]
    %v538 = vld [vmem:[#allocation5 + $0xeb8] sm:$0xff]
    %v539 = vld [vmem:[#allocation5 + $0xec0] sm:$0xff]
    %v540 = vld [vmem:[#allocation5 + $0xec8] sm:$0xff]
    %v541 = vld [vmem:[#allocation5 + $0xed0] sm:$0xff]
    %v542 = vld [vmem:[#allocation5 + $0xed8] sm:$0xff]
    %v543 = vld [vmem:[#allocation5 + $0xee0] sm:$0xff]
    %v544 = vld [vmem:[#allocation5 + $0xee8] sm:$0xff]
    %v545 = vld [vmem:[#allocation5 + $0xef0] sm:$0xff]
    %v546 = vld [vmem:[#allocation5 + $0xef8] sm:$0xff]
    %v547 = vld [vmem:[#allocation5 + $0xf00] sm:$0xff]
    %v548 = vld [vmem:[#allocation5 + $0xf08] sm:$0xff]
    %v549 = vld [vmem:[#allocation5 + $0xf10] sm:$0xff]
    %v550 = vld [vmem:[#allocation5 + $0xf18] sm:$0xff]
    %v551 = vld [vmem:[#allocation5 + $0xf20] sm:$0xff]
    %v552 = vld [vmem:[#allocation5 + $0xf28] sm:$0xff]
    %v553 = vld [vmem:[#allocation5 + $0xf30] sm:$0xff]
    %v554 = vld [vmem:[#allocation5 + $0xf38] sm:$0xff]
    %v555 = vld [vmem:[#allocation5 + $0xf40] sm:$0xff]
    %v556 = vld [vmem:[#allocation5 + $0xf48] sm:$0xff]
    %v557 = vld [vmem:[#allocation5 + $0xf50] sm:$0xff]
    %v558 = vld [vmem:[#allocation5 + $0xf58] sm:$0xff]
    %v559 = vld [vmem:[#allocation5 + $0xf60] sm:$0xff]
    %v560 = vld [vmem:[#allocation5 + $0xf68] sm:$0xff]
    %v561 = vld [vmem:[#allocation5 + $0xf70] sm:$0xff]
    %v562 = vld [vmem:[#allocation5 + $0xf78] sm:$0xff]
    %v563 = vld [vmem:[#allocation5 + $0xf80] sm:$0xff]
    %v564 = vld [vmem:[#allocation5 + $0xf88] sm:$0xff]
    %v565 = vld [vmem:[#allocation5 + $0xf90] sm:$0xff]
    %v566 = vld [vmem:[#allocation5 + $0xf98] sm:$0xff]
    %v567 = vld [vmem:[#allocation5 + $0xfa0] sm:$0xff]
    %v568 = vld [vmem:[#allocation5 + $0xfa8] sm:$0xff]
    %v569 = vld [vmem:[#allocation5 + $0xfb0] sm:$0xff]
    %v570 = vld [vmem:[#allocation5 + $0xfb8] sm:$0xff]
    %v571 = vld [vmem:[#allocation5 + $0xfc0] sm:$0xff]
    %v572 = vld [vmem:[#allocation5 + $0xfc8] sm:$0xff]
    %v573 = vld [vmem:[#allocation5 + $0xfd0] sm:$0xff]
    %v574 = vld [vmem:[#allocation5 + $0xfd8] sm:$0xff]
    %v575 = vld [vmem:[#allocation5 + $0xfe0] sm:$0xff]
    %v576 = vld [vmem:[#allocation5 + $0xfe8] sm:$0xff]
    %v577 = vld [vmem:[#allocation5 + $0xff0] sm:$0xff]
    %v578 = vld [vmem:[#allocation5 + $0xff8] sm:$0xff]
    %580 = vset.pattern.permute.xlu0 0
    %581 = vperm.xlu0 %580, %v51
    %v582 = vpop.permute.xlu0 %581
    %585 = vset.pattern.permute.xlu0 0
    %586 = vperm.xlu0 %585, %v52
    %v587 = vpop.permute.xlu0 %586
    %590 = vset.pattern.permute.xlu0 0
    %591 = vperm.xlu0 %590, %v53
    %v592 = vpop.permute.xlu0 %591
    %595 = vset.pattern.permute.xlu0 0
    %596 = vperm.xlu0 %595, %v54
    %v597 = vpop.permute.xlu0 %596
    %600 = vset.pattern.permute.xlu0 0
    %601 = vperm.xlu0 %600, %v55
    %v602 = vpop.permute.xlu0 %601
    %605 = vset.pattern.permute.xlu0 0
    %606 = vperm.xlu0 %605, %v56
    %v607 = vpop.permute.xlu0 %606
    %610 = vset.pattern.permute.xlu0 0
    %611 = vperm.xlu0 %610, %v57
    %v612 = vpop.permute.xlu0 %611
    %615 = vset.pattern.permute.xlu0 0
    %616 = vperm.xlu0 %615, %v58
    %v617 = vpop.permute.xlu0 %616
    %620 = vset.pattern.permute.xlu0 0
    %621 = vperm.xlu0 %620, %v59
    %v622 = vpop.permute.xlu0 %621
    %625 = vset.pattern.permute.xlu0 0
    %626 = vperm.xlu0 %625, %v60
    %v627 = vpop.permute.xlu0 %626
    %630 = vset.pattern.permute.xlu0 0
    %631 = vperm.xlu0 %630, %v61
    %v632 = vpop.permute.xlu0 %631
    %635 = vset.pattern.permute.xlu0 0
    %636 = vperm.xlu0 %635, %v62
    %v637 = vpop.permute.xlu0 %636
    %640 = vset.pattern.permute.xlu0 0
    %641 = vperm.xlu0 %640, %v63
    %v642 = vpop.permute.xlu0 %641
    %645 = vset.pattern.permute.xlu0 0
    %646 = vperm.xlu0 %645, %v64
    %v647 = vpop.permute.xlu0 %646
    %650 = vset.pattern.permute.xlu0 0
    %651 = vperm.xlu0 %650, %v65
    %v652 = vpop.permute.xlu0 %651
    %655 = vset.pattern.permute.xlu0 0
    %656 = vperm.xlu0 %655, %v66
    %v657 = vpop.permute.xlu0 %656
    %v659 = vmul.f32 %v67, %v582
    %v660 = vmul.f32 %v68, %v582
    %v661 = vmul.f32 %v69, %v587
    %v662 = vmul.f32 %v70, %v587
    %v663 = vmul.f32 %v71, %v592
    %v664 = vmul.f32 %v72, %v592
    %v665 = vmul.f32 %v73, %v597
    %v666 = vmul.f32 %v74, %v597
    %v667 = vmul.f32 %v75, %v602
    %v668 = vmul.f32 %v76, %v602
    %v669 = vmul.f32 %v77, %v607
    %v670 = vmul.f32 %v78, %v607
    %v671 = vmul.f32 %v79, %v612
    %v672 = vmul.f32 %v80, %v612
    %v673 = vmul.f32 %v81, %v617
    %v674 = vmul.f32 %v82, %v617
    %v675 = vmul.f32 %v83, %v622
    %v676 = vmul.f32 %v84, %v622
    %v677 = vmul.f32 %v85, %v627
    %v678 = vmul.f32 %v86, %v627
    %v679 = vmul.f32 %v87, %v632
    %v680 = vmul.f32 %v88, %v632
    %v681 = vmul.f32 %v89, %v637
    %v682 = vmul.f32 %v90, %v637
    %v683 = vmul.f32 %v91, %v642
    %v684 = vmul.f32 %v92, %v642
    %v685 = vmul.f32 %v93, %v647
    %v686 = vmul.f32 %v94, %v647
    %v687 = vmul.f32 %v95, %v652
    %v688 = vmul.f32 %v96, %v652
    %v689 = vmul.f32 %v97, %v657
    %v690 = vmul.f32 %v98, %v657
    %v691 = vmul.f32 %v99, %v582
    %v692 = vmul.f32 %v100, %v582
    %v693 = vmul.f32 %v101, %v587
    %v694 = vmul.f32 %v102, %v587
    %v695 = vmul.f32 %v103, %v592
    %v696 = vmul.f32 %v104, %v592
    %v697 = vmul.f32 %v105, %v597
    %v698 = vmul.f32 %v106, %v597
    %v699 = vmul.f32 %v107, %v602
    %v700 = vmul.f32 %v108, %v602
    %v701 = vmul.f32 %v109, %v607
    %v702 = vmul.f32 %v110, %v607
    %v703 = vmul.f32 %v111, %v612
    %v704 = vmul.f32 %v112, %v612
    %v705 = vmul.f32 %v113, %v617
    %v706 = vmul.f32 %v114, %v617
    %v707 = vmul.f32 %v115, %v622
    %v708 = vmul.f32 %v116, %v622
    %v709 = vmul.f32 %v117, %v627
    %v710 = vmul.f32 %v118, %v627
    %v711 = vmul.f32 %v119, %v632
    %v712 = vmul.f32 %v120, %v632
    %v713 = vmul.f32 %v121, %v637
    %v714 = vmul.f32 %v122, %v637
    %v715 = vmul.f32 %v123, %v642
    %v716 = vmul.f32 %v124, %v642
    %v717 = vmul.f32 %v125, %v647
    %v718 = vmul.f32 %v126, %v647
    %v719 = vmul.f32 %v127, %v652
    %v720 = vmul.f32 %v128, %v652
    %v721 = vmul.f32 %v129, %v657
    %v722 = vmul.f32 %v130, %v657
    %v723 = vmul.f32 %v131, %v582
    %v724 = vmul.f32 %v132, %v582
    %v725 = vmul.f32 %v133, %v587
    %v726 = vmul.f32 %v134, %v587
    %v727 = vmul.f32 %v135, %v592
    %v728 = vmul.f32 %v136, %v592
    %v729 = vmul.f32 %v137, %v597
    %v730 = vmul.f32 %v138, %v597
    %v731 = vmul.f32 %v139, %v602
    %v732 = vmul.f32 %v140, %v602
    %v733 = vmul.f32 %v141, %v607
    %v734 = vmul.f32 %v142, %v607
    %v735 = vmul.f32 %v143, %v612
    %v736 = vmul.f32 %v144, %v612
    %v737 = vmul.f32 %v145, %v617
    %v738 = vmul.f32 %v146, %v617
    %v739 = vmul.f32 %v147, %v622
    %v740 = vmul.f32 %v148, %v622
    %v741 = vmul.f32 %v149, %v627
    %v742 = vmul.f32 %v150, %v627
    %v743 = vmul.f32 %v151, %v632
    %v744 = vmul.f32 %v152, %v632
    %v745 = vmul.f32 %v153, %v637
    %v746 = vmul.f32 %v154, %v637
    %v747 = vmul.f32 %v155, %v642
    %v748 = vmul.f32 %v156, %v642
    %v749 = vmul.f32 %v157, %v647
    %v750 = vmul.f32 %v158, %v647
    %v751 = vmul.f32 %v159, %v652
    %v752 = vmul.f32 %v160, %v652
    %v753 = vmul.f32 %v161, %v657
    %v754 = vmul.f32 %v162, %v657
    %v755 = vmul.f32 %v163, %v582
    %v756 = vmul.f32 %v164, %v582
    %v757 = vmul.f32 %v165, %v587
    %v758 = vmul.f32 %v166, %v587
    %v759 = vmul.f32 %v167, %v592
    %v760 = vmul.f32 %v168, %v592
    %v761 = vmul.f32 %v169, %v597
    %v762 = vmul.f32 %v170, %v597
    %v763 = vmul.f32 %v171, %v602
    %v764 = vmul.f32 %v172, %v602
    %v765 = vmul.f32 %v173, %v607
    %v766 = vmul.f32 %v174, %v607
    %v767 = vmul.f32 %v175, %v612
    %v768 = vmul.f32 %v176, %v612
    %v769 = vmul.f32 %v177, %v617
    %v770 = vmul.f32 %v178, %v617
    %v771 = vmul.f32 %v179, %v622
    %v772 = vmul.f32 %v180, %v622
    %v773 = vmul.f32 %v181, %v627
    %v774 = vmul.f32 %v182, %v627
    %v775 = vmul.f32 %v183, %v632
    %v776 = vmul.f32 %v184, %v632
    %v777 = vmul.f32 %v185, %v637
    %v778 = vmul.f32 %v186, %v637
    %v779 = vmul.f32 %v187, %v642
    %v780 = vmul.f32 %v188, %v642
    %v781 = vmul.f32 %v189, %v647
    %v782 = vmul.f32 %v190, %v647
    %v783 = vmul.f32 %v191, %v652
    %v784 = vmul.f32 %v192, %v652
    %v785 = vmul.f32 %v193, %v657
    %v786 = vmul.f32 %v194, %v657
    %v787 = vmul.f32 %v195, %v582
    %v788 = vmul.f32 %v196, %v582
    %v789 = vmul.f32 %v197, %v587
    %v790 = vmul.f32 %v198, %v587
    %v791 = vmul.f32 %v199, %v592
    %v792 = vmul.f32 %v200, %v592
    %v793 = vmul.f32 %v201, %v597
    %v794 = vmul.f32 %v202, %v597
    %v795 = vmul.f32 %v203, %v602
    %v796 = vmul.f32 %v204, %v602
    %v797 = vmul.f32 %v205, %v607
    %v798 = vmul.f32 %v206, %v607
    %v799 = vmul.f32 %v207, %v612
    %v800 = vmul.f32 %v208, %v612
    %v801 = vmul.f32 %v209, %v617
    %v802 = vmul.f32 %v210, %v617
    %v803 = vmul.f32 %v211, %v622
    %v804 = vmul.f32 %v212, %v622
    %v805 = vmul.f32 %v213, %v627
    %v806 = vmul.f32 %v214, %v627
    %v807 = vmul.f32 %v215, %v632
    %v808 = vmul.f32 %v216, %v632
    %v809 = vmul.f32 %v217, %v637
    %v810 = vmul.f32 %v218, %v637
    %v811 = vmul.f32 %v219, %v642
    %v812 = vmul.f32 %v220, %v642
    %v813 = vmul.f32 %v221, %v647
    %v814 = vmul.f32 %v222, %v647
    %v815 = vmul.f32 %v223, %v652
    %v816 = vmul.f32 %v224, %v652
    %v817 = vmul.f32 %v225, %v657
    %v818 = vmul.f32 %v226, %v657
    %v819 = vmul.f32 %v227, %v582
    %v820 = vmul.f32 %v228, %v582
    %v821 = vmul.f32 %v229, %v587
    %v822 = vmul.f32 %v230, %v587
    %v823 = vmul.f32 %v231, %v592
    %v824 = vmul.f32 %v232, %v592
    %v825 = vmul.f32 %v233, %v597
    %v826 = vmul.f32 %v234, %v597
    %v827 = vmul.f32 %v235, %v602
    %v828 = vmul.f32 %v236, %v602
    %v829 = vmul.f32 %v237, %v607
    %v830 = vmul.f32 %v238, %v607
    %v831 = vmul.f32 %v239, %v612
    %v832 = vmul.f32 %v240, %v612
    %v833 = vmul.f32 %v241, %v617
    %v834 = vmul.f32 %v242, %v617
    %v835 = vmul.f32 %v243, %v622
    %v836 = vmul.f32 %v244, %v622
    %v837 = vmul.f32 %v245, %v627
    %v838 = vmul.f32 %v246, %v627
    %v839 = vmul.f32 %v247, %v632
    %v840 = vmul.f32 %v248, %v632
    %v841 = vmul.f32 %v249, %v637
    %v842 = vmul.f32 %v250, %v637
    %v843 = vmul.f32 %v251, %v642
    %v844 = vmul.f32 %v252, %v642
    %v845 = vmul.f32 %v253, %v647
    %v846 = vmul.f32 %v254, %v647
    %v847 = vmul.f32 %v255, %v652
    %v848 = vmul.f32 %v256, %v652
    %v849 = vmul.f32 %v257, %v657
    %v850 = vmul.f32 %v258, %v657
    %v851 = vmul.f32 %v259, %v582
    %v852 = vmul.f32 %v260, %v582
    %v853 = vmul.f32 %v261, %v587
    %v854 = vmul.f32 %v262, %v587
    %v855 = vmul.f32 %v263, %v592
    %v856 = vmul.f32 %v264, %v592
    %v857 = vmul.f32 %v265, %v597
    %v858 = vmul.f32 %v266, %v597
    %v859 = vmul.f32 %v267, %v602
    %v860 = vmul.f32 %v268, %v602
    %v861 = vmul.f32 %v269, %v607
    %v862 = vmul.f32 %v270, %v607
    %v863 = vmul.f32 %v271, %v612
    %v864 = vmul.f32 %v272, %v612
    %v865 = vmul.f32 %v273, %v617
    %v866 = vmul.f32 %v274, %v617
    %v867 = vmul.f32 %v275, %v622
    %v868 = vmul.f32 %v276, %v622
    %v869 = vmul.f32 %v277, %v627
    %v870 = vmul.f32 %v278, %v627
    %v871 = vmul.f32 %v279, %v632
    %v872 = vmul.f32 %v280, %v632
    %v873 = vmul.f32 %v281, %v637
    %v874 = vmul.f32 %v282, %v637
    %v875 = vmul.f32 %v283, %v642
    %v876 = vmul.f32 %v284, %v642
    %v877 = vmul.f32 %v285, %v647
    %v878 = vmul.f32 %v286, %v647
    %v879 = vmul.f32 %v287, %v652
    %v880 = vmul.f32 %v288, %v652
    %v881 = vmul.f32 %v289, %v657
    %v882 = vmul.f32 %v290, %v657
    %v883 = vmul.f32 %v291, %v582
    %v884 = vmul.f32 %v292, %v582
    %v885 = vmul.f32 %v293, %v587
    %v886 = vmul.f32 %v294, %v587
    %v887 = vmul.f32 %v295, %v592
    %v888 = vmul.f32 %v296, %v592
    %v889 = vmul.f32 %v297, %v597
    %v890 = vmul.f32 %v298, %v597
    %v891 = vmul.f32 %v299, %v602
    %v892 = vmul.f32 %v300, %v602
    %v893 = vmul.f32 %v301, %v607
    %v894 = vmul.f32 %v302, %v607
    %v895 = vmul.f32 %v303, %v612
    %v896 = vmul.f32 %v304, %v612
    %v897 = vmul.f32 %v305, %v617
    %v898 = vmul.f32 %v306, %v617
    %v899 = vmul.f32 %v307, %v622
    %v900 = vmul.f32 %v308, %v622
    %v901 = vmul.f32 %v309, %v627
    %v902 = vmul.f32 %v310, %v627
    %v903 = vmul.f32 %v311, %v632
    %v904 = vmul.f32 %v312, %v632
    %v905 = vmul.f32 %v313, %v637
    %v906 = vmul.f32 %v314, %v637
    %v907 = vmul.f32 %v315, %v642
    %v908 = vmul.f32 %v316, %v642
    %v909 = vmul.f32 %v317, %v647
    %v910 = vmul.f32 %v318, %v647
    %v911 = vmul.f32 %v319, %v652
    %v912 = vmul.f32 %v320, %v652
    %v913 = vmul.f32 %v321, %v657
    %v914 = vmul.f32 %v322, %v657
    %v915 = vmul.f32 %v323, %v582
    %v916 = vmul.f32 %v324, %v582
    %v917 = vmul.f32 %v325, %v587
    %v918 = vmul.f32 %v326, %v587
    %v919 = vmul.f32 %v327, %v592
    %v920 = vmul.f32 %v328, %v592
    %v921 = vmul.f32 %v329, %v597
    %v922 = vmul.f32 %v330, %v597
    %v923 = vmul.f32 %v331, %v602
    %v924 = vmul.f32 %v332, %v602
    %v925 = vmul.f32 %v333, %v607
    %v926 = vmul.f32 %v334, %v607
    %v927 = vmul.f32 %v335, %v612
    %v928 = vmul.f32 %v336, %v612
    %v929 = vmul.f32 %v337, %v617
    %v930 = vmul.f32 %v338, %v617
    %v931 = vmul.f32 %v339, %v622
    %v932 = vmul.f32 %v340, %v622
    %v933 = vmul.f32 %v341, %v627
    %v934 = vmul.f32 %v342, %v627
    %v935 = vmul.f32 %v343, %v632
    %v936 = vmul.f32 %v344, %v632
    %v937 = vmul.f32 %v345, %v637
    %v938 = vmul.f32 %v346, %v637
    %v939 = vmul.f32 %v347, %v642
    %v940 = vmul.f32 %v348, %v642
    %v941 = vmul.f32 %v349, %v647
    %v942 = vmul.f32 %v350, %v647
    %v943 = vmul.f32 %v351, %v652
    %v944 = vmul.f32 %v352, %v652
    %v945 = vmul.f32 %v353, %v657
    %v946 = vmul.f32 %v354, %v657
    %v947 = vmul.f32 %v355, %v582
    %v948 = vmul.f32 %v356, %v582
    %v949 = vmul.f32 %v357, %v587
    %v950 = vmul.f32 %v358, %v587
    %v951 = vmul.f32 %v359, %v592
    %v952 = vmul.f32 %v360, %v592
    %v953 = vmul.f32 %v361, %v597
    %v954 = vmul.f32 %v362, %v597
    %v955 = vmul.f32 %v363, %v602
    %v956 = vmul.f32 %v364, %v602
    %v957 = vmul.f32 %v365, %v607
    %v958 = vmul.f32 %v366, %v607
    %v959 = vmul.f32 %v367, %v612
    %v960 = vmul.f32 %v368, %v612
    %v961 = vmul.f32 %v369, %v617
    %v962 = vmul.f32 %v370, %v617
    %v963 = vmul.f32 %v371, %v622
    %v964 = vmul.f32 %v372, %v622
    %v965 = vmul.f32 %v373, %v627
    %v966 = vmul.f32 %v374, %v627
    %v967 = vmul.f32 %v375, %v632
    %v968 = vmul.f32 %v376, %v632
    %v969 = vmul.f32 %v377, %v637
    %v970 = vmul.f32 %v378, %v637
    %v971 = vmul.f32 %v379, %v642
    %v972 = vmul.f32 %v380, %v642
    %v973 = vmul.f32 %v381, %v647
    %v974 = vmul.f32 %v382, %v647
    %v975 = vmul.f32 %v383, %v652
    %v976 = vmul.f32 %v384, %v652
    %v977 = vmul.f32 %v385, %v657
    %v978 = vmul.f32 %v386, %v657
    %v979 = vmul.f32 %v387, %v582
    %v980 = vmul.f32 %v388, %v582
    %v981 = vmul.f32 %v389, %v587
    %v982 = vmul.f32 %v390, %v587
    %v983 = vmul.f32 %v391, %v592
    %v984 = vmul.f32 %v392, %v592
    %v985 = vmul.f32 %v393, %v597
    %v986 = vmul.f32 %v394, %v597
    %v987 = vmul.f32 %v395, %v602
    %v988 = vmul.f32 %v396, %v602
    %v989 = vmul.f32 %v397, %v607
    %v990 = vmul.f32 %v398, %v607
    %v991 = vmul.f32 %v399, %v612
    %v992 = vmul.f32 %v400, %v612
    %v993 = vmul.f32 %v401, %v617
    %v994 = vmul.f32 %v402, %v617
    %v995 = vmul.f32 %v403, %v622
    %v996 = vmul.f32 %v404, %v622
    %v997 = vmul.f32 %v405, %v627
    %v998 = vmul.f32 %v406, %v627
    %v999 = vmul.f32 %v407, %v632
    %v1000 = vmul.f32 %v408, %v632
    %v1001 = vmul.f32 %v409, %v637
    %v1002 = vmul.f32 %v410, %v637
    %v1003 = vmul.f32 %v411, %v642
    %v1004 = vmul.f32 %v412, %v642
    %v1005 = vmul.f32 %v413, %v647
    %v1006 = vmul.f32 %v414, %v647
    %v1007 = vmul.f32 %v415, %v652
    %v1008 = vmul.f32 %v416, %v652
    %v1009 = vmul.f32 %v417, %v657
    %v1010 = vmul.f32 %v418, %v657
    %v1011 = vmul.f32 %v419, %v582
    %v1012 = vmul.f32 %v420, %v582
    %v1013 = vmul.f32 %v421, %v587
    %v1014 = vmul.f32 %v422, %v587
    %v1015 = vmul.f32 %v423, %v592
    %v1016 = vmul.f32 %v424, %v592
    %v1017 = vmul.f32 %v425, %v597
    %v1018 = vmul.f32 %v426, %v597
    %v1019 = vmul.f32 %v427, %v602
    %v1020 = vmul.f32 %v428, %v602
    %v1021 = vmul.f32 %v429, %v607
    %v1022 = vmul.f32 %v430, %v607
    %v1023 = vmul.f32 %v431, %v612
    %v1024 = vmul.f32 %v432, %v612
    %v1025 = vmul.f32 %v433, %v617
    %v1026 = vmul.f32 %v434, %v617
    %v1027 = vmul.f32 %v435, %v622
    %v1028 = vmul.f32 %v436, %v622
    %v1029 = vmul.f32 %v437, %v627
    %v1030 = vmul.f32 %v438, %v627
    %v1031 = vmul.f32 %v439, %v632
    %v1032 = vmul.f32 %v440, %v632
    %v1033 = vmul.f32 %v441, %v637
    %v1034 = vmul.f32 %v442, %v637
    %v1035 = vmul.f32 %v443, %v642
    %v1036 = vmul.f32 %v444, %v642
    %v1037 = vmul.f32 %v445, %v647
    %v1038 = vmul.f32 %v446, %v647
    %v1039 = vmul.f32 %v447, %v652
    %v1040 = vmul.f32 %v448, %v652
    %v1041 = vmul.f32 %v449, %v657
    %v1042 = vmul.f32 %v450, %v657
    %v1043 = vmul.f32 %v451, %v582
    %v1044 = vmul.f32 %v452, %v582
    %v1045 = vmul.f32 %v453, %v587
    %v1046 = vmul.f32 %v454, %v587
    %v1047 = vmul.f32 %v455, %v592
    %v1048 = vmul.f32 %v456, %v592
    %v1049 = vmul.f32 %v457, %v597
    %v1050 = vmul.f32 %v458, %v597
    %v1051 = vmul.f32 %v459, %v602
    %v1052 = vmul.f32 %v460, %v602
    %v1053 = vmul.f32 %v461, %v607
    %v1054 = vmul.f32 %v462, %v607
    %v1055 = vmul.f32 %v463, %v612
    %v1056 = vmul.f32 %v464, %v612
    %v1057 = vmul.f32 %v465, %v617
    %v1058 = vmul.f32 %v466, %v617
    %v1059 = vmul.f32 %v467, %v622
    %v1060 = vmul.f32 %v468, %v622
    %v1061 = vmul.f32 %v469, %v627
    %v1062 = vmul.f32 %v470, %v627
    %v1063 = vmul.f32 %v471, %v632
    %v1064 = vmul.f32 %v472, %v632
    %v1065 = vmul.f32 %v473, %v637
    %v1066 = vmul.f32 %v474, %v637
    %v1067 = vmul.f32 %v475, %v642
    %v1068 = vmul.f32 %v476, %v642
    %v1069 = vmul.f32 %v477, %v647
    %v1070 = vmul.f32 %v478, %v647
    %v1071 = vmul.f32 %v479, %v652
    %v1072 = vmul.f32 %v480, %v652
    %v1073 = vmul.f32 %v481, %v657
    %v1074 = vmul.f32 %v482, %v657
    %v1075 = vmul.f32 %v483, %v582
    %v1076 = vmul.f32 %v484, %v582
    %v1077 = vmul.f32 %v485, %v587
    %v1078 = vmul.f32 %v486, %v587
    %v1079 = vmul.f32 %v487, %v592
    %v1080 = vmul.f32 %v488, %v592
    %v1081 = vmul.f32 %v489, %v597
    %v1082 = vmul.f32 %v490, %v597
    %v1083 = vmul.f32 %v491, %v602
    %v1084 = vmul.f32 %v492, %v602
    %v1085 = vmul.f32 %v493, %v607
    %v1086 = vmul.f32 %v494, %v607
    %v1087 = vmul.f32 %v495, %v612
    %v1088 = vmul.f32 %v496, %v612
    %v1089 = vmul.f32 %v497, %v617
    %v1090 = vmul.f32 %v498, %v617
    %v1091 = vmul.f32 %v499, %v622
    %v1092 = vmul.f32 %v500, %v622
    %v1093 = vmul.f32 %v501, %v627
    %v1094 = vmul.f32 %v502, %v627
    %v1095 = vmul.f32 %v503, %v632
    %v1096 = vmul.f32 %v504, %v632
    %v1097 = vmul.f32 %v505, %v637
    %v1098 = vmul.f32 %v506, %v637
    %v1099 = vmul.f32 %v507, %v642
    %v1100 = vmul.f32 %v508, %v642
    %v1101 = vmul.f32 %v509, %v647
    %v1102 = vmul.f32 %v510, %v647
    %v1103 = vmul.f32 %v511, %v652
    %v1104 = vmul.f32 %v512, %v652
    %v1105 = vmul.f32 %v513, %v657
    %v1106 = vmul.f32 %v514, %v657
    %v1107 = vmul.f32 %v515, %v582
    %v1108 = vmul.f32 %v516, %v582
    %v1109 = vmul.f32 %v517, %v587
    %v1110 = vmul.f32 %v518, %v587
    %v1111 = vmul.f32 %v519, %v592
    %v1112 = vmul.f32 %v520, %v592
    %v1113 = vmul.f32 %v521, %v597
    %v1114 = vmul.f32 %v522, %v597
    %v1115 = vmul.f32 %v523, %v602
    %v1116 = vmul.f32 %v524, %v602
    %v1117 = vmul.f32 %v525, %v607
    %v1118 = vmul.f32 %v526, %v607
    %v1119 = vmul.f32 %v527, %v612
    %v1120 = vmul.f32 %v528, %v612
    %v1121 = vmul.f32 %v529, %v617
    %v1122 = vmul.f32 %v530, %v617
    %v1123 = vmul.f32 %v531, %v622
    %v1124 = vmul.f32 %v532, %v622
    %v1125 = vmul.f32 %v533, %v627
    %v1126 = vmul.f32 %v534, %v627
    %v1127 = vmul.f32 %v535, %v632
    %v1128 = vmul.f32 %v536, %v632
    %v1129 = vmul.f32 %v537, %v637
    %v1130 = vmul.f32 %v538, %v637
    %v1131 = vmul.f32 %v539, %v642
    %v1132 = vmul.f32 %v540, %v642
    %v1133 = vmul.f32 %v541, %v647
    %v1134 = vmul.f32 %v542, %v647
    %v1135 = vmul.f32 %v543, %v652
    %v1136 = vmul.f32 %v544, %v652
    %v1137 = vmul.f32 %v545, %v657
    %v1138 = vmul.f32 %v546, %v657
    %v1139 = vmul.f32 %v547, %v582
    %v1140 = vmul.f32 %v548, %v582
    %v1141 = vmul.f32 %v549, %v587
    %v1142 = vmul.f32 %v550, %v587
    %v1143 = vmul.f32 %v551, %v592
    %v1144 = vmul.f32 %v552, %v592
    %v1145 = vmul.f32 %v553, %v597
    %v1146 = vmul.f32 %v554, %v597
    %v1147 = vmul.f32 %v555, %v602
    %v1148 = vmul.f32 %v556, %v602
    %v1149 = vmul.f32 %v557, %v607
    %v1150 = vmul.f32 %v558, %v607
    %v1151 = vmul.f32 %v559, %v612
    %v1152 = vmul.f32 %v560, %v612
    %v1153 = vmul.f32 %v561, %v617
    %v1154 = vmul.f32 %v562, %v617
    %v1155 = vmul.f32 %v563, %v622
    %v1156 = vmul.f32 %v564, %v622
    %v1157 = vmul.f32 %v565, %v627
    %v1158 = vmul.f32 %v566, %v627
    %v1159 = vmul.f32 %v567, %v632
    %v1160 = vmul.f32 %v568, %v632
    %v1161 = vmul.f32 %v569, %v637
    %v1162 = vmul.f32 %v570, %v637
    %v1163 = vmul.f32 %v571, %v642
    %v1164 = vmul.f32 %v572, %v642
    %v1165 = vmul.f32 %v573, %v647
    %v1166 = vmul.f32 %v574, %v647
    %v1167 = vmul.f32 %v575, %v652
    %v1168 = vmul.f32 %v576, %v652
    %v1169 = vmul.f32 %v577, %v657
    %v1170 = vmul.f32 %v578, %v657
    %v1171 = vadd.f32 %v659, %v661
    %v1172 = vadd.f32 %v1171, %v663
    %v1173 = vadd.f32 %v1172, %v665
    %v1174 = vadd.f32 %v1173, %v667
    %v1175 = vadd.f32 %v1174, %v669
    %v1176 = vadd.f32 %v1175, %v671
    %v1177 = vadd.f32 %v1176, %v673
    %v1178 = vadd.f32 %v1177, %v675
    %v1179 = vadd.f32 %v1178, %v677
    %v1180 = vadd.f32 %v1179, %v679
    %v1181 = vadd.f32 %v1180, %v681
    %v1182 = vadd.f32 %v1181, %v683
    %v1183 = vadd.f32 %v1182, %v685
    %v1184 = vadd.f32 %v1183, %v687
    %v1185 = vadd.f32 %v1184, %v689
    %v1186 = vrot.slane %v1185, 4
    %v1187 = vadd.f32 %v1185, %v1186
    %v1188 = vrot.slane %v1187, 2
    %v1189 = vadd.f32 %v1187, %v1188
    %v1190 = vrot.slane %v1189, 1
    %v1191 = vadd.f32 %v1189, %v1190
    %v1192 = vadd.f32 %v660, %v662
    %v1193 = vadd.f32 %v1192, %v664
    %v1194 = vadd.f32 %v1193, %v666
    %v1195 = vadd.f32 %v1194, %v668
    %v1196 = vadd.f32 %v1195, %v670
    %v1197 = vadd.f32 %v1196, %v672
    %v1198 = vadd.f32 %v1197, %v674
    %v1199 = vadd.f32 %v1198, %v676
    %v1200 = vadd.f32 %v1199, %v678
    %v1201 = vadd.f32 %v1200, %v680
    %v1202 = vadd.f32 %v1201, %v682
    %v1203 = vadd.f32 %v1202, %v684
    %v1204 = vadd.f32 %v1203, %v686
    %v1205 = vadd.f32 %v1204, %v688
    %v1206 = vadd.f32 %v1205, %v690
    %v1207 = vrot.slane %v1206, 4
    %v1208 = vadd.f32 %v1206, %v1207
    %v1209 = vrot.slane %v1208, 2
    %v1210 = vadd.f32 %v1208, %v1209
    %v1211 = vrot.slane %v1210, 1
    %v1212 = vadd.f32 %v1210, %v1211
    %v1213 = vadd.f32 %v691, %v693
    %v1214 = vadd.f32 %v1213, %v695
    %v1215 = vadd.f32 %v1214, %v697
    %v1216 = vadd.f32 %v1215, %v699
    %v1217 = vadd.f32 %v1216, %v701
    %v1218 = vadd.f32 %v1217, %v703
    %v1219 = vadd.f32 %v1218, %v705
    %v1220 = vadd.f32 %v1219, %v707
    %v1221 = vadd.f32 %v1220, %v709
    %v1222 = vadd.f32 %v1221, %v711
    %v1223 = vadd.f32 %v1222, %v713
    %v1224 = vadd.f32 %v1223, %v715
    %v1225 = vadd.f32 %v1224, %v717
    %v1226 = vadd.f32 %v1225, %v719
    %v1227 = vadd.f32 %v1226, %v721
    %v1228 = vrot.slane %v1227, 4
    %v1229 = vadd.f32 %v1227, %v1228
    %v1230 = vrot.slane %v1229, 2
    %v1231 = vadd.f32 %v1229, %v1230
    %v1232 = vrot.slane %v1231, 1
    %v1233 = vadd.f32 %v1231, %v1232
    %v1234 = vadd.f32 %v692, %v694
    %v1235 = vadd.f32 %v1234, %v696
    %v1236 = vadd.f32 %v1235, %v698
    %v1237 = vadd.f32 %v1236, %v700
    %v1238 = vadd.f32 %v1237, %v702
    %v1239 = vadd.f32 %v1238, %v704
    %v1240 = vadd.f32 %v1239, %v706
    %v1241 = vadd.f32 %v1240, %v708
    %v1242 = vadd.f32 %v1241, %v710
    %v1243 = vadd.f32 %v1242, %v712
    %v1244 = vadd.f32 %v1243, %v714
    %v1245 = vadd.f32 %v1244, %v716
    %v1246 = vadd.f32 %v1245, %v718
    %v1247 = vadd.f32 %v1246, %v720
    %v1248 = vadd.f32 %v1247, %v722
    %v1249 = vrot.slane %v1248, 4
    %v1250 = vadd.f32 %v1248, %v1249
    %v1251 = vrot.slane %v1250, 2
    %v1252 = vadd.f32 %v1250, %v1251
    %v1253 = vrot.slane %v1252, 1
    %v1254 = vadd.f32 %v1252, %v1253
    %v1255 = vadd.f32 %v723, %v725
    %v1256 = vadd.f32 %v1255, %v727
    %v1257 = vadd.f32 %v1256, %v729
    %v1258 = vadd.f32 %v1257, %v731
    %v1259 = vadd.f32 %v1258, %v733
    %v1260 = vadd.f32 %v1259, %v735
    %v1261 = vadd.f32 %v1260, %v737
    %v1262 = vadd.f32 %v1261, %v739
    %v1263 = vadd.f32 %v1262, %v741
    %v1264 = vadd.f32 %v1263, %v743
    %v1265 = vadd.f32 %v1264, %v745
    %v1266 = vadd.f32 %v1265, %v747
    %v1267 = vadd.f32 %v1266, %v749
    %v1268 = vadd.f32 %v1267, %v751
    %v1269 = vadd.f32 %v1268, %v753
    %v1270 = vrot.slane %v1269, 4
    %v1271 = vadd.f32 %v1269, %v1270
    %v1272 = vrot.slane %v1271, 2
    %v1273 = vadd.f32 %v1271, %v1272
    %v1274 = vrot.slane %v1273, 1
    %v1275 = vadd.f32 %v1273, %v1274
    %v1276 = vadd.f32 %v724, %v726
    %v1277 = vadd.f32 %v1276, %v728
    %v1278 = vadd.f32 %v1277, %v730
    %v1279 = vadd.f32 %v1278, %v732
    %v1280 = vadd.f32 %v1279, %v734
    %v1281 = vadd.f32 %v1280, %v736
    %v1282 = vadd.f32 %v1281, %v738
    %v1283 = vadd.f32 %v1282, %v740
    %v1284 = vadd.f32 %v1283, %v742
    %v1285 = vadd.f32 %v1284, %v744
    %v1286 = vadd.f32 %v1285, %v746
    %v1287 = vadd.f32 %v1286, %v748
    %v1288 = vadd.f32 %v1287, %v750
    %v1289 = vadd.f32 %v1288, %v752
    %v1290 = vadd.f32 %v1289, %v754
    %v1291 = vrot.slane %v1290, 4
    %v1292 = vadd.f32 %v1290, %v1291
    %v1293 = vrot.slane %v1292, 2
    %v1294 = vadd.f32 %v1292, %v1293
    %v1295 = vrot.slane %v1294, 1
    %v1296 = vadd.f32 %v1294, %v1295
    %v1297 = vadd.f32 %v755, %v757
    %v1298 = vadd.f32 %v1297, %v759
    %v1299 = vadd.f32 %v1298, %v761
    %v1300 = vadd.f32 %v1299, %v763
    %v1301 = vadd.f32 %v1300, %v765
    %v1302 = vadd.f32 %v1301, %v767
    %v1303 = vadd.f32 %v1302, %v769
    %v1304 = vadd.f32 %v1303, %v771
    %v1305 = vadd.f32 %v1304, %v773
    %v1306 = vadd.f32 %v1305, %v775
    %v1307 = vadd.f32 %v1306, %v777
    %v1308 = vadd.f32 %v1307, %v779
    %v1309 = vadd.f32 %v1308, %v781
    %v1310 = vadd.f32 %v1309, %v783
    %v1311 = vadd.f32 %v1310, %v785
    %v1312 = vrot.slane %v1311, 4
    %v1313 = vadd.f32 %v1311, %v1312
    %v1314 = vrot.slane %v1313, 2
    %v1315 = vadd.f32 %v1313, %v1314
    %v1316 = vrot.slane %v1315, 1
    %v1317 = vadd.f32 %v1315, %v1316
    %v1318 = vadd.f32 %v756, %v758
    %v1319 = vadd.f32 %v1318, %v760
    %v1320 = vadd.f32 %v1319, %v762
    %v1321 = vadd.f32 %v1320, %v764
    %v1322 = vadd.f32 %v1321, %v766
    %v1323 = vadd.f32 %v1322, %v768
    %v1324 = vadd.f32 %v1323, %v770
    %v1325 = vadd.f32 %v1324, %v772
    %v1326 = vadd.f32 %v1325, %v774
    %v1327 = vadd.f32 %v1326, %v776
    %v1328 = vadd.f32 %v1327, %v778
    %v1329 = vadd.f32 %v1328, %v780
    %v1330 = vadd.f32 %v1329, %v782
    %v1331 = vadd.f32 %v1330, %v784
    %v1332 = vadd.f32 %v1331, %v786
    %v1333 = vrot.slane %v1332, 4
    %v1334 = vadd.f32 %v1332, %v1333
    %v1335 = vrot.slane %v1334, 2
    %v1336 = vadd.f32 %v1334, %v1335
    %v1337 = vrot.slane %v1336, 1
    %v1338 = vadd.f32 %v1336, %v1337
    %v1339 = vadd.f32 %v787, %v789
    %v1340 = vadd.f32 %v1339, %v791
    %v1341 = vadd.f32 %v1340, %v793
    %v1342 = vadd.f32 %v1341, %v795
    %v1343 = vadd.f32 %v1342, %v797
    %v1344 = vadd.f32 %v1343, %v799
    %v1345 = vadd.f32 %v1344, %v801
    %v1346 = vadd.f32 %v1345, %v803
    %v1347 = vadd.f32 %v1346, %v805
    %v1348 = vadd.f32 %v1347, %v807
    %v1349 = vadd.f32 %v1348, %v809
    %v1350 = vadd.f32 %v1349, %v811
    %v1351 = vadd.f32 %v1350, %v813
    %v1352 = vadd.f32 %v1351, %v815
    %v1353 = vadd.f32 %v1352, %v817
    %v1354 = vrot.slane %v1353, 4
    %v1355 = vadd.f32 %v1353, %v1354
    %v1356 = vrot.slane %v1355, 2
    %v1357 = vadd.f32 %v1355, %v1356
    %v1358 = vrot.slane %v1357, 1
    %v1359 = vadd.f32 %v1357, %v1358
    %v1360 = vadd.f32 %v788, %v790
    %v1361 = vadd.f32 %v1360, %v792
    %v1362 = vadd.f32 %v1361, %v794
    %v1363 = vadd.f32 %v1362, %v796
    %v1364 = vadd.f32 %v1363, %v798
    %v1365 = vadd.f32 %v1364, %v800
    %v1366 = vadd.f32 %v1365, %v802
    %v1367 = vadd.f32 %v1366, %v804
    %v1368 = vadd.f32 %v1367, %v806
    %v1369 = vadd.f32 %v1368, %v808
    %v1370 = vadd.f32 %v1369, %v810
    %v1371 = vadd.f32 %v1370, %v812
    %v1372 = vadd.f32 %v1371, %v814
    %v1373 = vadd.f32 %v1372, %v816
    %v1374 = vadd.f32 %v1373, %v818
    %v1375 = vrot.slane %v1374, 4
    %v1376 = vadd.f32 %v1374, %v1375
    %v1377 = vrot.slane %v1376, 2
    %v1378 = vadd.f32 %v1376, %v1377
    %v1379 = vrot.slane %v1378, 1
    %v1380 = vadd.f32 %v1378, %v1379
    %v1381 = vadd.f32 %v819, %v821
    %v1382 = vadd.f32 %v1381, %v823
    %v1383 = vadd.f32 %v1382, %v825
    %v1384 = vadd.f32 %v1383, %v827
    %v1385 = vadd.f32 %v1384, %v829
    %v1386 = vadd.f32 %v1385, %v831
    %v1387 = vadd.f32 %v1386, %v833
    %v1388 = vadd.f32 %v1387, %v835
    %v1389 = vadd.f32 %v1388, %v837
    %v1390 = vadd.f32 %v1389, %v839
    %v1391 = vadd.f32 %v1390, %v841
    %v1392 = vadd.f32 %v1391, %v843
    %v1393 = vadd.f32 %v1392, %v845
    %v1394 = vadd.f32 %v1393, %v847
    %v1395 = vadd.f32 %v1394, %v849
    %v1396 = vrot.slane %v1395, 4
    %v1397 = vadd.f32 %v1395, %v1396
    %v1398 = vrot.slane %v1397, 2
    %v1399 = vadd.f32 %v1397, %v1398
    %v1400 = vrot.slane %v1399, 1
    %v1401 = vadd.f32 %v1399, %v1400
    %v1402 = vadd.f32 %v820, %v822
    %v1403 = vadd.f32 %v1402, %v824
    %v1404 = vadd.f32 %v1403, %v826
    %v1405 = vadd.f32 %v1404, %v828
    %v1406 = vadd.f32 %v1405, %v830
    %v1407 = vadd.f32 %v1406, %v832
    %v1408 = vadd.f32 %v1407, %v834
    %v1409 = vadd.f32 %v1408, %v836
    %v1410 = vadd.f32 %v1409, %v838
    %v1411 = vadd.f32 %v1410, %v840
    %v1412 = vadd.f32 %v1411, %v842
    %v1413 = vadd.f32 %v1412, %v844
    %v1414 = vadd.f32 %v1413, %v846
    %v1415 = vadd.f32 %v1414, %v848
    %v1416 = vadd.f32 %v1415, %v850
    %v1417 = vrot.slane %v1416, 4
    %v1418 = vadd.f32 %v1416, %v1417
    %v1419 = vrot.slane %v1418, 2
    %v1420 = vadd.f32 %v1418, %v1419
    %v1421 = vrot.slane %v1420, 1
    %v1422 = vadd.f32 %v1420, %v1421
    %v1423 = vadd.f32 %v851, %v853
    %v1424 = vadd.f32 %v1423, %v855
    %v1425 = vadd.f32 %v1424, %v857
    %v1426 = vadd.f32 %v1425, %v859
    %v1427 = vadd.f32 %v1426, %v861
    %v1428 = vadd.f32 %v1427, %v863
    %v1429 = vadd.f32 %v1428, %v865
    %v1430 = vadd.f32 %v1429, %v867
    %v1431 = vadd.f32 %v1430, %v869
    %v1432 = vadd.f32 %v1431, %v871
    %v1433 = vadd.f32 %v1432, %v873
    %v1434 = vadd.f32 %v1433, %v875
    %v1435 = vadd.f32 %v1434, %v877
    %v1436 = vadd.f32 %v1435, %v879
    %v1437 = vadd.f32 %v1436, %v881
    %v1438 = vrot.slane %v1437, 4
    %v1439 = vadd.f32 %v1437, %v1438
    %v1440 = vrot.slane %v1439, 2
    %v1441 = vadd.f32 %v1439, %v1440
    %v1442 = vrot.slane %v1441, 1
    %v1443 = vadd.f32 %v1441, %v1442
    %v1444 = vadd.f32 %v852, %v854
    %v1445 = vadd.f32 %v1444, %v856
    %v1446 = vadd.f32 %v1445, %v858
    %v1447 = vadd.f32 %v1446, %v860
    %v1448 = vadd.f32 %v1447, %v862
    %v1449 = vadd.f32 %v1448, %v864
    %v1450 = vadd.f32 %v1449, %v866
    %v1451 = vadd.f32 %v1450, %v868
    %v1452 = vadd.f32 %v1451, %v870
    %v1453 = vadd.f32 %v1452, %v872
    %v1454 = vadd.f32 %v1453, %v874
    %v1455 = vadd.f32 %v1454, %v876
    %v1456 = vadd.f32 %v1455, %v878
    %v1457 = vadd.f32 %v1456, %v880
    %v1458 = vadd.f32 %v1457, %v882
    %v1459 = vrot.slane %v1458, 4
    %v1460 = vadd.f32 %v1458, %v1459
    %v1461 = vrot.slane %v1460, 2
    %v1462 = vadd.f32 %v1460, %v1461
    %v1463 = vrot.slane %v1462, 1
    %v1464 = vadd.f32 %v1462, %v1463
    %v1465 = vadd.f32 %v883, %v885
    %v1466 = vadd.f32 %v1465, %v887
    %v1467 = vadd.f32 %v1466, %v889
    %v1468 = vadd.f32 %v1467, %v891
    %v1469 = vadd.f32 %v1468, %v893
    %v1470 = vadd.f32 %v1469, %v895
    %v1471 = vadd.f32 %v1470, %v897
    %v1472 = vadd.f32 %v1471, %v899
    %v1473 = vadd.f32 %v1472, %v901
    %v1474 = vadd.f32 %v1473, %v903
    %v1475 = vadd.f32 %v1474, %v905
    %v1476 = vadd.f32 %v1475, %v907
    %v1477 = vadd.f32 %v1476, %v909
    %v1478 = vadd.f32 %v1477, %v911
    %v1479 = vadd.f32 %v1478, %v913
    %v1480 = vrot.slane %v1479, 4
    %v1481 = vadd.f32 %v1479, %v1480
    %v1482 = vrot.slane %v1481, 2
    %v1483 = vadd.f32 %v1481, %v1482
    %v1484 = vrot.slane %v1483, 1
    %v1485 = vadd.f32 %v1483, %v1484
    %v1486 = vadd.f32 %v884, %v886
    %v1487 = vadd.f32 %v1486, %v888
    %v1488 = vadd.f32 %v1487, %v890
    %v1489 = vadd.f32 %v1488, %v892
    %v1490 = vadd.f32 %v1489, %v894
    %v1491 = vadd.f32 %v1490, %v896
    %v1492 = vadd.f32 %v1491, %v898
    %v1493 = vadd.f32 %v1492, %v900
    %v1494 = vadd.f32 %v1493, %v902
    %v1495 = vadd.f32 %v1494, %v904
    %v1496 = vadd.f32 %v1495, %v906
    %v1497 = vadd.f32 %v1496, %v908
    %v1498 = vadd.f32 %v1497, %v910
    %v1499 = vadd.f32 %v1498, %v912
    %v1500 = vadd.f32 %v1499, %v914
    %v1501 = vrot.slane %v1500, 4
    %v1502 = vadd.f32 %v1500, %v1501
    %v1503 = vrot.slane %v1502, 2
    %v1504 = vadd.f32 %v1502, %v1503
    %v1505 = vrot.slane %v1504, 1
    %v1506 = vadd.f32 %v1504, %v1505
    %v1507 = vadd.f32 %v915, %v917
    %v1508 = vadd.f32 %v1507, %v919
    %v1509 = vadd.f32 %v1508, %v921
    %v1510 = vadd.f32 %v1509, %v923
    %v1511 = vadd.f32 %v1510, %v925
    %v1512 = vadd.f32 %v1511, %v927
    %v1513 = vadd.f32 %v1512, %v929
    %v1514 = vadd.f32 %v1513, %v931
    %v1515 = vadd.f32 %v1514, %v933
    %v1516 = vadd.f32 %v1515, %v935
    %v1517 = vadd.f32 %v1516, %v937
    %v1518 = vadd.f32 %v1517, %v939
    %v1519 = vadd.f32 %v1518, %v941
    %v1520 = vadd.f32 %v1519, %v943
    %v1521 = vadd.f32 %v1520, %v945
    %v1522 = vrot.slane %v1521, 4
    %v1523 = vadd.f32 %v1521, %v1522
    %v1524 = vrot.slane %v1523, 2
    %v1525 = vadd.f32 %v1523, %v1524
    %v1526 = vrot.slane %v1525, 1
    %v1527 = vadd.f32 %v1525, %v1526
    %v1528 = vadd.f32 %v916, %v918
    %v1529 = vadd.f32 %v1528, %v920
    %v1530 = vadd.f32 %v1529, %v922
    %v1531 = vadd.f32 %v1530, %v924
    %v1532 = vadd.f32 %v1531, %v926
    %v1533 = vadd.f32 %v1532, %v928
    %v1534 = vadd.f32 %v1533, %v930
    %v1535 = vadd.f32 %v1534, %v932
    %v1536 = vadd.f32 %v1535, %v934
    %v1537 = vadd.f32 %v1536, %v936
    %v1538 = vadd.f32 %v1537, %v938
    %v1539 = vadd.f32 %v1538, %v940
    %v1540 = vadd.f32 %v1539, %v942
    %v1541 = vadd.f32 %v1540, %v944
    %v1542 = vadd.f32 %v1541, %v946
    %v1543 = vrot.slane %v1542, 4
    %v1544 = vadd.f32 %v1542, %v1543
    %v1545 = vrot.slane %v1544, 2
    %v1546 = vadd.f32 %v1544, %v1545
    %v1547 = vrot.slane %v1546, 1
    %v1548 = vadd.f32 %v1546, %v1547
    %v1549 = vadd.f32 %v947, %v949
    %v1550 = vadd.f32 %v1549, %v951
    %v1551 = vadd.f32 %v1550, %v953
    %v1552 = vadd.f32 %v1551, %v955
    %v1553 = vadd.f32 %v1552, %v957
    %v1554 = vadd.f32 %v1553, %v959
    %v1555 = vadd.f32 %v1554, %v961
    %v1556 = vadd.f32 %v1555, %v963
    %v1557 = vadd.f32 %v1556, %v965
    %v1558 = vadd.f32 %v1557, %v967
    %v1559 = vadd.f32 %v1558, %v969
    %v1560 = vadd.f32 %v1559, %v971
    %v1561 = vadd.f32 %v1560, %v973
    %v1562 = vadd.f32 %v1561, %v975
    %v1563 = vadd.f32 %v1562, %v977
    %v1564 = vrot.slane %v1563, 4
    %v1565 = vadd.f32 %v1563, %v1564
    %v1566 = vrot.slane %v1565, 2
    %v1567 = vadd.f32 %v1565, %v1566
    %v1568 = vrot.slane %v1567, 1
    %v1569 = vadd.f32 %v1567, %v1568
    %v1570 = vadd.f32 %v948, %v950
    %v1571 = vadd.f32 %v1570, %v952
    %v1572 = vadd.f32 %v1571, %v954
    %v1573 = vadd.f32 %v1572, %v956
    %v1574 = vadd.f32 %v1573, %v958
    %v1575 = vadd.f32 %v1574, %v960
    %v1576 = vadd.f32 %v1575, %v962
    %v1577 = vadd.f32 %v1576, %v964
    %v1578 = vadd.f32 %v1577, %v966
    %v1579 = vadd.f32 %v1578, %v968
    %v1580 = vadd.f32 %v1579, %v970
    %v1581 = vadd.f32 %v1580, %v972
    %v1582 = vadd.f32 %v1581, %v974
    %v1583 = vadd.f32 %v1582, %v976
    %v1584 = vadd.f32 %v1583, %v978
    %v1585 = vrot.slane %v1584, 4
    %v1586 = vadd.f32 %v1584, %v1585
    %v1587 = vrot.slane %v1586, 2
    %v1588 = vadd.f32 %v1586, %v1587
    %v1589 = vrot.slane %v1588, 1
    %v1590 = vadd.f32 %v1588, %v1589
    %v1591 = vadd.f32 %v979, %v981
    %v1592 = vadd.f32 %v1591, %v983
    %v1593 = vadd.f32 %v1592, %v985
    %v1594 = vadd.f32 %v1593, %v987
    %v1595 = vadd.f32 %v1594, %v989
    %v1596 = vadd.f32 %v1595, %v991
    %v1597 = vadd.f32 %v1596, %v993
    %v1598 = vadd.f32 %v1597, %v995
    %v1599 = vadd.f32 %v1598, %v997
    %v1600 = vadd.f32 %v1599, %v999
    %v1601 = vadd.f32 %v1600, %v1001
    %v1602 = vadd.f32 %v1601, %v1003
    %v1603 = vadd.f32 %v1602, %v1005
    %v1604 = vadd.f32 %v1603, %v1007
    %v1605 = vadd.f32 %v1604, %v1009
    %v1606 = vrot.slane %v1605, 4
    %v1607 = vadd.f32 %v1605, %v1606
    %v1608 = vrot.slane %v1607, 2
    %v1609 = vadd.f32 %v1607, %v1608
    %v1610 = vrot.slane %v1609, 1
    %v1611 = vadd.f32 %v1609, %v1610
    %v1612 = vadd.f32 %v980, %v982
    %v1613 = vadd.f32 %v1612, %v984
    %v1614 = vadd.f32 %v1613, %v986
    %v1615 = vadd.f32 %v1614, %v988
    %v1616 = vadd.f32 %v1615, %v990
    %v1617 = vadd.f32 %v1616, %v992
    %v1618 = vadd.f32 %v1617, %v994
    %v1619 = vadd.f32 %v1618, %v996
    %v1620 = vadd.f32 %v1619, %v998
    %v1621 = vadd.f32 %v1620, %v1000
    %v1622 = vadd.f32 %v1621, %v1002
    %v1623 = vadd.f32 %v1622, %v1004
    %v1624 = vadd.f32 %v1623, %v1006
    %v1625 = vadd.f32 %v1624, %v1008
    %v1626 = vadd.f32 %v1625, %v1010
    %v1627 = vrot.slane %v1626, 4
    %v1628 = vadd.f32 %v1626, %v1627
    %v1629 = vrot.slane %v1628, 2
    %v1630 = vadd.f32 %v1628, %v1629
    %v1631 = vrot.slane %v1630, 1
    %v1632 = vadd.f32 %v1630, %v1631
    %v1633 = vadd.f32 %v1011, %v1013
    %v1634 = vadd.f32 %v1633, %v1015
    %v1635 = vadd.f32 %v1634, %v1017
    %v1636 = vadd.f32 %v1635, %v1019
    %v1637 = vadd.f32 %v1636, %v1021
    %v1638 = vadd.f32 %v1637, %v1023
    %v1639 = vadd.f32 %v1638, %v1025
    %v1640 = vadd.f32 %v1639, %v1027
    %v1641 = vadd.f32 %v1640, %v1029
    %v1642 = vadd.f32 %v1641, %v1031
    %v1643 = vadd.f32 %v1642, %v1033
    %v1644 = vadd.f32 %v1643, %v1035
    %v1645 = vadd.f32 %v1644, %v1037
    %v1646 = vadd.f32 %v1645, %v1039
    %v1647 = vadd.f32 %v1646, %v1041
    %v1648 = vrot.slane %v1647, 4
    %v1649 = vadd.f32 %v1647, %v1648
    %v1650 = vrot.slane %v1649, 2
    %v1651 = vadd.f32 %v1649, %v1650
    %v1652 = vrot.slane %v1651, 1
    %v1653 = vadd.f32 %v1651, %v1652
    %v1654 = vadd.f32 %v1012, %v1014
    %v1655 = vadd.f32 %v1654, %v1016
    %v1656 = vadd.f32 %v1655, %v1018
    %v1657 = vadd.f32 %v1656, %v1020
    %v1658 = vadd.f32 %v1657, %v1022
    %v1659 = vadd.f32 %v1658, %v1024
    %v1660 = vadd.f32 %v1659, %v1026
    %v1661 = vadd.f32 %v1660, %v1028
    %v1662 = vadd.f32 %v1661, %v1030
    %v1663 = vadd.f32 %v1662, %v1032
    %v1664 = vadd.f32 %v1663, %v1034
    %v1665 = vadd.f32 %v1664, %v1036
    %v1666 = vadd.f32 %v1665, %v1038
    %v1667 = vadd.f32 %v1666, %v1040
    %v1668 = vadd.f32 %v1667, %v1042
    %v1669 = vrot.slane %v1668, 4
    %v1670 = vadd.f32 %v1668, %v1669
    %v1671 = vrot.slane %v1670, 2
    %v1672 = vadd.f32 %v1670, %v1671
    %v1673 = vrot.slane %v1672, 1
    %v1674 = vadd.f32 %v1672, %v1673
    %v1675 = vadd.f32 %v1043, %v1045
    %v1676 = vadd.f32 %v1675, %v1047
    %v1677 = vadd.f32 %v1676, %v1049
    %v1678 = vadd.f32 %v1677, %v1051
    %v1679 = vadd.f32 %v1678, %v1053
    %v1680 = vadd.f32 %v1679, %v1055
    %v1681 = vadd.f32 %v1680, %v1057
    %v1682 = vadd.f32 %v1681, %v1059
    %v1683 = vadd.f32 %v1682, %v1061
    %v1684 = vadd.f32 %v1683, %v1063
    %v1685 = vadd.f32 %v1684, %v1065
    %v1686 = vadd.f32 %v1685, %v1067
    %v1687 = vadd.f32 %v1686, %v1069
    %v1688 = vadd.f32 %v1687, %v1071
    %v1689 = vadd.f32 %v1688, %v1073
    %v1690 = vrot.slane %v1689, 4
    %v1691 = vadd.f32 %v1689, %v1690
    %v1692 = vrot.slane %v1691, 2
    %v1693 = vadd.f32 %v1691, %v1692
    %v1694 = vrot.slane %v1693, 1
    %v1695 = vadd.f32 %v1693, %v1694
    %v1696 = vadd.f32 %v1044, %v1046
    %v1697 = vadd.f32 %v1696, %v1048
    %v1698 = vadd.f32 %v1697, %v1050
    %v1699 = vadd.f32 %v1698, %v1052
    %v1700 = vadd.f32 %v1699, %v1054
    %v1701 = vadd.f32 %v1700, %v1056
    %v1702 = vadd.f32 %v1701, %v1058
    %v1703 = vadd.f32 %v1702, %v1060
    %v1704 = vadd.f32 %v1703, %v1062
    %v1705 = vadd.f32 %v1704, %v1064
    %v1706 = vadd.f32 %v1705, %v1066
    %v1707 = vadd.f32 %v1706, %v1068
    %v1708 = vadd.f32 %v1707, %v1070
    %v1709 = vadd.f32 %v1708, %v1072
    %v1710 = vadd.f32 %v1709, %v1074
    %v1711 = vrot.slane %v1710, 4
    %v1712 = vadd.f32 %v1710, %v1711
    %v1713 = vrot.slane %v1712, 2
    %v1714 = vadd.f32 %v1712, %v1713
    %v1715 = vrot.slane %v1714, 1
    %v1716 = vadd.f32 %v1714, %v1715
    %v1717 = vadd.f32 %v1075, %v1077
    %v1718 = vadd.f32 %v1717, %v1079
    %v1719 = vadd.f32 %v1718, %v1081
    %v1720 = vadd.f32 %v1719, %v1083
    %v1721 = vadd.f32 %v1720, %v1085
    %v1722 = vadd.f32 %v1721, %v1087
    %v1723 = vadd.f32 %v1722, %v1089
    %v1724 = vadd.f32 %v1723, %v1091
    %v1725 = vadd.f32 %v1724, %v1093
    %v1726 = vadd.f32 %v1725, %v1095
    %v1727 = vadd.f32 %v1726, %v1097
    %v1728 = vadd.f32 %v1727, %v1099
    %v1729 = vadd.f32 %v1728, %v1101
    %v1730 = vadd.f32 %v1729, %v1103
    %v1731 = vadd.f32 %v1730, %v1105
    %v1732 = vrot.slane %v1731, 4
    %v1733 = vadd.f32 %v1731, %v1732
    %v1734 = vrot.slane %v1733, 2
    %v1735 = vadd.f32 %v1733, %v1734
    %v1736 = vrot.slane %v1735, 1
    %v1737 = vadd.f32 %v1735, %v1736
    %v1738 = vadd.f32 %v1076, %v1078
    %v1739 = vadd.f32 %v1738, %v1080
    %v1740 = vadd.f32 %v1739, %v1082
    %v1741 = vadd.f32 %v1740, %v1084
    %v1742 = vadd.f32 %v1741, %v1086
    %v1743 = vadd.f32 %v1742, %v1088
    %v1744 = vadd.f32 %v1743, %v1090
    %v1745 = vadd.f32 %v1744, %v1092
    %v1746 = vadd.f32 %v1745, %v1094
    %v1747 = vadd.f32 %v1746, %v1096
    %v1748 = vadd.f32 %v1747, %v1098
    %v1749 = vadd.f32 %v1748, %v1100
    %v1750 = vadd.f32 %v1749, %v1102
    %v1751 = vadd.f32 %v1750, %v1104
    %v1752 = vadd.f32 %v1751, %v1106
    %v1753 = vrot.slane %v1752, 4
    %v1754 = vadd.f32 %v1752, %v1753
    %v1755 = vrot.slane %v1754, 2
    %v1756 = vadd.f32 %v1754, %v1755
    %v1757 = vrot.slane %v1756, 1
    %v1758 = vadd.f32 %v1756, %v1757
    %v1759 = vadd.f32 %v1107, %v1109
    %v1760 = vadd.f32 %v1759, %v1111
    %v1761 = vadd.f32 %v1760, %v1113
    %v1762 = vadd.f32 %v1761, %v1115
    %v1763 = vadd.f32 %v1762, %v1117
    %v1764 = vadd.f32 %v1763, %v1119
    %v1765 = vadd.f32 %v1764, %v1121
    %v1766 = vadd.f32 %v1765, %v1123
    %v1767 = vadd.f32 %v1766, %v1125
    %v1768 = vadd.f32 %v1767, %v1127
    %v1769 = vadd.f32 %v1768, %v1129
    %v1770 = vadd.f32 %v1769, %v1131
    %v1771 = vadd.f32 %v1770, %v1133
    %v1772 = vadd.f32 %v1771, %v1135
    %v1773 = vadd.f32 %v1772, %v1137
    %v1774 = vrot.slane %v1773, 4
    %v1775 = vadd.f32 %v1773, %v1774
    %v1776 = vrot.slane %v1775, 2
    %v1777 = vadd.f32 %v1775, %v1776
    %v1778 = vrot.slane %v1777, 1
    %v1779 = vadd.f32 %v1777, %v1778
    %v1780 = vadd.f32 %v1108, %v1110
    %v1781 = vadd.f32 %v1780, %v1112
    %v1782 = vadd.f32 %v1781, %v1114
    %v1783 = vadd.f32 %v1782, %v1116
    %v1784 = vadd.f32 %v1783, %v1118
    %v1785 = vadd.f32 %v1784, %v1120
    %v1786 = vadd.f32 %v1785, %v1122
    %v1787 = vadd.f32 %v1786, %v1124
    %v1788 = vadd.f32 %v1787, %v1126
    %v1789 = vadd.f32 %v1788, %v1128
    %v1790 = vadd.f32 %v1789, %v1130
    %v1791 = vadd.f32 %v1790, %v1132
    %v1792 = vadd.f32 %v1791, %v1134
    %v1793 = vadd.f32 %v1792, %v1136
    %v1794 = vadd.f32 %v1793, %v1138
    %v1795 = vrot.slane %v1794, 4
    %v1796 = vadd.f32 %v1794, %v1795
    %v1797 = vrot.slane %v1796, 2
    %v1798 = vadd.f32 %v1796, %v1797
    %v1799 = vrot.slane %v1798, 1
    %v1800 = vadd.f32 %v1798, %v1799
    %v1801 = vadd.f32 %v1139, %v1141
    %v1802 = vadd.f32 %v1801, %v1143
    %v1803 = vadd.f32 %v1802, %v1145
    %v1804 = vadd.f32 %v1803, %v1147
    %v1805 = vadd.f32 %v1804, %v1149
    %v1806 = vadd.f32 %v1805, %v1151
    %v1807 = vadd.f32 %v1806, %v1153
    %v1808 = vadd.f32 %v1807, %v1155
    %v1809 = vadd.f32 %v1808, %v1157
    %v1810 = vadd.f32 %v1809, %v1159
    %v1811 = vadd.f32 %v1810, %v1161
    %v1812 = vadd.f32 %v1811, %v1163
    %v1813 = vadd.f32 %v1812, %v1165
    %v1814 = vadd.f32 %v1813, %v1167
    %v1815 = vadd.f32 %v1814, %v1169
    %v1816 = vrot.slane %v1815, 4
    %v1817 = vadd.f32 %v1815, %v1816
    %v1818 = vrot.slane %v1817, 2
    %v1819 = vadd.f32 %v1817, %v1818
    %v1820 = vrot.slane %v1819, 1
    %v1821 = vadd.f32 %v1819, %v1820
    %v1822 = vadd.f32 %v1140, %v1142
    %v1823 = vadd.f32 %v1822, %v1144
    %v1824 = vadd.f32 %v1823, %v1146
    %v1825 = vadd.f32 %v1824, %v1148
    %v1826 = vadd.f32 %v1825, %v1150
    %v1827 = vadd.f32 %v1826, %v1152
    %v1828 = vadd.f32 %v1827, %v1154
    %v1829 = vadd.f32 %v1828, %v1156
    %v1830 = vadd.f32 %v1829, %v1158
    %v1831 = vadd.f32 %v1830, %v1160
    %v1832 = vadd.f32 %v1831, %v1162
    %v1833 = vadd.f32 %v1832, %v1164
    %v1834 = vadd.f32 %v1833, %v1166
    %v1835 = vadd.f32 %v1834, %v1168
    %v1836 = vadd.f32 %v1835, %v1170
    %v1837 = vrot.slane %v1836, 4
    %v1838 = vadd.f32 %v1836, %v1837
    %v1839 = vrot.slane %v1838, 2
    %v1840 = vadd.f32 %v1838, %v1839
    %v1841 = vrot.slane %v1840, 1
    %v1842 = vadd.f32 %v1840, %v1841
    %v1843 = vld [vmem:[#allocation2] sm:$0xff]
    %v1844 = vld [vmem:[#allocation2 + $0x8] sm:$0xff]
    %vm1877 = vcmask 1041409
    %v1878 = vsel %vm1877, %v1233, %v1191
    %vm1879 = vcmask 1042434
    %v1880 = vsel %vm1879, %v1275, %v1878
    %vm1881 = vcmask 1043459
    %v1882 = vsel %vm1881, %v1317, %v1880
    %vm1883 = vcmask 1044484
    %v1884 = vsel %vm1883, %v1359, %v1882
    %vm1885 = vcmask 1045509
    %v1886 = vsel %vm1885, %v1401, %v1884
    %vm1887 = vcmask 1046534
    %v1888 = vsel %vm1887, %v1443, %v1886
    %vm1889 = vcmask 1047559
    %v1890 = vsel %vm1889, %v1485, %v1888
    %v1891 = vsel %vm1877, %v1254, %v1212
    %v1892 = vsel %vm1879, %v1296, %v1891
    %v1893 = vsel %vm1881, %v1338, %v1892
    %v1894 = vsel %vm1883, %v1380, %v1893
    %v1895 = vsel %vm1885, %v1422, %v1894
    %v1896 = vsel %vm1887, %v1464, %v1895
    %v1897 = vsel %vm1889, %v1506, %v1896
    %v1898 = vsel %vm1877, %v1569, %v1527
    %v1899 = vsel %vm1879, %v1611, %v1898
    %v1900 = vsel %vm1881, %v1653, %v1899
    %v1901 = vsel %vm1883, %v1695, %v1900
    %v1902 = vsel %vm1885, %v1737, %v1901
    %v1903 = vsel %vm1887, %v1779, %v1902
    %v1904 = vsel %vm1889, %v1821, %v1903
    %v1905 = vsel %vm1877, %v1590, %v1548
    %v1906 = vsel %vm1879, %v1632, %v1905
    %v1907 = vsel %vm1881, %v1674, %v1906
    %v1908 = vsel %vm1883, %v1716, %v1907
    %v1909 = vsel %vm1885, %v1758, %v1908
    %v1910 = vsel %vm1887, %v1800, %v1909
    %v1911 = vsel %vm1889, %v1842, %v1910
    %v1916 = vmax.f32 %v1890, %v1897
    %1917 = vmax.xlane.f32.xlu0 %v1916
    %v1918 = vpop.xlane.xlu0 %1917
    %v1919 = vmax.f32 %v1904, %v1911
    %1920 = vmax.xlane.f32.xlu0 %v1919
    %v1921 = vpop.xlane.xlu0 %1920
    %v1922 = vmax.f32 %v1843, %v1918
    %v1923 = vmax.f32 %v1844, %v1921
    %v1924 = vsub.f32 %v1843, %v1922
    %v1925 = vsub.f32 %v1844, %v1923
    %v1926 = vmul.f32 %v1924, 1.442695
    %v1927 = vpow.pop %v1926
    %v1928 = vmul.f32 %v1925, 1.442695
    %v1929 = vpow.pop %v1928
    %1931 = vset.pattern.permute.xlu0 0
    %1932 = vperm.xlu0 %1931, %v1922
    %v1933 = vpop.permute.xlu0 %1932
    %1935 = vset.pattern.permute.xlu0 0
    %1936 = vperm.xlu0 %1935, %v1923
    %v1937 = vpop.permute.xlu0 %1936
    %v1938 = vrot.slane %v1933, 1
    %v1939 = vrot.slane %v1933, 2
    %v1940 = vrot.slane %v1933, 3
    %v1941 = vrot.slane %v1933, 4
    %v1942 = vrot.slane %v1933, 5
    %v1943 = vrot.slane %v1933, 6
    %v1944 = vrot.slane %v1933, 7
    %v1945 = vrot.slane %v1937, 1
    %v1946 = vrot.slane %v1937, 2
    %v1947 = vrot.slane %v1937, 3
    %v1948 = vrot.slane %v1937, 4
    %v1949 = vrot.slane %v1937, 5
    %v1950 = vrot.slane %v1937, 6
    %v1951 = vrot.slane %v1937, 7
    %v1968 = vsub.f32 %v1191, %v1933
    %v1969 = vsub.f32 %v1212, %v1933
    %v1970 = vsub.f32 %v1233, %v1938
    %v1971 = vsub.f32 %v1254, %v1938
    %v1972 = vsub.f32 %v1275, %v1939
    %v1973 = vsub.f32 %v1296, %v1939
    %v1974 = vsub.f32 %v1317, %v1940
    %v1975 = vsub.f32 %v1338, %v1940
    %v1976 = vsub.f32 %v1359, %v1941
    %v1977 = vsub.f32 %v1380, %v1941
    %v1978 = vsub.f32 %v1401, %v1942
    %v1979 = vsub.f32 %v1422, %v1942
    %v1980 = vsub.f32 %v1443, %v1943
    %v1981 = vsub.f32 %v1464, %v1943
    %v1982 = vsub.f32 %v1485, %v1944
    %v1983 = vsub.f32 %v1506, %v1944
    %v1984 = vsub.f32 %v1527, %v1937
    %v1985 = vsub.f32 %v1548, %v1937
    %v1986 = vsub.f32 %v1569, %v1945
    %v1987 = vsub.f32 %v1590, %v1945
    %v1988 = vsub.f32 %v1611, %v1946
    %v1989 = vsub.f32 %v1632, %v1946
    %v1990 = vsub.f32 %v1653, %v1947
    %v1991 = vsub.f32 %v1674, %v1947
    %v1992 = vsub.f32 %v1695, %v1948
    %v1993 = vsub.f32 %v1716, %v1948
    %v1994 = vsub.f32 %v1737, %v1949
    %v1995 = vsub.f32 %v1758, %v1949
    %v1996 = vsub.f32 %v1779, %v1950
    %v1997 = vsub.f32 %v1800, %v1950
    %v1998 = vsub.f32 %v1821, %v1951
    %v1999 = vsub.f32 %v1842, %v1951
    %v2000 = vmul.f32 %v1968, 1.442695
    %v2001 = vpow.pop %v2000
    %v2002 = vmul.f32 %v1969, 1.442695
    %v2003 = vpow.pop %v2002
    %v2004 = vmul.f32 %v1970, 1.442695
    %v2005 = vpow.pop %v2004
    %v2006 = vmul.f32 %v1971, 1.442695
    %v2007 = vpow.pop %v2006
    %v2008 = vmul.f32 %v1972, 1.442695
    %v2009 = vpow.pop %v2008
    %v2010 = vmul.f32 %v1973, 1.442695
    %v2011 = vpow.pop %v2010
    %v2012 = vmul.f32 %v1974, 1.442695
    %v2013 = vpow.pop %v2012
    %v2014 = vmul.f32 %v1975, 1.442695
    %v2015 = vpow.pop %v2014
    %v2016 = vmul.f32 %v1976, 1.442695
    %v2017 = vpow.pop %v2016
    %v2018 = vmul.f32 %v1977, 1.442695
    %v2019 = vpow.pop %v2018
    %v2020 = vmul.f32 %v1978, 1.442695
    %v2021 = vpow.pop %v2020
    %v2022 = vmul.f32 %v1979, 1.442695
    %v2023 = vpow.pop %v2022
    %v2024 = vmul.f32 %v1980, 1.442695
    %v2025 = vpow.pop %v2024
    %v2026 = vmul.f32 %v1981, 1.442695
    %v2027 = vpow.pop %v2026
    %v2028 = vmul.f32 %v1982, 1.442695
    %v2029 = vpow.pop %v2028
    %v2030 = vmul.f32 %v1983, 1.442695
    %v2031 = vpow.pop %v2030
    %v2032 = vmul.f32 %v1984, 1.442695
    %v2033 = vpow.pop %v2032
    %v2034 = vmul.f32 %v1985, 1.442695
    %v2035 = vpow.pop %v2034
    %v2036 = vmul.f32 %v1986, 1.442695
    %v2037 = vpow.pop %v2036
    %v2038 = vmul.f32 %v1987, 1.442695
    %v2039 = vpow.pop %v2038
    %v2040 = vmul.f32 %v1988, 1.442695
    %v2041 = vpow.pop %v2040
    %v2042 = vmul.f32 %v1989, 1.442695
    %v2043 = vpow.pop %v2042
    %v2044 = vmul.f32 %v1990, 1.442695
    %v2045 = vpow.pop %v2044
    %v2046 = vmul.f32 %v1991, 1.442695
    %v2047 = vpow.pop %v2046
    %v2048 = vmul.f32 %v1992, 1.442695
    %v2049 = vpow.pop %v2048
    %v2050 = vmul.f32 %v1993, 1.442695
    %v2051 = vpow.pop %v2050
    %v2052 = vmul.f32 %v1994, 1.442695
    %v2053 = vpow.pop %v2052
    %v2054 = vmul.f32 %v1995, 1.442695
    %v2055 = vpow.pop %v2054
    %v2056 = vmul.f32 %v1996, 1.442695
    %v2057 = vpow.pop %v2056
    %v2058 = vmul.f32 %v1997, 1.442695
    %v2059 = vpow.pop %v2058
    %v2060 = vmul.f32 %v1998, 1.442695
    %v2061 = vpow.pop %v2060
    %v2062 = vmul.f32 %v1999, 1.442695
    %v2063 = vpow.pop %v2062
    %v2064 = vld [vmem:[#allocation3] sm:$0xff]
    %v2065 = vld [vmem:[#allocation3 + $0x8] sm:$0xff]
    %v2066 = vmul.f32 %v1927, %v2064
    %v2067 = vmul.f32 %v1929, %v2065
    %v2100 = vrot.slane %v2005, 7
    %v2101 = vsel %vm1877, %v2100, %v2001
    %v2102 = vrot.slane %v2009, 6
    %v2103 = vsel %vm1879, %v2102, %v2101
    %v2104 = vrot.slane %v2013, 5
    %v2105 = vsel %vm1881, %v2104, %v2103
    %v2106 = vrot.slane %v2017, 4
    %v2107 = vsel %vm1883, %v2106, %v2105
    %v2108 = vrot.slane %v2021, 3
    %v2109 = vsel %vm1885, %v2108, %v2107
    %v2110 = vrot.slane %v2025, 2
    %v2111 = vsel %vm1887, %v2110, %v2109
    %v2112 = vrot.slane %v2029, 1
    %v2113 = vsel %vm1889, %v2112, %v2111
    %v2114 = vrot.slane %v2007, 7
    %v2115 = vsel %vm1877, %v2114, %v2003
    %v2116 = vrot.slane %v2011, 6
    %v2117 = vsel %vm1879, %v2116, %v2115
    %v2118 = vrot.slane %v2015, 5
    %v2119 = vsel %vm1881, %v2118, %v2117
    %v2120 = vrot.slane %v2019, 4
    %v2121 = vsel %vm1883, %v2120, %v2119
    %v2122 = vrot.slane %v2023, 3
    %v2123 = vsel %vm1885, %v2122, %v2121
    %v2124 = vrot.slane %v2027, 2
    %v2125 = vsel %vm1887, %v2124, %v2123
    %v2126 = vrot.slane %v2031, 1
    %v2127 = vsel %vm1889, %v2126, %v2125
    %v2128 = vrot.slane %v2037, 7
    %v2129 = vsel %vm1877, %v2128, %v2033
    %v2130 = vrot.slane %v2041, 6
    %v2131 = vsel %vm1879, %v2130, %v2129
    %v2132 = vrot.slane %v2045, 5
    %v2133 = vsel %vm1881, %v2132, %v2131
    %v2134 = vrot.slane %v2049, 4
    %v2135 = vsel %vm1883, %v2134, %v2133
    %v2136 = vrot.slane %v2053, 3
    %v2137 = vsel %vm1885, %v2136, %v2135
    %v2138 = vrot.slane %v2057, 2
    %v2139 = vsel %vm1887, %v2138, %v2137
    %v2140 = vrot.slane %v2061, 1
    %v2141 = vsel %vm1889, %v2140, %v2139
    %v2142 = vrot.slane %v2039, 7
    %v2143 = vsel %vm1877, %v2142, %v2035
    %v2144 = vrot.slane %v2043, 6
    %v2145 = vsel %vm1879, %v2144, %v2143
    %v2146 = vrot.slane %v2047, 5
    %v2147 = vsel %vm1881, %v2146, %v2145
    %v2148 = vrot.slane %v2051, 4
    %v2149 = vsel %vm1883, %v2148, %v2147
    %v2150 = vrot.slane %v2055, 3
    %v2151 = vsel %vm1885, %v2150, %v2149
    %v2152 = vrot.slane %v2059, 2
    %v2153 = vsel %vm1887, %v2152, %v2151
    %v2154 = vrot.slane %v2063, 1
    %v2155 = vsel %vm1889, %v2154, %v2153
    %v2160 = vadd.f32 %v2113, %v2127
    %2161 = vadd.xlane.f32.xlu0 %v2160
    %v2162 = vpop.xlane.xlu0 %2161
    %v2163 = vadd.f32 %v2141, %v2155
    %2164 = vadd.xlane.f32.xlu0 %v2163
    %v2165 = vpop.xlane.xlu0 %2164
    %v2166 = vadd.f32 %v2066, %v2162
    %v2167 = vadd.f32 %v2067, %v2165
    %vm2168 = vcmask 7168
    %2169 = vst.msk [vmem:[#allocation3] sm:$0xff] %vm2168, %v2166
    %2170 = vst.msk [vmem:[#allocation3 + $0x8] sm:$0xff] %vm2168, %v2167
    %v2171 = vld [vmem:[#allocation4] sm:$0xff]
    %v2172 = vld [vmem:[#allocation4 + $0x8] sm:$0xff]
    %2174 = vset.pattern.permute.xlu0 0
    %2175 = vperm.xlu0 %2174, %v1927
    %v2176 = vpop.permute.xlu0 %2175
    %2179 = vset.pattern.permute.xlu0 0
    %2180 = vperm.xlu0 %2179, %v1929
    %v2181 = vpop.permute.xlu0 %2180
    %v2183 = vmul.f32 %v2176, %v2171
    %v2184 = vmul.f32 %v2181, %v2172
    %v2185 = vld [vmem:[#allocation5] sm:$0xff]
    %v2186 = vld [vmem:[#allocation5 + $0x8] sm:$0xff]
    %v2187 = vld [vmem:[#allocation5 + $0x10] sm:$0xff]
    %v2188 = vld [vmem:[#allocation5 + $0x18] sm:$0xff]
    %v2189 = vld [vmem:[#allocation5 + $0x20] sm:$0xff]
    %v2190 = vld [vmem:[#allocation5 + $0x28] sm:$0xff]
    %v2191 = vld [vmem:[#allocation5 + $0x30] sm:$0xff]
    %v2192 = vld [vmem:[#allocation5 + $0x38] sm:$0xff]
    %v2193 = vld [vmem:[#allocation5 + $0x40] sm:$0xff]
    %v2194 = vld [vmem:[#allocation5 + $0x48] sm:$0xff]
    %v2195 = vld [vmem:[#allocation5 + $0x50] sm:$0xff]
    %v2196 = vld [vmem:[#allocation5 + $0x58] sm:$0xff]
    %v2197 = vld [vmem:[#allocation5 + $0x60] sm:$0xff]
    %v2198 = vld [vmem:[#allocation5 + $0x68] sm:$0xff]
    %v2199 = vld [vmem:[#allocation5 + $0x70] sm:$0xff]
    %v2200 = vld [vmem:[#allocation5 + $0x78] sm:$0xff]
    %v2201 = vld [vmem:[#allocation5 + $0x80] sm:$0xff]
    %v2202 = vld [vmem:[#allocation5 + $0x88] sm:$0xff]
    %v2203 = vld [vmem:[#allocation5 + $0x90] sm:$0xff]
    %v2204 = vld [vmem:[#allocation5 + $0x98] sm:$0xff]
    %v2205 = vld [vmem:[#allocation5 + $0xa0] sm:$0xff]
    %v2206 = vld [vmem:[#allocation5 + $0xa8] sm:$0xff]
    %v2207 = vld [vmem:[#allocation5 + $0xb0] sm:$0xff]
    %v2208 = vld [vmem:[#allocation5 + $0xb8] sm:$0xff]
    %v2209 = vld [vmem:[#allocation5 + $0xc0] sm:$0xff]
    %v2210 = vld [vmem:[#allocation5 + $0xc8] sm:$0xff]
    %v2211 = vld [vmem:[#allocation5 + $0xd0] sm:$0xff]
    %v2212 = vld [vmem:[#allocation5 + $0xd8] sm:$0xff]
    %v2213 = vld [vmem:[#allocation5 + $0xe0] sm:$0xff]
    %v2214 = vld [vmem:[#allocation5 + $0xe8] sm:$0xff]
    %v2215 = vld [vmem:[#allocation5 + $0xf0] sm:$0xff]
    %v2216 = vld [vmem:[#allocation5 + $0xf8] sm:$0xff]
    %v2217 = vld [vmem:[#allocation5 + $0x100] sm:$0xff]
    %v2218 = vld [vmem:[#allocation5 + $0x108] sm:$0xff]
    %v2219 = vld [vmem:[#allocation5 + $0x110] sm:$0xff]
    %v2220 = vld [vmem:[#allocation5 + $0x118] sm:$0xff]
    %v2221 = vld [vmem:[#allocation5 + $0x120] sm:$0xff]
    %v2222 = vld [vmem:[#allocation5 + $0x128] sm:$0xff]
    %v2223 = vld [vmem:[#allocation5 + $0x130] sm:$0xff]
    %v2224 = vld [vmem:[#allocation5 + $0x138] sm:$0xff]
    %v2225 = vld [vmem:[#allocation5 + $0x140] sm:$0xff]
    %v2226 = vld [vmem:[#allocation5 + $0x148] sm:$0xff]
    %v2227 = vld [vmem:[#allocation5 + $0x150] sm:$0xff]
    %v2228 = vld [vmem:[#allocation5 + $0x158] sm:$0xff]
    %v2229 = vld [vmem:[#allocation5 + $0x160] sm:$0xff]
    %v2230 = vld [vmem:[#allocation5 + $0x168] sm:$0xff]
    %v2231 = vld [vmem:[#allocation5 + $0x170] sm:$0xff]
    %v2232 = vld [vmem:[#allocation5 + $0x178] sm:$0xff]
    %v2233 = vld [vmem:[#allocation5 + $0x180] sm:$0xff]
    %v2234 = vld [vmem:[#allocation5 + $0x188] sm:$0xff]
    %v2235 = vld [vmem:[#allocation5 + $0x190] sm:$0xff]
    %v2236 = vld [vmem:[#allocation5 + $0x198] sm:$0xff]
    %v2237 = vld [vmem:[#allocation5 + $0x1a0] sm:$0xff]
    %v2238 = vld [vmem:[#allocation5 + $0x1a8] sm:$0xff]
    %v2239 = vld [vmem:[#allocation5 + $0x1b0] sm:$0xff]
    %v2240 = vld [vmem:[#allocation5 + $0x1b8] sm:$0xff]
    %v2241 = vld [vmem:[#allocation5 + $0x1c0] sm:$0xff]
    %v2242 = vld [vmem:[#allocation5 + $0x1c8] sm:$0xff]
    %v2243 = vld [vmem:[#allocation5 + $0x1d0] sm:$0xff]
    %v2244 = vld [vmem:[#allocation5 + $0x1d8] sm:$0xff]
    %v2245 = vld [vmem:[#allocation5 + $0x1e0] sm:$0xff]
    %v2246 = vld [vmem:[#allocation5 + $0x1e8] sm:$0xff]
    %v2247 = vld [vmem:[#allocation5 + $0x1f0] sm:$0xff]
    %v2248 = vld [vmem:[#allocation5 + $0x1f8] sm:$0xff]
    %v2249 = vld [vmem:[#allocation5 + $0x200] sm:$0xff]
    %v2250 = vld [vmem:[#allocation5 + $0x208] sm:$0xff]
    %v2251 = vld [vmem:[#allocation5 + $0x210] sm:$0xff]
    %v2252 = vld [vmem:[#allocation5 + $0x218] sm:$0xff]
    %v2253 = vld [vmem:[#allocation5 + $0x220] sm:$0xff]
    %v2254 = vld [vmem:[#allocation5 + $0x228] sm:$0xff]
    %v2255 = vld [vmem:[#allocation5 + $0x230] sm:$0xff]
    %v2256 = vld [vmem:[#allocation5 + $0x238] sm:$0xff]
    %v2257 = vld [vmem:[#allocation5 + $0x240] sm:$0xff]
    %v2258 = vld [vmem:[#allocation5 + $0x248] sm:$0xff]
    %v2259 = vld [vmem:[#allocation5 + $0x250] sm:$0xff]
    %v2260 = vld [vmem:[#allocation5 + $0x258] sm:$0xff]
    %v2261 = vld [vmem:[#allocation5 + $0x260] sm:$0xff]
    %v2262 = vld [vmem:[#allocation5 + $0x268] sm:$0xff]
    %v2263 = vld [vmem:[#allocation5 + $0x270] sm:$0xff]
    %v2264 = vld [vmem:[#allocation5 + $0x278] sm:$0xff]
    %v2265 = vld [vmem:[#allocation5 + $0x280] sm:$0xff]
    %v2266 = vld [vmem:[#allocation5 + $0x288] sm:$0xff]
    %v2267 = vld [vmem:[#allocation5 + $0x290] sm:$0xff]
    %v2268 = vld [vmem:[#allocation5 + $0x298] sm:$0xff]
    %v2269 = vld [vmem:[#allocation5 + $0x2a0] sm:$0xff]
    %v2270 = vld [vmem:[#allocation5 + $0x2a8] sm:$0xff]
    %v2271 = vld [vmem:[#allocation5 + $0x2b0] sm:$0xff]
    %v2272 = vld [vmem:[#allocation5 + $0x2b8] sm:$0xff]
    %v2273 = vld [vmem:[#allocation5 + $0x2c0] sm:$0xff]
    %v2274 = vld [vmem:[#allocation5 + $0x2c8] sm:$0xff]
    %v2275 = vld [vmem:[#allocation5 + $0x2d0] sm:$0xff]
    %v2276 = vld [vmem:[#allocation5 + $0x2d8] sm:$0xff]
    %v2277 = vld [vmem:[#allocation5 + $0x2e0] sm:$0xff]
    %v2278 = vld [vmem:[#allocation5 + $0x2e8] sm:$0xff]
    %v2279 = vld [vmem:[#allocation5 + $0x2f0] sm:$0xff]
    %v2280 = vld [vmem:[#allocation5 + $0x2f8] sm:$0xff]
    %v2281 = vld [vmem:[#allocation5 + $0x300] sm:$0xff]
    %v2282 = vld [vmem:[#allocation5 + $0x308] sm:$0xff]
    %v2283 = vld [vmem:[#allocation5 + $0x310] sm:$0xff]
    %v2284 = vld [vmem:[#allocation5 + $0x318] sm:$0xff]
    %v2285 = vld [vmem:[#allocation5 + $0x320] sm:$0xff]
    %v2286 = vld [vmem:[#allocation5 + $0x328] sm:$0xff]
    %v2287 = vld [vmem:[#allocation5 + $0x330] sm:$0xff]
    %v2288 = vld [vmem:[#allocation5 + $0x338] sm:$0xff]
    %v2289 = vld [vmem:[#allocation5 + $0x340] sm:$0xff]
    %v2290 = vld [vmem:[#allocation5 + $0x348] sm:$0xff]
    %v2291 = vld [vmem:[#allocation5 + $0x350] sm:$0xff]
    %v2292 = vld [vmem:[#allocation5 + $0x358] sm:$0xff]
    %v2293 = vld [vmem:[#allocation5 + $0x360] sm:$0xff]
    %v2294 = vld [vmem:[#allocation5 + $0x368] sm:$0xff]
    %v2295 = vld [vmem:[#allocation5 + $0x370] sm:$0xff]
    %v2296 = vld [vmem:[#allocation5 + $0x378] sm:$0xff]
    %v2297 = vld [vmem:[#allocation5 + $0x380] sm:$0xff]
    %v2298 = vld [vmem:[#allocation5 + $0x388] sm:$0xff]
    %v2299 = vld [vmem:[#allocation5 + $0x390] sm:$0xff]
    %v2300 = vld [vmem:[#allocation5 + $0x398] sm:$0xff]
    %v2301 = vld [vmem:[#allocation5 + $0x3a0] sm:$0xff]
    %v2302 = vld [vmem:[#allocation5 + $0x3a8] sm:$0xff]
    %v2303 = vld [vmem:[#allocation5 + $0x3b0] sm:$0xff]
    %v2304 = vld [vmem:[#allocation5 + $0x3b8] sm:$0xff]
    %v2305 = vld [vmem:[#allocation5 + $0x3c0] sm:$0xff]
    %v2306 = vld [vmem:[#allocation5 + $0x3c8] sm:$0xff]
    %v2307 = vld [vmem:[#allocation5 + $0x3d0] sm:$0xff]
    %v2308 = vld [vmem:[#allocation5 + $0x3d8] sm:$0xff]
    %v2309 = vld [vmem:[#allocation5 + $0x3e0] sm:$0xff]
    %v2310 = vld [vmem:[#allocation5 + $0x3e8] sm:$0xff]
    %v2311 = vld [vmem:[#allocation5 + $0x3f0] sm:$0xff]
    %v2312 = vld [vmem:[#allocation5 + $0x3f8] sm:$0xff]
    %v2313 = vld [vmem:[#allocation5 + $0x400] sm:$0xff]
    %v2314 = vld [vmem:[#allocation5 + $0x408] sm:$0xff]
    %v2315 = vld [vmem:[#allocation5 + $0x410] sm:$0xff]
    %v2316 = vld [vmem:[#allocation5 + $0x418] sm:$0xff]
    %v2317 = vld [vmem:[#allocation5 + $0x420] sm:$0xff]
    %v2318 = vld [vmem:[#allocation5 + $0x428] sm:$0xff]
    %v2319 = vld [vmem:[#allocation5 + $0x430] sm:$0xff]
    %v2320 = vld [vmem:[#allocation5 + $0x438] sm:$0xff]
    %v2321 = vld [vmem:[#allocation5 + $0x440] sm:$0xff]
    %v2322 = vld [vmem:[#allocation5 + $0x448] sm:$0xff]
    %v2323 = vld [vmem:[#allocation5 + $0x450] sm:$0xff]
    %v2324 = vld [vmem:[#allocation5 + $0x458] sm:$0xff]
    %v2325 = vld [vmem:[#allocation5 + $0x460] sm:$0xff]
    %v2326 = vld [vmem:[#allocation5 + $0x468] sm:$0xff]
    %v2327 = vld [vmem:[#allocation5 + $0x470] sm:$0xff]
    %v2328 = vld [vmem:[#allocation5 + $0x478] sm:$0xff]
    %v2329 = vld [vmem:[#allocation5 + $0x480] sm:$0xff]
    %v2330 = vld [vmem:[#allocation5 + $0x488] sm:$0xff]
    %v2331 = vld [vmem:[#allocation5 + $0x490] sm:$0xff]
    %v2332 = vld [vmem:[#allocation5 + $0x498] sm:$0xff]
    %v2333 = vld [vmem:[#allocation5 + $0x4a0] sm:$0xff]
    %v2334 = vld [vmem:[#allocation5 + $0x4a8] sm:$0xff]
    %v2335 = vld [vmem:[#allocation5 + $0x4b0] sm:$0xff]
    %v2336 = vld [vmem:[#allocation5 + $0x4b8] sm:$0xff]
    %v2337 = vld [vmem:[#allocation5 + $0x4c0] sm:$0xff]
    %v2338 = vld [vmem:[#allocation5 + $0x4c8] sm:$0xff]
    %v2339 = vld [vmem:[#allocation5 + $0x4d0] sm:$0xff]
    %v2340 = vld [vmem:[#allocation5 + $0x4d8] sm:$0xff]
    %v2341 = vld [vmem:[#allocation5 + $0x4e0] sm:$0xff]
    %v2342 = vld [vmem:[#allocation5 + $0x4e8] sm:$0xff]
    %v2343 = vld [vmem:[#allocation5 + $0x4f0] sm:$0xff]
    %v2344 = vld [vmem:[#allocation5 + $0x4f8] sm:$0xff]
    %v2345 = vld [vmem:[#allocation5 + $0x500] sm:$0xff]
    %v2346 = vld [vmem:[#allocation5 + $0x508] sm:$0xff]
    %v2347 = vld [vmem:[#allocation5 + $0x510] sm:$0xff]
    %v2348 = vld [vmem:[#allocation5 + $0x518] sm:$0xff]
    %v2349 = vld [vmem:[#allocation5 + $0x520] sm:$0xff]
    %v2350 = vld [vmem:[#allocation5 + $0x528] sm:$0xff]
    %v2351 = vld [vmem:[#allocation5 + $0x530] sm:$0xff]
    %v2352 = vld [vmem:[#allocation5 + $0x538] sm:$0xff]
    %v2353 = vld [vmem:[#allocation5 + $0x540] sm:$0xff]
    %v2354 = vld [vmem:[#allocation5 + $0x548] sm:$0xff]
    %v2355 = vld [vmem:[#allocation5 + $0x550] sm:$0xff]
    %v2356 = vld [vmem:[#allocation5 + $0x558] sm:$0xff]
    %v2357 = vld [vmem:[#allocation5 + $0x560] sm:$0xff]
    %v2358 = vld [vmem:[#allocation5 + $0x568] sm:$0xff]
    %v2359 = vld [vmem:[#allocation5 + $0x570] sm:$0xff]
    %v2360 = vld [vmem:[#allocation5 + $0x578] sm:$0xff]
    %v2361 = vld [vmem:[#allocation5 + $0x580] sm:$0xff]
    %v2362 = vld [vmem:[#allocation5 + $0x588] sm:$0xff]
    %v2363 = vld [vmem:[#allocation5 + $0x590] sm:$0xff]
    %v2364 = vld [vmem:[#allocation5 + $0x598] sm:$0xff]
    %v2365 = vld [vmem:[#allocation5 + $0x5a0] sm:$0xff]
    %v2366 = vld [vmem:[#allocation5 + $0x5a8] sm:$0xff]
    %v2367 = vld [vmem:[#allocation5 + $0x5b0] sm:$0xff]
    %v2368 = vld [vmem:[#allocation5 + $0x5b8] sm:$0xff]
    %v2369 = vld [vmem:[#allocation5 + $0x5c0] sm:$0xff]
    %v2370 = vld [vmem:[#allocation5 + $0x5c8] sm:$0xff]
    %v2371 = vld [vmem:[#allocation5 + $0x5d0] sm:$0xff]
    %v2372 = vld [vmem:[#allocation5 + $0x5d8] sm:$0xff]
    %v2373 = vld [vmem:[#allocation5 + $0x5e0] sm:$0xff]
    %v2374 = vld [vmem:[#allocation5 + $0x5e8] sm:$0xff]
    %v2375 = vld [vmem:[#allocation5 + $0x5f0] sm:$0xff]
    %v2376 = vld [vmem:[#allocation5 + $0x5f8] sm:$0xff]
    %v2377 = vld [vmem:[#allocation5 + $0x600] sm:$0xff]
    %v2378 = vld [vmem:[#allocation5 + $0x608] sm:$0xff]
    %v2379 = vld [vmem:[#allocation5 + $0x610] sm:$0xff]
    %v2380 = vld [vmem:[#allocation5 + $0x618] sm:$0xff]
    %v2381 = vld [vmem:[#allocation5 + $0x620] sm:$0xff]
    %v2382 = vld [vmem:[#allocation5 + $0x628] sm:$0xff]
    %v2383 = vld [vmem:[#allocation5 + $0x630] sm:$0xff]
    %v2384 = vld [vmem:[#allocation5 + $0x638] sm:$0xff]
    %v2385 = vld [vmem:[#allocation5 + $0x640] sm:$0xff]
    %v2386 = vld [vmem:[#allocation5 + $0x648] sm:$0xff]
    %v2387 = vld [vmem:[#allocation5 + $0x650] sm:$0xff]
    %v2388 = vld [vmem:[#allocation5 + $0x658] sm:$0xff]
    %v2389 = vld [vmem:[#allocation5 + $0x660] sm:$0xff]
    %v2390 = vld [vmem:[#allocation5 + $0x668] sm:$0xff]
    %v2391 = vld [vmem:[#allocation5 + $0x670] sm:$0xff]
    %v2392 = vld [vmem:[#allocation5 + $0x678] sm:$0xff]
    %v2393 = vld [vmem:[#allocation5 + $0x680] sm:$0xff]
    %v2394 = vld [vmem:[#allocation5 + $0x688] sm:$0xff]
    %v2395 = vld [vmem:[#allocation5 + $0x690] sm:$0xff]
    %v2396 = vld [vmem:[#allocation5 + $0x698] sm:$0xff]
    %v2397 = vld [vmem:[#allocation5 + $0x6a0] sm:$0xff]
    %v2398 = vld [vmem:[#allocation5 + $0x6a8] sm:$0xff]
    %v2399 = vld [vmem:[#allocation5 + $0x6b0] sm:$0xff]
    %v2400 = vld [vmem:[#allocation5 + $0x6b8] sm:$0xff]
    %v2401 = vld [vmem:[#allocation5 + $0x6c0] sm:$0xff]
    %v2402 = vld [vmem:[#allocation5 + $0x6c8] sm:$0xff]
    %v2403 = vld [vmem:[#allocation5 + $0x6d0] sm:$0xff]
    %v2404 = vld [vmem:[#allocation5 + $0x6d8] sm:$0xff]
    %v2405 = vld [vmem:[#allocation5 + $0x6e0] sm:$0xff]
    %v2406 = vld [vmem:[#allocation5 + $0x6e8] sm:$0xff]
    %v2407 = vld [vmem:[#allocation5 + $0x6f0] sm:$0xff]
    %v2408 = vld [vmem:[#allocation5 + $0x6f8] sm:$0xff]
    %v2409 = vld [vmem:[#allocation5 + $0x700] sm:$0xff]
    %v2410 = vld [vmem:[#allocation5 + $0x708] sm:$0xff]
    %v2411 = vld [vmem:[#allocation5 + $0x710] sm:$0xff]
    %v2412 = vld [vmem:[#allocation5 + $0x718] sm:$0xff]
    %v2413 = vld [vmem:[#allocation5 + $0x720] sm:$0xff]
    %v2414 = vld [vmem:[#allocation5 + $0x728] sm:$0xff]
    %v2415 = vld [vmem:[#allocation5 + $0x730] sm:$0xff]
    %v2416 = vld [vmem:[#allocation5 + $0x738] sm:$0xff]
    %v2417 = vld [vmem:[#allocation5 + $0x740] sm:$0xff]
    %v2418 = vld [vmem:[#allocation5 + $0x748] sm:$0xff]
    %v2419 = vld [vmem:[#allocation5 + $0x750] sm:$0xff]
    %v2420 = vld [vmem:[#allocation5 + $0x758] sm:$0xff]
    %v2421 = vld [vmem:[#allocation5 + $0x760] sm:$0xff]
    %v2422 = vld [vmem:[#allocation5 + $0x768] sm:$0xff]
    %v2423 = vld [vmem:[#allocation5 + $0x770] sm:$0xff]
    %v2424 = vld [vmem:[#allocation5 + $0x778] sm:$0xff]
    %v2425 = vld [vmem:[#allocation5 + $0x780] sm:$0xff]
    %v2426 = vld [vmem:[#allocation5 + $0x788] sm:$0xff]
    %v2427 = vld [vmem:[#allocation5 + $0x790] sm:$0xff]
    %v2428 = vld [vmem:[#allocation5 + $0x798] sm:$0xff]
    %v2429 = vld [vmem:[#allocation5 + $0x7a0] sm:$0xff]
    %v2430 = vld [vmem:[#allocation5 + $0x7a8] sm:$0xff]
    %v2431 = vld [vmem:[#allocation5 + $0x7b0] sm:$0xff]
    %v2432 = vld [vmem:[#allocation5 + $0x7b8] sm:$0xff]
    %v2433 = vld [vmem:[#allocation5 + $0x7c0] sm:$0xff]
    %v2434 = vld [vmem:[#allocation5 + $0x7c8] sm:$0xff]
    %v2435 = vld [vmem:[#allocation5 + $0x7d0] sm:$0xff]
    %v2436 = vld [vmem:[#allocation5 + $0x7d8] sm:$0xff]
    %v2437 = vld [vmem:[#allocation5 + $0x7e0] sm:$0xff]
    %v2438 = vld [vmem:[#allocation5 + $0x7e8] sm:$0xff]
    %v2439 = vld [vmem:[#allocation5 + $0x7f0] sm:$0xff]
    %v2440 = vld [vmem:[#allocation5 + $0x7f8] sm:$0xff]
    %v2441 = vld [vmem:[#allocation5 + $0x800] sm:$0xff]
    %v2442 = vld [vmem:[#allocation5 + $0x808] sm:$0xff]
    %v2443 = vld [vmem:[#allocation5 + $0x810] sm:$0xff]
    %v2444 = vld [vmem:[#allocation5 + $0x818] sm:$0xff]
    %v2445 = vld [vmem:[#allocation5 + $0x820] sm:$0xff]
    %v2446 = vld [vmem:[#allocation5 + $0x828] sm:$0xff]
    %v2447 = vld [vmem:[#allocation5 + $0x830] sm:$0xff]
    %v2448 = vld [vmem:[#allocation5 + $0x838] sm:$0xff]
    %v2449 = vld [vmem:[#allocation5 + $0x840] sm:$0xff]
    %v2450 = vld [vmem:[#allocation5 + $0x848] sm:$0xff]
    %v2451 = vld [vmem:[#allocation5 + $0x850] sm:$0xff]
    %v2452 = vld [vmem:[#allocation5 + $0x858] sm:$0xff]
    %v2453 = vld [vmem:[#allocation5 + $0x860] sm:$0xff]
    %v2454 = vld [vmem:[#allocation5 + $0x868] sm:$0xff]
    %v2455 = vld [vmem:[#allocation5 + $0x870] sm:$0xff]
    %v2456 = vld [vmem:[#allocation5 + $0x878] sm:$0xff]
    %v2457 = vld [vmem:[#allocation5 + $0x880] sm:$0xff]
    %v2458 = vld [vmem:[#allocation5 + $0x888] sm:$0xff]
    %v2459 = vld [vmem:[#allocation5 + $0x890] sm:$0xff]
    %v2460 = vld [vmem:[#allocation5 + $0x898] sm:$0xff]
    %v2461 = vld [vmem:[#allocation5 + $0x8a0] sm:$0xff]
    %v2462 = vld [vmem:[#allocation5 + $0x8a8] sm:$0xff]
    %v2463 = vld [vmem:[#allocation5 + $0x8b0] sm:$0xff]
    %v2464 = vld [vmem:[#allocation5 + $0x8b8] sm:$0xff]
    %v2465 = vld [vmem:[#allocation5 + $0x8c0] sm:$0xff]
    %v2466 = vld [vmem:[#allocation5 + $0x8c8] sm:$0xff]
    %v2467 = vld [vmem:[#allocation5 + $0x8d0] sm:$0xff]
    %v2468 = vld [vmem:[#allocation5 + $0x8d8] sm:$0xff]
    %v2469 = vld [vmem:[#allocation5 + $0x8e0] sm:$0xff]
    %v2470 = vld [vmem:[#allocation5 + $0x8e8] sm:$0xff]
    %v2471 = vld [vmem:[#allocation5 + $0x8f0] sm:$0xff]
    %v2472 = vld [vmem:[#allocation5 + $0x8f8] sm:$0xff]
    %v2473 = vld [vmem:[#allocation5 + $0x900] sm:$0xff]
    %v2474 = vld [vmem:[#allocation5 + $0x908] sm:$0xff]
    %v2475 = vld [vmem:[#allocation5 + $0x910] sm:$0xff]
    %v2476 = vld [vmem:[#allocation5 + $0x918] sm:$0xff]
    %v2477 = vld [vmem:[#allocation5 + $0x920] sm:$0xff]
    %v2478 = vld [vmem:[#allocation5 + $0x928] sm:$0xff]
    %v2479 = vld [vmem:[#allocation5 + $0x930] sm:$0xff]
    %v2480 = vld [vmem:[#allocation5 + $0x938] sm:$0xff]
    %v2481 = vld [vmem:[#allocation5 + $0x940] sm:$0xff]
    %v2482 = vld [vmem:[#allocation5 + $0x948] sm:$0xff]
    %v2483 = vld [vmem:[#allocation5 + $0x950] sm:$0xff]
    %v2484 = vld [vmem:[#allocation5 + $0x958] sm:$0xff]
    %v2485 = vld [vmem:[#allocation5 + $0x960] sm:$0xff]
    %v2486 = vld [vmem:[#allocation5 + $0x968] sm:$0xff]
    %v2487 = vld [vmem:[#allocation5 + $0x970] sm:$0xff]
    %v2488 = vld [vmem:[#allocation5 + $0x978] sm:$0xff]
    %v2489 = vld [vmem:[#allocation5 + $0x980] sm:$0xff]
    %v2490 = vld [vmem:[#allocation5 + $0x988] sm:$0xff]
    %v2491 = vld [vmem:[#allocation5 + $0x990] sm:$0xff]
    %v2492 = vld [vmem:[#allocation5 + $0x998] sm:$0xff]
    %v2493 = vld [vmem:[#allocation5 + $0x9a0] sm:$0xff]
    %v2494 = vld [vmem:[#allocation5 + $0x9a8] sm:$0xff]
    %v2495 = vld [vmem:[#allocation5 + $0x9b0] sm:$0xff]
    %v2496 = vld [vmem:[#allocation5 + $0x9b8] sm:$0xff]
    %v2497 = vld [vmem:[#allocation5 + $0x9c0] sm:$0xff]
    %v2498 = vld [vmem:[#allocation5 + $0x9c8] sm:$0xff]
    %v2499 = vld [vmem:[#allocation5 + $0x9d0] sm:$0xff]
    %v2500 = vld [vmem:[#allocation5 + $0x9d8] sm:$0xff]
    %v2501 = vld [vmem:[#allocation5 + $0x9e0] sm:$0xff]
    %v2502 = vld [vmem:[#allocation5 + $0x9e8] sm:$0xff]
    %v2503 = vld [vmem:[#allocation5 + $0x9f0] sm:$0xff]
    %v2504 = vld [vmem:[#allocation5 + $0x9f8] sm:$0xff]
    %v2505 = vld [vmem:[#allocation5 + $0xa00] sm:$0xff]
    %v2506 = vld [vmem:[#allocation5 + $0xa08] sm:$0xff]
    %v2507 = vld [vmem:[#allocation5 + $0xa10] sm:$0xff]
    %v2508 = vld [vmem:[#allocation5 + $0xa18] sm:$0xff]
    %v2509 = vld [vmem:[#allocation5 + $0xa20] sm:$0xff]
    %v2510 = vld [vmem:[#allocation5 + $0xa28] sm:$0xff]
    %v2511 = vld [vmem:[#allocation5 + $0xa30] sm:$0xff]
    %v2512 = vld [vmem:[#allocation5 + $0xa38] sm:$0xff]
    %v2513 = vld [vmem:[#allocation5 + $0xa40] sm:$0xff]
    %v2514 = vld [vmem:[#allocation5 + $0xa48] sm:$0xff]
    %v2515 = vld [vmem:[#allocation5 + $0xa50] sm:$0xff]
    %v2516 = vld [vmem:[#allocation5 + $0xa58] sm:$0xff]
    %v2517 = vld [vmem:[#allocation5 + $0xa60] sm:$0xff]
    %v2518 = vld [vmem:[#allocation5 + $0xa68] sm:$0xff]
    %v2519 = vld [vmem:[#allocation5 + $0xa70] sm:$0xff]
    %v2520 = vld [vmem:[#allocation5 + $0xa78] sm:$0xff]
    %v2521 = vld [vmem:[#allocation5 + $0xa80] sm:$0xff]
    %v2522 = vld [vmem:[#allocation5 + $0xa88] sm:$0xff]
    %v2523 = vld [vmem:[#allocation5 + $0xa90] sm:$0xff]
    %v2524 = vld [vmem:[#allocation5 + $0xa98] sm:$0xff]
    %v2525 = vld [vmem:[#allocation5 + $0xaa0] sm:$0xff]
    %v2526 = vld [vmem:[#allocation5 + $0xaa8] sm:$0xff]
    %v2527 = vld [vmem:[#allocation5 + $0xab0] sm:$0xff]
    %v2528 = vld [vmem:[#allocation5 + $0xab8] sm:$0xff]
    %v2529 = vld [vmem:[#allocation5 + $0xac0] sm:$0xff]
    %v2530 = vld [vmem:[#allocation5 + $0xac8] sm:$0xff]
    %v2531 = vld [vmem:[#allocation5 + $0xad0] sm:$0xff]
    %v2532 = vld [vmem:[#allocation5 + $0xad8] sm:$0xff]
    %v2533 = vld [vmem:[#allocation5 + $0xae0] sm:$0xff]
    %v2534 = vld [vmem:[#allocation5 + $0xae8] sm:$0xff]
    %v2535 = vld [vmem:[#allocation5 + $0xaf0] sm:$0xff]
    %v2536 = vld [vmem:[#allocation5 + $0xaf8] sm:$0xff]
    %v2537 = vld [vmem:[#allocation5 + $0xb00] sm:$0xff]
    %v2538 = vld [vmem:[#allocation5 + $0xb08] sm:$0xff]
    %v2539 = vld [vmem:[#allocation5 + $0xb10] sm:$0xff]
    %v2540 = vld [vmem:[#allocation5 + $0xb18] sm:$0xff]
    %v2541 = vld [vmem:[#allocation5 + $0xb20] sm:$0xff]
    %v2542 = vld [vmem:[#allocation5 + $0xb28] sm:$0xff]
    %v2543 = vld [vmem:[#allocation5 + $0xb30] sm:$0xff]
    %v2544 = vld [vmem:[#allocation5 + $0xb38] sm:$0xff]
    %v2545 = vld [vmem:[#allocation5 + $0xb40] sm:$0xff]
    %v2546 = vld [vmem:[#allocation5 + $0xb48] sm:$0xff]
    %v2547 = vld [vmem:[#allocation5 + $0xb50] sm:$0xff]
    %v2548 = vld [vmem:[#allocation5 + $0xb58] sm:$0xff]
    %v2549 = vld [vmem:[#allocation5 + $0xb60] sm:$0xff]
    %v2550 = vld [vmem:[#allocation5 + $0xb68] sm:$0xff]
    %v2551 = vld [vmem:[#allocation5 + $0xb70] sm:$0xff]
    %v2552 = vld [vmem:[#allocation5 + $0xb78] sm:$0xff]
    %v2553 = vld [vmem:[#allocation5 + $0xb80] sm:$0xff]
    %v2554 = vld [vmem:[#allocation5 + $0xb88] sm:$0xff]
    %v2555 = vld [vmem:[#allocation5 + $0xb90] sm:$0xff]
    %v2556 = vld [vmem:[#allocation5 + $0xb98] sm:$0xff]
    %v2557 = vld [vmem:[#allocation5 + $0xba0] sm:$0xff]
    %v2558 = vld [vmem:[#allocation5 + $0xba8] sm:$0xff]
    %v2559 = vld [vmem:[#allocation5 + $0xbb0] sm:$0xff]
    %v2560 = vld [vmem:[#allocation5 + $0xbb8] sm:$0xff]
    %v2561 = vld [vmem:[#allocation5 + $0xbc0] sm:$0xff]
    %v2562 = vld [vmem:[#allocation5 + $0xbc8] sm:$0xff]
    %v2563 = vld [vmem:[#allocation5 + $0xbd0] sm:$0xff]
    %v2564 = vld [vmem:[#allocation5 + $0xbd8] sm:$0xff]
    %v2565 = vld [vmem:[#allocation5 + $0xbe0] sm:$0xff]
    %v2566 = vld [vmem:[#allocation5 + $0xbe8] sm:$0xff]
    %v2567 = vld [vmem:[#allocation5 + $0xbf0] sm:$0xff]
    %v2568 = vld [vmem:[#allocation5 + $0xbf8] sm:$0xff]
    %v2569 = vld [vmem:[#allocation5 + $0xc00] sm:$0xff]
    %v2570 = vld [vmem:[#allocation5 + $0xc08] sm:$0xff]
    %v2571 = vld [vmem:[#allocation5 + $0xc10] sm:$0xff]
    %v2572 = vld [vmem:[#allocation5 + $0xc18] sm:$0xff]
    %v2573 = vld [vmem:[#allocation5 + $0xc20] sm:$0xff]
    %v2574 = vld [vmem:[#allocation5 + $0xc28] sm:$0xff]
    %v2575 = vld [vmem:[#allocation5 + $0xc30] sm:$0xff]
    %v2576 = vld [vmem:[#allocation5 + $0xc38] sm:$0xff]
    %v2577 = vld [vmem:[#allocation5 + $0xc40] sm:$0xff]
    %v2578 = vld [vmem:[#allocation5 + $0xc48] sm:$0xff]
    %v2579 = vld [vmem:[#allocation5 + $0xc50] sm:$0xff]
    %v2580 = vld [vmem:[#allocation5 + $0xc58] sm:$0xff]
    %v2581 = vld [vmem:[#allocation5 + $0xc60] sm:$0xff]
    %v2582 = vld [vmem:[#allocation5 + $0xc68] sm:$0xff]
    %v2583 = vld [vmem:[#allocation5 + $0xc70] sm:$0xff]
    %v2584 = vld [vmem:[#allocation5 + $0xc78] sm:$0xff]
    %v2585 = vld [vmem:[#allocation5 + $0xc80] sm:$0xff]
    %v2586 = vld [vmem:[#allocation5 + $0xc88] sm:$0xff]
    %v2587 = vld [vmem:[#allocation5 + $0xc90] sm:$0xff]
    %v2588 = vld [vmem:[#allocation5 + $0xc98] sm:$0xff]
    %v2589 = vld [vmem:[#allocation5 + $0xca0] sm:$0xff]
    %v2590 = vld [vmem:[#allocation5 + $0xca8] sm:$0xff]
    %v2591 = vld [vmem:[#allocation5 + $0xcb0] sm:$0xff]
    %v2592 = vld [vmem:[#allocation5 + $0xcb8] sm:$0xff]
    %v2593 = vld [vmem:[#allocation5 + $0xcc0] sm:$0xff]
    %v2594 = vld [vmem:[#allocation5 + $0xcc8] sm:$0xff]
    %v2595 = vld [vmem:[#allocation5 + $0xcd0] sm:$0xff]
    %v2596 = vld [vmem:[#allocation5 + $0xcd8] sm:$0xff]
    %v2597 = vld [vmem:[#allocation5 + $0xce0] sm:$0xff]
    %v2598 = vld [vmem:[#allocation5 + $0xce8] sm:$0xff]
    %v2599 = vld [vmem:[#allocation5 + $0xcf0] sm:$0xff]
    %v2600 = vld [vmem:[#allocation5 + $0xcf8] sm:$0xff]
    %v2601 = vld [vmem:[#allocation5 + $0xd00] sm:$0xff]
    %v2602 = vld [vmem:[#allocation5 + $0xd08] sm:$0xff]
    %v2603 = vld [vmem:[#allocation5 + $0xd10] sm:$0xff]
    %v2604 = vld [vmem:[#allocation5 + $0xd18] sm:$0xff]
    %v2605 = vld [vmem:[#allocation5 + $0xd20] sm:$0xff]
    %v2606 = vld [vmem:[#allocation5 + $0xd28] sm:$0xff]
    %v2607 = vld [vmem:[#allocation5 + $0xd30] sm:$0xff]
    %v2608 = vld [vmem:[#allocation5 + $0xd38] sm:$0xff]
    %v2609 = vld [vmem:[#allocation5 + $0xd40] sm:$0xff]
    %v2610 = vld [vmem:[#allocation5 + $0xd48] sm:$0xff]
    %v2611 = vld [vmem:[#allocation5 + $0xd50] sm:$0xff]
    %v2612 = vld [vmem:[#allocation5 + $0xd58] sm:$0xff]
    %v2613 = vld [vmem:[#allocation5 + $0xd60] sm:$0xff]
    %v2614 = vld [vmem:[#allocation5 + $0xd68] sm:$0xff]
    %v2615 = vld [vmem:[#allocation5 + $0xd70] sm:$0xff]
    %v2616 = vld [vmem:[#allocation5 + $0xd78] sm:$0xff]
    %v2617 = vld [vmem:[#allocation5 + $0xd80] sm:$0xff]
    %v2618 = vld [vmem:[#allocation5 + $0xd88] sm:$0xff]
    %v2619 = vld [vmem:[#allocation5 + $0xd90] sm:$0xff]
    %v2620 = vld [vmem:[#allocation5 + $0xd98] sm:$0xff]
    %v2621 = vld [vmem:[#allocation5 + $0xda0] sm:$0xff]
    %v2622 = vld [vmem:[#allocation5 + $0xda8] sm:$0xff]
    %v2623 = vld [vmem:[#allocation5 + $0xdb0] sm:$0xff]
    %v2624 = vld [vmem:[#allocation5 + $0xdb8] sm:$0xff]
    %v2625 = vld [vmem:[#allocation5 + $0xdc0] sm:$0xff]
    %v2626 = vld [vmem:[#allocation5 + $0xdc8] sm:$0xff]
    %v2627 = vld [vmem:[#allocation5 + $0xdd0] sm:$0xff]
    %v2628 = vld [vmem:[#allocation5 + $0xdd8] sm:$0xff]
    %v2629 = vld [vmem:[#allocation5 + $0xde0] sm:$0xff]
    %v2630 = vld [vmem:[#allocation5 + $0xde8] sm:$0xff]
    %v2631 = vld [vmem:[#allocation5 + $0xdf0] sm:$0xff]
    %v2632 = vld [vmem:[#allocation5 + $0xdf8] sm:$0xff]
    %v2633 = vld [vmem:[#allocation5 + $0xe00] sm:$0xff]
    %v2634 = vld [vmem:[#allocation5 + $0xe08] sm:$0xff]
    %v2635 = vld [vmem:[#allocation5 + $0xe10] sm:$0xff]
    %v2636 = vld [vmem:[#allocation5 + $0xe18] sm:$0xff]
    %v2637 = vld [vmem:[#allocation5 + $0xe20] sm:$0xff]
    %v2638 = vld [vmem:[#allocation5 + $0xe28] sm:$0xff]
    %v2639 = vld [vmem:[#allocation5 + $0xe30] sm:$0xff]
    %v2640 = vld [vmem:[#allocation5 + $0xe38] sm:$0xff]
    %v2641 = vld [vmem:[#allocation5 + $0xe40] sm:$0xff]
    %v2642 = vld [vmem:[#allocation5 + $0xe48] sm:$0xff]
    %v2643 = vld [vmem:[#allocation5 + $0xe50] sm:$0xff]
    %v2644 = vld [vmem:[#allocation5 + $0xe58] sm:$0xff]
    %v2645 = vld [vmem:[#allocation5 + $0xe60] sm:$0xff]
    %v2646 = vld [vmem:[#allocation5 + $0xe68] sm:$0xff]
    %v2647 = vld [vmem:[#allocation5 + $0xe70] sm:$0xff]
    %v2648 = vld [vmem:[#allocation5 + $0xe78] sm:$0xff]
    %v2649 = vld [vmem:[#allocation5 + $0xe80] sm:$0xff]
    %v2650 = vld [vmem:[#allocation5 + $0xe88] sm:$0xff]
    %v2651 = vld [vmem:[#allocation5 + $0xe90] sm:$0xff]
    %v2652 = vld [vmem:[#allocation5 + $0xe98] sm:$0xff]
    %v2653 = vld [vmem:[#allocation5 + $0xea0] sm:$0xff]
    %v2654 = vld [vmem:[#allocation5 + $0xea8] sm:$0xff]
    %v2655 = vld [vmem:[#allocation5 + $0xeb0] sm:$0xff]
    %v2656 = vld [vmem:[#allocation5 + $0xeb8] sm:$0xff]
    %v2657 = vld [vmem:[#allocation5 + $0xec0] sm:$0xff]
    %v2658 = vld [vmem:[#allocation5 + $0xec8] sm:$0xff]
    %v2659 = vld [vmem:[#allocation5 + $0xed0] sm:$0xff]
    %v2660 = vld [vmem:[#allocation5 + $0xed8] sm:$0xff]
    %v2661 = vld [vmem:[#allocation5 + $0xee0] sm:$0xff]
    %v2662 = vld [vmem:[#allocation5 + $0xee8] sm:$0xff]
    %v2663 = vld [vmem:[#allocation5 + $0xef0] sm:$0xff]
    %v2664 = vld [vmem:[#allocation5 + $0xef8] sm:$0xff]
    %v2665 = vld [vmem:[#allocation5 + $0xf00] sm:$0xff]
    %v2666 = vld [vmem:[#allocation5 + $0xf08] sm:$0xff]
    %v2667 = vld [vmem:[#allocation5 + $0xf10] sm:$0xff]
    %v2668 = vld [vmem:[#allocation5 + $0xf18] sm:$0xff]
    %v2669 = vld [vmem:[#allocation5 + $0xf20] sm:$0xff]
    %v2670 = vld [vmem:[#allocation5 + $0xf28] sm:$0xff]
    %v2671 = vld [vmem:[#allocation5 + $0xf30] sm:$0xff]
    %v2672 = vld [vmem:[#allocation5 + $0xf38] sm:$0xff]
    %v2673 = vld [vmem:[#allocation5 + $0xf40] sm:$0xff]
    %v2674 = vld [vmem:[#allocation5 + $0xf48] sm:$0xff]
    %v2675 = vld [vmem:[#allocation5 + $0xf50] sm:$0xff]
    %v2676 = vld [vmem:[#allocation5 + $0xf58] sm:$0xff]
    %v2677 = vld [vmem:[#allocation5 + $0xf60] sm:$0xff]
    %v2678 = vld [vmem:[#allocation5 + $0xf68] sm:$0xff]
    %v2679 = vld [vmem:[#allocation5 + $0xf70] sm:$0xff]
    %v2680 = vld [vmem:[#allocation5 + $0xf78] sm:$0xff]
    %v2681 = vld [vmem:[#allocation5 + $0xf80] sm:$0xff]
    %v2682 = vld [vmem:[#allocation5 + $0xf88] sm:$0xff]
    %v2683 = vld [vmem:[#allocation5 + $0xf90] sm:$0xff]
    %v2684 = vld [vmem:[#allocation5 + $0xf98] sm:$0xff]
    %v2685 = vld [vmem:[#allocation5 + $0xfa0] sm:$0xff]
    %v2686 = vld [vmem:[#allocation5 + $0xfa8] sm:$0xff]
    %v2687 = vld [vmem:[#allocation5 + $0xfb0] sm:$0xff]
    %v2688 = vld [vmem:[#allocation5 + $0xfb8] sm:$0xff]
    %v2689 = vld [vmem:[#allocation5 + $0xfc0] sm:$0xff]
    %v2690 = vld [vmem:[#allocation5 + $0xfc8] sm:$0xff]
    %v2691 = vld [vmem:[#allocation5 + $0xfd0] sm:$0xff]
    %v2692 = vld [vmem:[#allocation5 + $0xfd8] sm:$0xff]
    %v2693 = vld [vmem:[#allocation5 + $0xfe0] sm:$0xff]
    %v2694 = vld [vmem:[#allocation5 + $0xfe8] sm:$0xff]
    %v2695 = vld [vmem:[#allocation5 + $0xff0] sm:$0xff]
    %v2696 = vld [vmem:[#allocation5 + $0xff8] sm:$0xff]
    %v2697 = vlaneseq
    %v2698 = vshrl.u32 %v2697, 7
    %v2699 = vsub.s32 0, %v2698
    %v2700 = vrot.slane %v2001, %v2699
    %v2701 = vlaneseq
    %v2702 = vshrl.u32 %v2701, 7
    %v2703 = vsub.s32 0, %v2702
    %v2704 = vrot.slane %v2003, %v2703
    %v2705 = vlaneseq
    %v2706 = vshrl.u32 %v2705, 7
    %v2707 = vsub.s32 0, %v2706
    %v2708 = vrot.slane %v2005, %v2707
    %v2709 = vlaneseq
    %v2710 = vshrl.u32 %v2709, 7
    %v2711 = vsub.s32 0, %v2710
    %v2712 = vrot.slane %v2007, %v2711
    %v2713 = vlaneseq
    %v2714 = vshrl.u32 %v2713, 7
    %v2715 = vsub.s32 0, %v2714
    %v2716 = vrot.slane %v2009, %v2715
    %v2717 = vlaneseq
    %v2718 = vshrl.u32 %v2717, 7
    %v2719 = vsub.s32 0, %v2718
    %v2720 = vrot.slane %v2011, %v2719
    %v2721 = vlaneseq
    %v2722 = vshrl.u32 %v2721, 7
    %v2723 = vsub.s32 0, %v2722
    %v2724 = vrot.slane %v2013, %v2723
    %v2725 = vlaneseq
    %v2726 = vshrl.u32 %v2725, 7
    %v2727 = vsub.s32 0, %v2726
    %v2728 = vrot.slane %v2015, %v2727
    %v2729 = vlaneseq
    %v2730 = vshrl.u32 %v2729, 7
    %v2731 = vsub.s32 0, %v2730
    %v2732 = vrot.slane %v2017, %v2731
    %v2733 = vlaneseq
    %v2734 = vshrl.u32 %v2733, 7
    %v2735 = vsub.s32 0, %v2734
    %v2736 = vrot.slane %v2019, %v2735
    %v2737 = vlaneseq
    %v2738 = vshrl.u32 %v2737, 7
    %v2739 = vsub.s32 0, %v2738
    %v2740 = vrot.slane %v2021, %v2739
    %v2741 = vlaneseq
    %v2742 = vshrl.u32 %v2741, 7
    %v2743 = vsub.s32 0, %v2742
    %v2744 = vrot.slane %v2023, %v2743
    %v2745 = vlaneseq
    %v2746 = vshrl.u32 %v2745, 7
    %v2747 = vsub.s32 0, %v2746
    %v2748 = vrot.slane %v2025, %v2747
    %v2749 = vlaneseq
    %v2750 = vshrl.u32 %v2749, 7
    %v2751 = vsub.s32 0, %v2750
    %v2752 = vrot.slane %v2027, %v2751
    %v2753 = vlaneseq
    %v2754 = vshrl.u32 %v2753, 7
    %v2755 = vsub.s32 0, %v2754
    %v2756 = vrot.slane %v2029, %v2755
    %v2757 = vlaneseq
    %v2758 = vshrl.u32 %v2757, 7
    %v2759 = vsub.s32 0, %v2758
    %v2760 = vrot.slane %v2031, %v2759
    %v2761 = vlaneseq
    %v2762 = vshrl.u32 %v2761, 7
    %v2763 = vsub.s32 0, %v2762
    %v2764 = vrot.slane %v2033, %v2763
    %v2765 = vlaneseq
    %v2766 = vshrl.u32 %v2765, 7
    %v2767 = vsub.s32 0, %v2766
    %v2768 = vrot.slane %v2035, %v2767
    %v2769 = vlaneseq
    %v2770 = vshrl.u32 %v2769, 7
    %v2771 = vsub.s32 0, %v2770
    %v2772 = vrot.slane %v2037, %v2771
    %v2773 = vlaneseq
    %v2774 = vshrl.u32 %v2773, 7
    %v2775 = vsub.s32 0, %v2774
    %v2776 = vrot.slane %v2039, %v2775
    %v2777 = vlaneseq
    %v2778 = vshrl.u32 %v2777, 7
    %v2779 = vsub.s32 0, %v2778
    %v2780 = vrot.slane %v2041, %v2779
    %v2781 = vlaneseq
    %v2782 = vshrl.u32 %v2781, 7
    %v2783 = vsub.s32 0, %v2782
    %v2784 = vrot.slane %v2043, %v2783
    %v2785 = vlaneseq
    %v2786 = vshrl.u32 %v2785, 7
    %v2787 = vsub.s32 0, %v2786
    %v2788 = vrot.slane %v2045, %v2787
    %v2789 = vlaneseq
    %v2790 = vshrl.u32 %v2789, 7
    %v2791 = vsub.s32 0, %v2790
    %v2792 = vrot.slane %v2047, %v2791
    %v2793 = vlaneseq
    %v2794 = vshrl.u32 %v2793, 7
    %v2795 = vsub.s32 0, %v2794
    %v2796 = vrot.slane %v2049, %v2795
    %v2797 = vlaneseq
    %v2798 = vshrl.u32 %v2797, 7
    %v2799 = vsub.s32 0, %v2798
    %v2800 = vrot.slane %v2051, %v2799
    %v2801 = vlaneseq
    %v2802 = vshrl.u32 %v2801, 7
    %v2803 = vsub.s32 0, %v2802
    %v2804 = vrot.slane %v2053, %v2803
    %v2805 = vlaneseq
    %v2806 = vshrl.u32 %v2805, 7
    %v2807 = vsub.s32 0, %v2806
    %v2808 = vrot.slane %v2055, %v2807
    %v2809 = vlaneseq
    %v2810 = vshrl.u32 %v2809, 7
    %v2811 = vsub.s32 0, %v2810
    %v2812 = vrot.slane %v2057, %v2811
    %v2813 = vlaneseq
    %v2814 = vshrl.u32 %v2813, 7
    %v2815 = vsub.s32 0, %v2814
    %v2816 = vrot.slane %v2059, %v2815
    %v2817 = vlaneseq
    %v2818 = vshrl.u32 %v2817, 7
    %v2819 = vsub.s32 0, %v2818
    %v2820 = vrot.slane %v2061, %v2819
    %v2821 = vlaneseq
    %v2822 = vshrl.u32 %v2821, 7
    %v2823 = vsub.s32 0, %v2822
    %v2824 = vrot.slane %v2063, %v2823
    %v2825 = vmul.f32 %v2185, %v2700
    %v2826 = vmul.f32 %v2186, %v2704
    %v2827 = vmul.f32 %v2187, %v2700
    %v2828 = vmul.f32 %v2188, %v2704
    %v2829 = vmul.f32 %v2189, %v2700
    %v2830 = vmul.f32 %v2190, %v2704
    %v2831 = vmul.f32 %v2191, %v2700
    %v2832 = vmul.f32 %v2192, %v2704
    %v2833 = vmul.f32 %v2193, %v2700
    %v2834 = vmul.f32 %v2194, %v2704
    %v2835 = vmul.f32 %v2195, %v2700
    %v2836 = vmul.f32 %v2196, %v2704
    %v2837 = vmul.f32 %v2197, %v2700
    %v2838 = vmul.f32 %v2198, %v2704
    %v2839 = vmul.f32 %v2199, %v2700
    %v2840 = vmul.f32 %v2200, %v2704
    %v2841 = vmul.f32 %v2201, %v2700
    %v2842 = vmul.f32 %v2202, %v2704
    %v2843 = vmul.f32 %v2203, %v2700
    %v2844 = vmul.f32 %v2204, %v2704
    %v2845 = vmul.f32 %v2205, %v2700
    %v2846 = vmul.f32 %v2206, %v2704
    %v2847 = vmul.f32 %v2207, %v2700
    %v2848 = vmul.f32 %v2208, %v2704
    %v2849 = vmul.f32 %v2209, %v2700
    %v2850 = vmul.f32 %v2210, %v2704
    %v2851 = vmul.f32 %v2211, %v2700
    %v2852 = vmul.f32 %v2212, %v2704
    %v2853 = vmul.f32 %v2213, %v2700
    %v2854 = vmul.f32 %v2214, %v2704
    %v2855 = vmul.f32 %v2215, %v2700
    %v2856 = vmul.f32 %v2216, %v2704
    %v2857 = vmul.f32 %v2217, %v2708
    %v2858 = vmul.f32 %v2218, %v2712
    %v2859 = vmul.f32 %v2219, %v2708
    %v2860 = vmul.f32 %v2220, %v2712
    %v2861 = vmul.f32 %v2221, %v2708
    %v2862 = vmul.f32 %v2222, %v2712
    %v2863 = vmul.f32 %v2223, %v2708
    %v2864 = vmul.f32 %v2224, %v2712
    %v2865 = vmul.f32 %v2225, %v2708
    %v2866 = vmul.f32 %v2226, %v2712
    %v2867 = vmul.f32 %v2227, %v2708
    %v2868 = vmul.f32 %v2228, %v2712
    %v2869 = vmul.f32 %v2229, %v2708
    %v2870 = vmul.f32 %v2230, %v2712
    %v2871 = vmul.f32 %v2231, %v2708
    %v2872 = vmul.f32 %v2232, %v2712
    %v2873 = vmul.f32 %v2233, %v2708
    %v2874 = vmul.f32 %v2234, %v2712
    %v2875 = vmul.f32 %v2235, %v2708
    %v2876 = vmul.f32 %v2236, %v2712
    %v2877 = vmul.f32 %v2237, %v2708
    %v2878 = vmul.f32 %v2238, %v2712
    %v2879 = vmul.f32 %v2239, %v2708
    %v2880 = vmul.f32 %v2240, %v2712
    %v2881 = vmul.f32 %v2241, %v2708
    %v2882 = vmul.f32 %v2242, %v2712
    %v2883 = vmul.f32 %v2243, %v2708
    %v2884 = vmul.f32 %v2244, %v2712
    %v2885 = vmul.f32 %v2245, %v2708
    %v2886 = vmul.f32 %v2246, %v2712
    %v2887 = vmul.f32 %v2247, %v2708
    %v2888 = vmul.f32 %v2248, %v2712
    %v2889 = vmul.f32 %v2249, %v2716
    %v2890 = vmul.f32 %v2250, %v2720
    %v2891 = vmul.f32 %v2251, %v2716
    %v2892 = vmul.f32 %v2252, %v2720
    %v2893 = vmul.f32 %v2253, %v2716
    %v2894 = vmul.f32 %v2254, %v2720
    %v2895 = vmul.f32 %v2255, %v2716
    %v2896 = vmul.f32 %v2256, %v2720
    %v2897 = vmul.f32 %v2257, %v2716
    %v2898 = vmul.f32 %v2258, %v2720
    %v2899 = vmul.f32 %v2259, %v2716
    %v2900 = vmul.f32 %v2260, %v2720
    %v2901 = vmul.f32 %v2261, %v2716
    %v2902 = vmul.f32 %v2262, %v2720
    %v2903 = vmul.f32 %v2263, %v2716
    %v2904 = vmul.f32 %v2264, %v2720
    %v2905 = vmul.f32 %v2265, %v2716
    %v2906 = vmul.f32 %v2266, %v2720
    %v2907 = vmul.f32 %v2267, %v2716
    %v2908 = vmul.f32 %v2268, %v2720
    %v2909 = vmul.f32 %v2269, %v2716
    %v2910 = vmul.f32 %v2270, %v2720
    %v2911 = vmul.f32 %v2271, %v2716
    %v2912 = vmul.f32 %v2272, %v2720
    %v2913 = vmul.f32 %v2273, %v2716
    %v2914 = vmul.f32 %v2274, %v2720
    %v2915 = vmul.f32 %v2275, %v2716
    %v2916 = vmul.f32 %v2276, %v2720
    %v2917 = vmul.f32 %v2277, %v2716
    %v2918 = vmul.f32 %v2278, %v2720
    %v2919 = vmul.f32 %v2279, %v2716
    %v2920 = vmul.f32 %v2280, %v2720
    %v2921 = vmul.f32 %v2281, %v2724
    %v2922 = vmul.f32 %v2282, %v2728
    %v2923 = vmul.f32 %v2283, %v2724
    %v2924 = vmul.f32 %v2284, %v2728
    %v2925 = vmul.f32 %v2285, %v2724
    %v2926 = vmul.f32 %v2286, %v2728
    %v2927 = vmul.f32 %v2287, %v2724
    %v2928 = vmul.f32 %v2288, %v2728
    %v2929 = vmul.f32 %v2289, %v2724
    %v2930 = vmul.f32 %v2290, %v2728
    %v2931 = vmul.f32 %v2291, %v2724
    %v2932 = vmul.f32 %v2292, %v2728
    %v2933 = vmul.f32 %v2293, %v2724
    %v2934 = vmul.f32 %v2294, %v2728
    %v2935 = vmul.f32 %v2295, %v2724
    %v2936 = vmul.f32 %v2296, %v2728
    %v2937 = vmul.f32 %v2297, %v2724
    %v2938 = vmul.f32 %v2298, %v2728
    %v2939 = vmul.f32 %v2299, %v2724
    %v2940 = vmul.f32 %v2300, %v2728
    %v2941 = vmul.f32 %v2301, %v2724
    %v2942 = vmul.f32 %v2302, %v2728
    %v2943 = vmul.f32 %v2303, %v2724
    %v2944 = vmul.f32 %v2304, %v2728
    %v2945 = vmul.f32 %v2305, %v2724
    %v2946 = vmul.f32 %v2306, %v2728
    %v2947 = vmul.f32 %v2307, %v2724
    %v2948 = vmul.f32 %v2308, %v2728
    %v2949 = vmul.f32 %v2309, %v2724
    %v2950 = vmul.f32 %v2310, %v2728
    %v2951 = vmul.f32 %v2311, %v2724
    %v2952 = vmul.f32 %v2312, %v2728
    %v2953 = vmul.f32 %v2313, %v2732
    %v2954 = vmul.f32 %v2314, %v2736
    %v2955 = vmul.f32 %v2315, %v2732
    %v2956 = vmul.f32 %v2316, %v2736
    %v2957 = vmul.f32 %v2317, %v2732
    %v2958 = vmul.f32 %v2318, %v2736
    %v2959 = vmul.f32 %v2319, %v2732
    %v2960 = vmul.f32 %v2320, %v2736
    %v2961 = vmul.f32 %v2321, %v2732
    %v2962 = vmul.f32 %v2322, %v2736
    %v2963 = vmul.f32 %v2323, %v2732
    %v2964 = vmul.f32 %v2324, %v2736
    %v2965 = vmul.f32 %v2325, %v2732
    %v2966 = vmul.f32 %v2326, %v2736
    %v2967 = vmul.f32 %v2327, %v2732
    %v2968 = vmul.f32 %v2328, %v2736
    %v2969 = vmul.f32 %v2329, %v2732
    %v2970 = vmul.f32 %v2330, %v2736
    %v2971 = vmul.f32 %v2331, %v2732
    %v2972 = vmul.f32 %v2332, %v2736
    %v2973 = vmul.f32 %v2333, %v2732
    %v2974 = vmul.f32 %v2334, %v2736
    %v2975 = vmul.f32 %v2335, %v2732
    %v2976 = vmul.f32 %v2336, %v2736
    %v2977 = vmul.f32 %v2337, %v2732
    %v2978 = vmul.f32 %v2338, %v2736
    %v2979 = vmul.f32 %v2339, %v2732
    %v2980 = vmul.f32 %v2340, %v2736
    %v2981 = vmul.f32 %v2341, %v2732
    %v2982 = vmul.f32 %v2342, %v2736
    %v2983 = vmul.f32 %v2343, %v2732
    %v2984 = vmul.f32 %v2344, %v2736
    %v2985 = vmul.f32 %v2345, %v2740
    %v2986 = vmul.f32 %v2346, %v2744
    %v2987 = vmul.f32 %v2347, %v2740
    %v2988 = vmul.f32 %v2348, %v2744
    %v2989 = vmul.f32 %v2349, %v2740
    %v2990 = vmul.f32 %v2350, %v2744
    %v2991 = vmul.f32 %v2351, %v2740
    %v2992 = vmul.f32 %v2352, %v2744
    %v2993 = vmul.f32 %v2353, %v2740
    %v2994 = vmul.f32 %v2354, %v2744
    %v2995 = vmul.f32 %v2355, %v2740
    %v2996 = vmul.f32 %v2356, %v2744
    %v2997 = vmul.f32 %v2357, %v2740
    %v2998 = vmul.f32 %v2358, %v2744
    %v2999 = vmul.f32 %v2359, %v2740
    %v3000 = vmul.f32 %v2360, %v2744
    %v3001 = vmul.f32 %v2361, %v2740
    %v3002 = vmul.f32 %v2362, %v2744
    %v3003 = vmul.f32 %v2363, %v2740
    %v3004 = vmul.f32 %v2364, %v2744
    %v3005 = vmul.f32 %v2365, %v2740
    %v3006 = vmul.f32 %v2366, %v2744
    %v3007 = vmul.f32 %v2367, %v2740
    %v3008 = vmul.f32 %v2368, %v2744
    %v3009 = vmul.f32 %v2369, %v2740
    %v3010 = vmul.f32 %v2370, %v2744
    %v3011 = vmul.f32 %v2371, %v2740
    %v3012 = vmul.f32 %v2372, %v2744
    %v3013 = vmul.f32 %v2373, %v2740
    %v3014 = vmul.f32 %v2374, %v2744
    %v3015 = vmul.f32 %v2375, %v2740
    %v3016 = vmul.f32 %v2376, %v2744
    %v3017 = vmul.f32 %v2377, %v2748
    %v3018 = vmul.f32 %v2378, %v2752
    %v3019 = vmul.f32 %v2379, %v2748
    %v3020 = vmul.f32 %v2380, %v2752
    %v3021 = vmul.f32 %v2381, %v2748
    %v3022 = vmul.f32 %v2382, %v2752
    %v3023 = vmul.f32 %v2383, %v2748
    %v3024 = vmul.f32 %v2384, %v2752
    %v3025 = vmul.f32 %v2385, %v2748
    %v3026 = vmul.f32 %v2386, %v2752
    %v3027 = vmul.f32 %v2387, %v2748
    %v3028 = vmul.f32 %v2388, %v2752
    %v3029 = vmul.f32 %v2389, %v2748
    %v3030 = vmul.f32 %v2390, %v2752
    %v3031 = vmul.f32 %v2391, %v2748
    %v3032 = vmul.f32 %v2392, %v2752
    %v3033 = vmul.f32 %v2393, %v2748
    %v3034 = vmul.f32 %v2394, %v2752
    %v3035 = vmul.f32 %v2395, %v2748
    %v3036 = vmul.f32 %v2396, %v2752
    %v3037 = vmul.f32 %v2397, %v2748
    %v3038 = vmul.f32 %v2398, %v2752
    %v3039 = vmul.f32 %v2399, %v2748
    %v3040 = vmul.f32 %v2400, %v2752
    %v3041 = vmul.f32 %v2401, %v2748
    %v3042 = vmul.f32 %v2402, %v2752
    %v3043 = vmul.f32 %v2403, %v2748
    %v3044 = vmul.f32 %v2404, %v2752
    %v3045 = vmul.f32 %v2405, %v2748
    %v3046 = vmul.f32 %v2406, %v2752
    %v3047 = vmul.f32 %v2407, %v2748
    %v3048 = vmul.f32 %v2408, %v2752
    %v3049 = vmul.f32 %v2409, %v2756
    %v3050 = vmul.f32 %v2410, %v2760
    %v3051 = vmul.f32 %v2411, %v2756
    %v3052 = vmul.f32 %v2412, %v2760
    %v3053 = vmul.f32 %v2413, %v2756
    %v3054 = vmul.f32 %v2414, %v2760
    %v3055 = vmul.f32 %v2415, %v2756
    %v3056 = vmul.f32 %v2416, %v2760
    %v3057 = vmul.f32 %v2417, %v2756
    %v3058 = vmul.f32 %v2418, %v2760
    %v3059 = vmul.f32 %v2419, %v2756
    %v3060 = vmul.f32 %v2420, %v2760
    %v3061 = vmul.f32 %v2421, %v2756
    %v3062 = vmul.f32 %v2422, %v2760
    %v3063 = vmul.f32 %v2423, %v2756
    %v3064 = vmul.f32 %v2424, %v2760
    %v3065 = vmul.f32 %v2425, %v2756
    %v3066 = vmul.f32 %v2426, %v2760
    %v3067 = vmul.f32 %v2427, %v2756
    %v3068 = vmul.f32 %v2428, %v2760
    %v3069 = vmul.f32 %v2429, %v2756
    %v3070 = vmul.f32 %v2430, %v2760
    %v3071 = vmul.f32 %v2431, %v2756
    %v3072 = vmul.f32 %v2432, %v2760
    %v3073 = vmul.f32 %v2433, %v2756
    %v3074 = vmul.f32 %v2434, %v2760
    %v3075 = vmul.f32 %v2435, %v2756
    %v3076 = vmul.f32 %v2436, %v2760
    %v3077 = vmul.f32 %v2437, %v2756
    %v3078 = vmul.f32 %v2438, %v2760
    %v3079 = vmul.f32 %v2439, %v2756
    %v3080 = vmul.f32 %v2440, %v2760
    %v3081 = vmul.f32 %v2441, %v2764
    %v3082 = vmul.f32 %v2442, %v2768
    %v3083 = vmul.f32 %v2443, %v2764
    %v3084 = vmul.f32 %v2444, %v2768
    %v3085 = vmul.f32 %v2445, %v2764
    %v3086 = vmul.f32 %v2446, %v2768
    %v3087 = vmul.f32 %v2447, %v2764
    %v3088 = vmul.f32 %v2448, %v2768
    %v3089 = vmul.f32 %v2449, %v2764
    %v3090 = vmul.f32 %v2450, %v2768
    %v3091 = vmul.f32 %v2451, %v2764
    %v3092 = vmul.f32 %v2452, %v2768
    %v3093 = vmul.f32 %v2453, %v2764
    %v3094 = vmul.f32 %v2454, %v2768
    %v3095 = vmul.f32 %v2455, %v2764
    %v3096 = vmul.f32 %v2456, %v2768
    %v3097 = vmul.f32 %v2457, %v2764
    %v3098 = vmul.f32 %v2458, %v2768
    %v3099 = vmul.f32 %v2459, %v2764
    %v3100 = vmul.f32 %v2460, %v2768
    %v3101 = vmul.f32 %v2461, %v2764
    %v3102 = vmul.f32 %v2462, %v2768
    %v3103 = vmul.f32 %v2463, %v2764
    %v3104 = vmul.f32 %v2464, %v2768
    %v3105 = vmul.f32 %v2465, %v2764
    %v3106 = vmul.f32 %v2466, %v2768
    %v3107 = vmul.f32 %v2467, %v2764
    %v3108 = vmul.f32 %v2468, %v2768
    %v3109 = vmul.f32 %v2469, %v2764
    %v3110 = vmul.f32 %v2470, %v2768
    %v3111 = vmul.f32 %v2471, %v2764
    %v3112 = vmul.f32 %v2472, %v2768
    %v3113 = vmul.f32 %v2473, %v2772
    %v3114 = vmul.f32 %v2474, %v2776
    %v3115 = vmul.f32 %v2475, %v2772
    %v3116 = vmul.f32 %v2476, %v2776
    %v3117 = vmul.f32 %v2477, %v2772
    %v3118 = vmul.f32 %v2478, %v2776
    %v3119 = vmul.f32 %v2479, %v2772
    %v3120 = vmul.f32 %v2480, %v2776
    %v3121 = vmul.f32 %v2481, %v2772
    %v3122 = vmul.f32 %v2482, %v2776
    %v3123 = vmul.f32 %v2483, %v2772
    %v3124 = vmul.f32 %v2484, %v2776
    %v3125 = vmul.f32 %v2485, %v2772
    %v3126 = vmul.f32 %v2486, %v2776
    %v3127 = vmul.f32 %v2487, %v2772
    %v3128 = vmul.f32 %v2488, %v2776
    %v3129 = vmul.f32 %v2489, %v2772
    %v3130 = vmul.f32 %v2490, %v2776
    %v3131 = vmul.f32 %v2491, %v2772
    %v3132 = vmul.f32 %v2492, %v2776
    %v3133 = vmul.f32 %v2493, %v2772
    %v3134 = vmul.f32 %v2494, %v2776
    %v3135 = vmul.f32 %v2495, %v2772
    %v3136 = vmul.f32 %v2496, %v2776
    %v3137 = vmul.f32 %v2497, %v2772
    %v3138 = vmul.f32 %v2498, %v2776
    %v3139 = vmul.f32 %v2499, %v2772
    %v3140 = vmul.f32 %v2500, %v2776
    %v3141 = vmul.f32 %v2501, %v2772
    %v3142 = vmul.f32 %v2502, %v2776
    %v3143 = vmul.f32 %v2503, %v2772
    %v3144 = vmul.f32 %v2504, %v2776
    %v3145 = vmul.f32 %v2505, %v2780
    %v3146 = vmul.f32 %v2506, %v2784
    %v3147 = vmul.f32 %v2507, %v2780
    %v3148 = vmul.f32 %v2508, %v2784
    %v3149 = vmul.f32 %v2509, %v2780
    %v3150 = vmul.f32 %v2510, %v2784
    %v3151 = vmul.f32 %v2511, %v2780
    %v3152 = vmul.f32 %v2512, %v2784
    %v3153 = vmul.f32 %v2513, %v2780
    %v3154 = vmul.f32 %v2514, %v2784
    %v3155 = vmul.f32 %v2515, %v2780
    %v3156 = vmul.f32 %v2516, %v2784
    %v3157 = vmul.f32 %v2517, %v2780
    %v3158 = vmul.f32 %v2518, %v2784
    %v3159 = vmul.f32 %v2519, %v2780
    %v3160 = vmul.f32 %v2520, %v2784
    %v3161 = vmul.f32 %v2521, %v2780
    %v3162 = vmul.f32 %v2522, %v2784
    %v3163 = vmul.f32 %v2523, %v2780
    %v3164 = vmul.f32 %v2524, %v2784
    %v3165 = vmul.f32 %v2525, %v2780
    %v3166 = vmul.f32 %v2526, %v2784
    %v3167 = vmul.f32 %v2527, %v2780
    %v3168 = vmul.f32 %v2528, %v2784
    %v3169 = vmul.f32 %v2529, %v2780
    %v3170 = vmul.f32 %v2530, %v2784
    %v3171 = vmul.f32 %v2531, %v2780
    %v3172 = vmul.f32 %v2532, %v2784
    %v3173 = vmul.f32 %v2533, %v2780
    %v3174 = vmul.f32 %v2534, %v2784
    %v3175 = vmul.f32 %v2535, %v2780
    %v3176 = vmul.f32 %v2536, %v2784
    %v3177 = vmul.f32 %v2537, %v2788
    %v3178 = vmul.f32 %v2538, %v2792
    %v3179 = vmul.f32 %v2539, %v2788
    %v3180 = vmul.f32 %v2540, %v2792
    %v3181 = vmul.f32 %v2541, %v2788
    %v3182 = vmul.f32 %v2542, %v2792
    %v3183 = vmul.f32 %v2543, %v2788
    %v3184 = vmul.f32 %v2544, %v2792
    %v3185 = vmul.f32 %v2545, %v2788
    %v3186 = vmul.f32 %v2546, %v2792
    %v3187 = vmul.f32 %v2547, %v2788
    %v3188 = vmul.f32 %v2548, %v2792
    %v3189 = vmul.f32 %v2549, %v2788
    %v3190 = vmul.f32 %v2550, %v2792
    %v3191 = vmul.f32 %v2551, %v2788
    %v3192 = vmul.f32 %v2552, %v2792
    %v3193 = vmul.f32 %v2553, %v2788
    %v3194 = vmul.f32 %v2554, %v2792
    %v3195 = vmul.f32 %v2555, %v2788
    %v3196 = vmul.f32 %v2556, %v2792
    %v3197 = vmul.f32 %v2557, %v2788
    %v3198 = vmul.f32 %v2558, %v2792
    %v3199 = vmul.f32 %v2559, %v2788
    %v3200 = vmul.f32 %v2560, %v2792
    %v3201 = vmul.f32 %v2561, %v2788
    %v3202 = vmul.f32 %v2562, %v2792
    %v3203 = vmul.f32 %v2563, %v2788
    %v3204 = vmul.f32 %v2564, %v2792
    %v3205 = vmul.f32 %v2565, %v2788
    %v3206 = vmul.f32 %v2566, %v2792
    %v3207 = vmul.f32 %v2567, %v2788
    %v3208 = vmul.f32 %v2568, %v2792
    %v3209 = vmul.f32 %v2569, %v2796
    %v3210 = vmul.f32 %v2570, %v2800
    %v3211 = vmul.f32 %v2571, %v2796
    %v3212 = vmul.f32 %v2572, %v2800
    %v3213 = vmul.f32 %v2573, %v2796
    %v3214 = vmul.f32 %v2574, %v2800
    %v3215 = vmul.f32 %v2575, %v2796
    %v3216 = vmul.f32 %v2576, %v2800
    %v3217 = vmul.f32 %v2577, %v2796
    %v3218 = vmul.f32 %v2578, %v2800
    %v3219 = vmul.f32 %v2579, %v2796
    %v3220 = vmul.f32 %v2580, %v2800
    %v3221 = vmul.f32 %v2581, %v2796
    %v3222 = vmul.f32 %v2582, %v2800
    %v3223 = vmul.f32 %v2583, %v2796
    %v3224 = vmul.f32 %v2584, %v2800
    %v3225 = vmul.f32 %v2585, %v2796
    %v3226 = vmul.f32 %v2586, %v2800
    %v3227 = vmul.f32 %v2587, %v2796
    %v3228 = vmul.f32 %v2588, %v2800
    %v3229 = vmul.f32 %v2589, %v2796
    %v3230 = vmul.f32 %v2590, %v2800
    %v3231 = vmul.f32 %v2591, %v2796
    %v3232 = vmul.f32 %v2592, %v2800
    %v3233 = vmul.f32 %v2593, %v2796
    %v3234 = vmul.f32 %v2594, %v2800
    %v3235 = vmul.f32 %v2595, %v2796
    %v3236 = vmul.f32 %v2596, %v2800
    %v3237 = vmul.f32 %v2597, %v2796
    %v3238 = vmul.f32 %v2598, %v2800
    %v3239 = vmul.f32 %v2599, %v2796
    %v3240 = vmul.f32 %v2600, %v2800
    %v3241 = vmul.f32 %v2601, %v2804
    %v3242 = vmul.f32 %v2602, %v2808
    %v3243 = vmul.f32 %v2603, %v2804
    %v3244 = vmul.f32 %v2604, %v2808
    %v3245 = vmul.f32 %v2605, %v2804
    %v3246 = vmul.f32 %v2606, %v2808
    %v3247 = vmul.f32 %v2607, %v2804
    %v3248 = vmul.f32 %v2608, %v2808
    %v3249 = vmul.f32 %v2609, %v2804
    %v3250 = vmul.f32 %v2610, %v2808
    %v3251 = vmul.f32 %v2611, %v2804
    %v3252 = vmul.f32 %v2612, %v2808
    %v3253 = vmul.f32 %v2613, %v2804
    %v3254 = vmul.f32 %v2614, %v2808
    %v3255 = vmul.f32 %v2615, %v2804
    %v3256 = vmul.f32 %v2616, %v2808
    %v3257 = vmul.f32 %v2617, %v2804
    %v3258 = vmul.f32 %v2618, %v2808
    %v3259 = vmul.f32 %v2619, %v2804
    %v3260 = vmul.f32 %v2620, %v2808
    %v3261 = vmul.f32 %v2621, %v2804
    %v3262 = vmul.f32 %v2622, %v2808
    %v3263 = vmul.f32 %v2623, %v2804
    %v3264 = vmul.f32 %v2624, %v2808
    %v3265 = vmul.f32 %v2625, %v2804
    %v3266 = vmul.f32 %v2626, %v2808
    %v3267 = vmul.f32 %v2627, %v2804
    %v3268 = vmul.f32 %v2628, %v2808
    %v3269 = vmul.f32 %v2629, %v2804
    %v3270 = vmul.f32 %v2630, %v2808
    %v3271 = vmul.f32 %v2631, %v2804
    %v3272 = vmul.f32 %v2632, %v2808
    %v3273 = vmul.f32 %v2633, %v2812
    %v3274 = vmul.f32 %v2634, %v2816
    %v3275 = vmul.f32 %v2635, %v2812
    %v3276 = vmul.f32 %v2636, %v2816
    %v3277 = vmul.f32 %v2637, %v2812
    %v3278 = vmul.f32 %v2638, %v2816
    %v3279 = vmul.f32 %v2639, %v2812
    %v3280 = vmul.f32 %v2640, %v2816
    %v3281 = vmul.f32 %v2641, %v2812
    %v3282 = vmul.f32 %v2642, %v2816
    %v3283 = vmul.f32 %v2643, %v2812
    %v3284 = vmul.f32 %v2644, %v2816
    %v3285 = vmul.f32 %v2645, %v2812
    %v3286 = vmul.f32 %v2646, %v2816
    %v3287 = vmul.f32 %v2647, %v2812
    %v3288 = vmul.f32 %v2648, %v2816
    %v3289 = vmul.f32 %v2649, %v2812
    %v3290 = vmul.f32 %v2650, %v2816
    %v3291 = vmul.f32 %v2651, %v2812
    %v3292 = vmul.f32 %v2652, %v2816
    %v3293 = vmul.f32 %v2653, %v2812
    %v3294 = vmul.f32 %v2654, %v2816
    %v3295 = vmul.f32 %v2655, %v2812
    %v3296 = vmul.f32 %v2656, %v2816
    %v3297 = vmul.f32 %v2657, %v2812
    %v3298 = vmul.f32 %v2658, %v2816
    %v3299 = vmul.f32 %v2659, %v2812
    %v3300 = vmul.f32 %v2660, %v2816
    %v3301 = vmul.f32 %v2661, %v2812
    %v3302 = vmul.f32 %v2662, %v2816
    %v3303 = vmul.f32 %v2663, %v2812
    %v3304 = vmul.f32 %v2664, %v2816
    %v3305 = vmul.f32 %v2665, %v2820
    %v3306 = vmul.f32 %v2666, %v2824
    %v3307 = vmul.f32 %v2667, %v2820
    %v3308 = vmul.f32 %v2668, %v2824
    %v3309 = vmul.f32 %v2669, %v2820
    %v3310 = vmul.f32 %v2670, %v2824
    %v3311 = vmul.f32 %v2671, %v2820
    %v3312 = vmul.f32 %v2672, %v2824
    %v3313 = vmul.f32 %v2673, %v2820
    %v3314 = vmul.f32 %v2674, %v2824
    %v3315 = vmul.f32 %v2675, %v2820
    %v3316 = vmul.f32 %v2676, %v2824
    %v3317 = vmul.f32 %v2677, %v2820
    %v3318 = vmul.f32 %v2678, %v2824
    %v3319 = vmul.f32 %v2679, %v2820
    %v3320 = vmul.f32 %v2680, %v2824
    %v3321 = vmul.f32 %v2681, %v2820
    %v3322 = vmul.f32 %v2682, %v2824
    %v3323 = vmul.f32 %v2683, %v2820
    %v3324 = vmul.f32 %v2684, %v2824
    %v3325 = vmul.f32 %v2685, %v2820
    %v3326 = vmul.f32 %v2686, %v2824
    %v3327 = vmul.f32 %v2687, %v2820
    %v3328 = vmul.f32 %v2688, %v2824
    %v3329 = vmul.f32 %v2689, %v2820
    %v3330 = vmul.f32 %v2690, %v2824
    %v3331 = vmul.f32 %v2691, %v2820
    %v3332 = vmul.f32 %v2692, %v2824
    %v3333 = vmul.f32 %v2693, %v2820
    %v3334 = vmul.f32 %v2694, %v2824
    %v3335 = vmul.f32 %v2695, %v2820
    %v3336 = vmul.f32 %v2696, %v2824
    %v3337 = vadd.f32 %v2825, %v2826
    %3338 = vadd.xlane.f32.xlu0 %v3337
    %v3339 = vpop.xlane.xlu0 %3338
    %v3340 = vadd.f32 %v2827, %v2828
    %3341 = vadd.xlane.f32.xlu0 %v3340
    %v3342 = vpop.xlane.xlu0 %3341
    %v3343 = vadd.f32 %v2829, %v2830
    %3344 = vadd.xlane.f32.xlu0 %v3343
    %v3345 = vpop.xlane.xlu0 %3344
    %v3346 = vadd.f32 %v2831, %v2832
    %3347 = vadd.xlane.f32.xlu0 %v3346
    %v3348 = vpop.xlane.xlu0 %3347
    %v3349 = vadd.f32 %v2833, %v2834
    %3350 = vadd.xlane.f32.xlu0 %v3349
    %v3351 = vpop.xlane.xlu0 %3350
    %v3352 = vadd.f32 %v2835, %v2836
    %3353 = vadd.xlane.f32.xlu0 %v3352
    %v3354 = vpop.xlane.xlu0 %3353
    %v3355 = vadd.f32 %v2837, %v2838
    %3356 = vadd.xlane.f32.xlu0 %v3355
    %v3357 = vpop.xlane.xlu0 %3356
    %v3358 = vadd.f32 %v2839, %v2840
    %3359 = vadd.xlane.f32.xlu0 %v3358
    %v3360 = vpop.xlane.xlu0 %3359
    %v3361 = vadd.f32 %v2841, %v2842
    %3362 = vadd.xlane.f32.xlu0 %v3361
    %v3363 = vpop.xlane.xlu0 %3362
    %v3364 = vadd.f32 %v2843, %v2844
    %3365 = vadd.xlane.f32.xlu0 %v3364
    %v3366 = vpop.xlane.xlu0 %3365
    %v3367 = vadd.f32 %v2845, %v2846
    %3368 = vadd.xlane.f32.xlu0 %v3367
    %v3369 = vpop.xlane.xlu0 %3368
    %v3370 = vadd.f32 %v2847, %v2848
    %3371 = vadd.xlane.f32.xlu0 %v3370
    %v3372 = vpop.xlane.xlu0 %3371
    %v3373 = vadd.f32 %v2849, %v2850
    %3374 = vadd.xlane.f32.xlu0 %v3373
    %v3375 = vpop.xlane.xlu0 %3374
    %v3376 = vadd.f32 %v2851, %v2852
    %3377 = vadd.xlane.f32.xlu0 %v3376
    %v3378 = vpop.xlane.xlu0 %3377
    %v3379 = vadd.f32 %v2853, %v2854
    %3380 = vadd.xlane.f32.xlu0 %v3379
    %v3381 = vpop.xlane.xlu0 %3380
    %v3382 = vadd.f32 %v2855, %v2856
    %3383 = vadd.xlane.f32.xlu0 %v3382
    %v3384 = vpop.xlane.xlu0 %3383
    %v3385 = vadd.f32 %v2857, %v2858
    %3386 = vadd.xlane.f32.xlu0 %v3385
    %v3387 = vpop.xlane.xlu0 %3386
    %v3388 = vadd.f32 %v2859, %v2860
    %3389 = vadd.xlane.f32.xlu0 %v3388
    %v3390 = vpop.xlane.xlu0 %3389
    %v3391 = vadd.f32 %v2861, %v2862
    %3392 = vadd.xlane.f32.xlu0 %v3391
    %v3393 = vpop.xlane.xlu0 %3392
    %v3394 = vadd.f32 %v2863, %v2864
    %3395 = vadd.xlane.f32.xlu0 %v3394
    %v3396 = vpop.xlane.xlu0 %3395
    %v3397 = vadd.f32 %v2865, %v2866
    %3398 = vadd.xlane.f32.xlu0 %v3397
    %v3399 = vpop.xlane.xlu0 %3398
    %v3400 = vadd.f32 %v2867, %v2868
    %3401 = vadd.xlane.f32.xlu0 %v3400
    %v3402 = vpop.xlane.xlu0 %3401
    %v3403 = vadd.f32 %v2869, %v2870
    %3404 = vadd.xlane.f32.xlu0 %v3403
    %v3405 = vpop.xlane.xlu0 %3404
    %v3406 = vadd.f32 %v2871, %v2872
    %3407 = vadd.xlane.f32.xlu0 %v3406
    %v3408 = vpop.xlane.xlu0 %3407
    %v3409 = vadd.f32 %v2873, %v2874
    %3410 = vadd.xlane.f32.xlu0 %v3409
    %v3411 = vpop.xlane.xlu0 %3410
    %v3412 = vadd.f32 %v2875, %v2876
    %3413 = vadd.xlane.f32.xlu0 %v3412
    %v3414 = vpop.xlane.xlu0 %3413
    %v3415 = vadd.f32 %v2877, %v2878
    %3416 = vadd.xlane.f32.xlu0 %v3415
    %v3417 = vpop.xlane.xlu0 %3416
    %v3418 = vadd.f32 %v2879, %v2880
    %3419 = vadd.xlane.f32.xlu0 %v3418
    %v3420 = vpop.xlane.xlu0 %3419
    %v3421 = vadd.f32 %v2881, %v2882
    %3422 = vadd.xlane.f32.xlu0 %v3421
    %v3423 = vpop.xlane.xlu0 %3422
    %v3424 = vadd.f32 %v2883, %v2884
    %3425 = vadd.xlane.f32.xlu0 %v3424
    %v3426 = vpop.xlane.xlu0 %3425
    %v3427 = vadd.f32 %v2885, %v2886
    %3428 = vadd.xlane.f32.xlu0 %v3427
    %v3429 = vpop.xlane.xlu0 %3428
    %v3430 = vadd.f32 %v2887, %v2888
    %3431 = vadd.xlane.f32.xlu0 %v3430
    %v3432 = vpop.xlane.xlu0 %3431
    %v3433 = vadd.f32 %v2889, %v2890
    %3434 = vadd.xlane.f32.xlu0 %v3433
    %v3435 = vpop.xlane.xlu0 %3434
    %v3436 = vadd.f32 %v2891, %v2892
    %3437 = vadd.xlane.f32.xlu0 %v3436
    %v3438 = vpop.xlane.xlu0 %3437
    %v3439 = vadd.f32 %v2893, %v2894
    %3440 = vadd.xlane.f32.xlu0 %v3439
    %v3441 = vpop.xlane.xlu0 %3440
    %v3442 = vadd.f32 %v2895, %v2896
    %3443 = vadd.xlane.f32.xlu0 %v3442
    %v3444 = vpop.xlane.xlu0 %3443
    %v3445 = vadd.f32 %v2897, %v2898
    %3446 = vadd.xlane.f32.xlu0 %v3445
    %v3447 = vpop.xlane.xlu0 %3446
    %v3448 = vadd.f32 %v2899, %v2900
    %3449 = vadd.xlane.f32.xlu0 %v3448
    %v3450 = vpop.xlane.xlu0 %3449
    %v3451 = vadd.f32 %v2901, %v2902
    %3452 = vadd.xlane.f32.xlu0 %v3451
    %v3453 = vpop.xlane.xlu0 %3452
    %v3454 = vadd.f32 %v2903, %v2904
    %3455 = vadd.xlane.f32.xlu0 %v3454
    %v3456 = vpop.xlane.xlu0 %3455
    %v3457 = vadd.f32 %v2905, %v2906
    %3458 = vadd.xlane.f32.xlu0 %v3457
    %v3459 = vpop.xlane.xlu0 %3458
    %v3460 = vadd.f32 %v2907, %v2908
    %3461 = vadd.xlane.f32.xlu0 %v3460
    %v3462 = vpop.xlane.xlu0 %3461
    %v3463 = vadd.f32 %v2909, %v2910
    %3464 = vadd.xlane.f32.xlu0 %v3463
    %v3465 = vpop.xlane.xlu0 %3464
    %v3466 = vadd.f32 %v2911, %v2912
    %3467 = vadd.xlane.f32.xlu0 %v3466
    %v3468 = vpop.xlane.xlu0 %3467
    %v3469 = vadd.f32 %v2913, %v2914
    %3470 = vadd.xlane.f32.xlu0 %v3469
    %v3471 = vpop.xlane.xlu0 %3470
    %v3472 = vadd.f32 %v2915, %v2916
    %3473 = vadd.xlane.f32.xlu0 %v3472
    %v3474 = vpop.xlane.xlu0 %3473
    %v3475 = vadd.f32 %v2917, %v2918
    %3476 = vadd.xlane.f32.xlu0 %v3475
    %v3477 = vpop.xlane.xlu0 %3476
    %v3478 = vadd.f32 %v2919, %v2920
    %3479 = vadd.xlane.f32.xlu0 %v3478
    %v3480 = vpop.xlane.xlu0 %3479
    %v3481 = vadd.f32 %v2921, %v2922
    %3482 = vadd.xlane.f32.xlu0 %v3481
    %v3483 = vpop.xlane.xlu0 %3482
    %v3484 = vadd.f32 %v2923, %v2924
    %3485 = vadd.xlane.f32.xlu0 %v3484
    %v3486 = vpop.xlane.xlu0 %3485
    %v3487 = vadd.f32 %v2925, %v2926
    %3488 = vadd.xlane.f32.xlu0 %v3487
    %v3489 = vpop.xlane.xlu0 %3488
    %v3490 = vadd.f32 %v2927, %v2928
    %3491 = vadd.xlane.f32.xlu0 %v3490
    %v3492 = vpop.xlane.xlu0 %3491
    %v3493 = vadd.f32 %v2929, %v2930
    %3494 = vadd.xlane.f32.xlu0 %v3493
    %v3495 = vpop.xlane.xlu0 %3494
    %v3496 = vadd.f32 %v2931, %v2932
    %3497 = vadd.xlane.f32.xlu0 %v3496
    %v3498 = vpop.xlane.xlu0 %3497
    %v3499 = vadd.f32 %v2933, %v2934
    %3500 = vadd.xlane.f32.xlu0 %v3499
    %v3501 = vpop.xlane.xlu0 %3500
    %v3502 = vadd.f32 %v2935, %v2936
    %3503 = vadd.xlane.f32.xlu0 %v3502
    %v3504 = vpop.xlane.xlu0 %3503
    %v3505 = vadd.f32 %v2937, %v2938
    %3506 = vadd.xlane.f32.xlu0 %v3505
    %v3507 = vpop.xlane.xlu0 %3506
    %v3508 = vadd.f32 %v2939, %v2940
    %3509 = vadd.xlane.f32.xlu0 %v3508
    %v3510 = vpop.xlane.xlu0 %3509
    %v3511 = vadd.f32 %v2941, %v2942
    %3512 = vadd.xlane.f32.xlu0 %v3511
    %v3513 = vpop.xlane.xlu0 %3512
    %v3514 = vadd.f32 %v2943, %v2944
    %3515 = vadd.xlane.f32.xlu0 %v3514
    %v3516 = vpop.xlane.xlu0 %3515
    %v3517 = vadd.f32 %v2945, %v2946
    %3518 = vadd.xlane.f32.xlu0 %v3517
    %v3519 = vpop.xlane.xlu0 %3518
    %v3520 = vadd.f32 %v2947, %v2948
    %3521 = vadd.xlane.f32.xlu0 %v3520
    %v3522 = vpop.xlane.xlu0 %3521
    %v3523 = vadd.f32 %v2949, %v2950
    %3524 = vadd.xlane.f32.xlu0 %v3523
    %v3525 = vpop.xlane.xlu0 %3524
    %v3526 = vadd.f32 %v2951, %v2952
    %3527 = vadd.xlane.f32.xlu0 %v3526
    %v3528 = vpop.xlane.xlu0 %3527
    %v3529 = vadd.f32 %v2953, %v2954
    %3530 = vadd.xlane.f32.xlu0 %v3529
    %v3531 = vpop.xlane.xlu0 %3530
    %v3532 = vadd.f32 %v2955, %v2956
    %3533 = vadd.xlane.f32.xlu0 %v3532
    %v3534 = vpop.xlane.xlu0 %3533
    %v3535 = vadd.f32 %v2957, %v2958
    %3536 = vadd.xlane.f32.xlu0 %v3535
    %v3537 = vpop.xlane.xlu0 %3536
    %v3538 = vadd.f32 %v2959, %v2960
    %3539 = vadd.xlane.f32.xlu0 %v3538
    %v3540 = vpop.xlane.xlu0 %3539
    %v3541 = vadd.f32 %v2961, %v2962
    %3542 = vadd.xlane.f32.xlu0 %v3541
    %v3543 = vpop.xlane.xlu0 %3542
    %v3544 = vadd.f32 %v2963, %v2964
    %3545 = vadd.xlane.f32.xlu0 %v3544
    %v3546 = vpop.xlane.xlu0 %3545
    %v3547 = vadd.f32 %v2965, %v2966
    %3548 = vadd.xlane.f32.xlu0 %v3547
    %v3549 = vpop.xlane.xlu0 %3548
    %v3550 = vadd.f32 %v2967, %v2968
    %3551 = vadd.xlane.f32.xlu0 %v3550
    %v3552 = vpop.xlane.xlu0 %3551
    %v3553 = vadd.f32 %v2969, %v2970
    %3554 = vadd.xlane.f32.xlu0 %v3553
    %v3555 = vpop.xlane.xlu0 %3554
    %v3556 = vadd.f32 %v2971, %v2972
    %3557 = vadd.xlane.f32.xlu0 %v3556
    %v3558 = vpop.xlane.xlu0 %3557
    %v3559 = vadd.f32 %v2973, %v2974
    %3560 = vadd.xlane.f32.xlu0 %v3559
    %v3561 = vpop.xlane.xlu0 %3560
    %v3562 = vadd.f32 %v2975, %v2976
    %3563 = vadd.xlane.f32.xlu0 %v3562
    %v3564 = vpop.xlane.xlu0 %3563
    %v3565 = vadd.f32 %v2977, %v2978
    %3566 = vadd.xlane.f32.xlu0 %v3565
    %v3567 = vpop.xlane.xlu0 %3566
    %v3568 = vadd.f32 %v2979, %v2980
    %3569 = vadd.xlane.f32.xlu0 %v3568
    %v3570 = vpop.xlane.xlu0 %3569
    %v3571 = vadd.f32 %v2981, %v2982
    %3572 = vadd.xlane.f32.xlu0 %v3571
    %v3573 = vpop.xlane.xlu0 %3572
    %v3574 = vadd.f32 %v2983, %v2984
    %3575 = vadd.xlane.f32.xlu0 %v3574
    %v3576 = vpop.xlane.xlu0 %3575
    %v3577 = vadd.f32 %v2985, %v2986
    %3578 = vadd.xlane.f32.xlu0 %v3577
    %v3579 = vpop.xlane.xlu0 %3578
    %v3580 = vadd.f32 %v2987, %v2988
    %3581 = vadd.xlane.f32.xlu0 %v3580
    %v3582 = vpop.xlane.xlu0 %3581
    %v3583 = vadd.f32 %v2989, %v2990
    %3584 = vadd.xlane.f32.xlu0 %v3583
    %v3585 = vpop.xlane.xlu0 %3584
    %v3586 = vadd.f32 %v2991, %v2992
    %3587 = vadd.xlane.f32.xlu0 %v3586
    %v3588 = vpop.xlane.xlu0 %3587
    %v3589 = vadd.f32 %v2993, %v2994
    %3590 = vadd.xlane.f32.xlu0 %v3589
    %v3591 = vpop.xlane.xlu0 %3590
    %v3592 = vadd.f32 %v2995, %v2996
    %3593 = vadd.xlane.f32.xlu0 %v3592
    %v3594 = vpop.xlane.xlu0 %3593
    %v3595 = vadd.f32 %v2997, %v2998
    %3596 = vadd.xlane.f32.xlu0 %v3595
    %v3597 = vpop.xlane.xlu0 %3596
    %v3598 = vadd.f32 %v2999, %v3000
    %3599 = vadd.xlane.f32.xlu0 %v3598
    %v3600 = vpop.xlane.xlu0 %3599
    %v3601 = vadd.f32 %v3001, %v3002
    %3602 = vadd.xlane.f32.xlu0 %v3601
    %v3603 = vpop.xlane.xlu0 %3602
    %v3604 = vadd.f32 %v3003, %v3004
    %3605 = vadd.xlane.f32.xlu0 %v3604
    %v3606 = vpop.xlane.xlu0 %3605
    %v3607 = vadd.f32 %v3005, %v3006
    %3608 = vadd.xlane.f32.xlu0 %v3607
    %v3609 = vpop.xlane.xlu0 %3608
    %v3610 = vadd.f32 %v3007, %v3008
    %3611 = vadd.xlane.f32.xlu0 %v3610
    %v3612 = vpop.xlane.xlu0 %3611
    %v3613 = vadd.f32 %v3009, %v3010
    %3614 = vadd.xlane.f32.xlu0 %v3613
    %v3615 = vpop.xlane.xlu0 %3614
    %v3616 = vadd.f32 %v3011, %v3012
    %3617 = vadd.xlane.f32.xlu0 %v3616
    %v3618 = vpop.xlane.xlu0 %3617
    %v3619 = vadd.f32 %v3013, %v3014
    %3620 = vadd.xlane.f32.xlu0 %v3619
    %v3621 = vpop.xlane.xlu0 %3620
    %v3622 = vadd.f32 %v3015, %v3016
    %3623 = vadd.xlane.f32.xlu0 %v3622
    %v3624 = vpop.xlane.xlu0 %3623
    %v3625 = vadd.f32 %v3017, %v3018
    %3626 = vadd.xlane.f32.xlu0 %v3625
    %v3627 = vpop.xlane.xlu0 %3626
    %v3628 = vadd.f32 %v3019, %v3020
    %3629 = vadd.xlane.f32.xlu0 %v3628
    %v3630 = vpop.xlane.xlu0 %3629
    %v3631 = vadd.f32 %v3021, %v3022
    %3632 = vadd.xlane.f32.xlu0 %v3631
    %v3633 = vpop.xlane.xlu0 %3632
    %v3634 = vadd.f32 %v3023, %v3024
    %3635 = vadd.xlane.f32.xlu0 %v3634
    %v3636 = vpop.xlane.xlu0 %3635
    %v3637 = vadd.f32 %v3025, %v3026
    %3638 = vadd.xlane.f32.xlu0 %v3637
    %v3639 = vpop.xlane.xlu0 %3638
    %v3640 = vadd.f32 %v3027, %v3028
    %3641 = vadd.xlane.f32.xlu0 %v3640
    %v3642 = vpop.xlane.xlu0 %3641
    %v3643 = vadd.f32 %v3029, %v3030
    %3644 = vadd.xlane.f32.xlu0 %v3643
    %v3645 = vpop.xlane.xlu0 %3644
    %v3646 = vadd.f32 %v3031, %v3032
    %3647 = vadd.xlane.f32.xlu0 %v3646
    %v3648 = vpop.xlane.xlu0 %3647
    %v3649 = vadd.f32 %v3033, %v3034
    %3650 = vadd.xlane.f32.xlu0 %v3649
    %v3651 = vpop.xlane.xlu0 %3650
    %v3652 = vadd.f32 %v3035, %v3036
    %3653 = vadd.xlane.f32.xlu0 %v3652
    %v3654 = vpop.xlane.xlu0 %3653
    %v3655 = vadd.f32 %v3037, %v3038
    %3656 = vadd.xlane.f32.xlu0 %v3655
    %v3657 = vpop.xlane.xlu0 %3656
    %v3658 = vadd.f32 %v3039, %v3040
    %3659 = vadd.xlane.f32.xlu0 %v3658
    %v3660 = vpop.xlane.xlu0 %3659
    %v3661 = vadd.f32 %v3041, %v3042
    %3662 = vadd.xlane.f32.xlu0 %v3661
    %v3663 = vpop.xlane.xlu0 %3662
    %v3664 = vadd.f32 %v3043, %v3044
    %3665 = vadd.xlane.f32.xlu0 %v3664
    %v3666 = vpop.xlane.xlu0 %3665
    %v3667 = vadd.f32 %v3045, %v3046
    %3668 = vadd.xlane.f32.xlu0 %v3667
    %v3669 = vpop.xlane.xlu0 %3668
    %v3670 = vadd.f32 %v3047, %v3048
    %3671 = vadd.xlane.f32.xlu0 %v3670
    %v3672 = vpop.xlane.xlu0 %3671
    %v3673 = vadd.f32 %v3049, %v3050
    %3674 = vadd.xlane.f32.xlu0 %v3673
    %v3675 = vpop.xlane.xlu0 %3674
    %v3676 = vadd.f32 %v3051, %v3052
    %3677 = vadd.xlane.f32.xlu0 %v3676
    %v3678 = vpop.xlane.xlu0 %3677
    %v3679 = vadd.f32 %v3053, %v3054
    %3680 = vadd.xlane.f32.xlu0 %v3679
    %v3681 = vpop.xlane.xlu0 %3680
    %v3682 = vadd.f32 %v3055, %v3056
    %3683 = vadd.xlane.f32.xlu0 %v3682
    %v3684 = vpop.xlane.xlu0 %3683
    %v3685 = vadd.f32 %v3057, %v3058
    %3686 = vadd.xlane.f32.xlu0 %v3685
    %v3687 = vpop.xlane.xlu0 %3686
    %v3688 = vadd.f32 %v3059, %v3060
    %3689 = vadd.xlane.f32.xlu0 %v3688
    %v3690 = vpop.xlane.xlu0 %3689
    %v3691 = vadd.f32 %v3061, %v3062
    %3692 = vadd.xlane.f32.xlu0 %v3691
    %v3693 = vpop.xlane.xlu0 %3692
    %v3694 = vadd.f32 %v3063, %v3064
    %3695 = vadd.xlane.f32.xlu0 %v3694
    %v3696 = vpop.xlane.xlu0 %3695
    %v3697 = vadd.f32 %v3065, %v3066
    %3698 = vadd.xlane.f32.xlu0 %v3697
    %v3699 = vpop.xlane.xlu0 %3698
    %v3700 = vadd.f32 %v3067, %v3068
    %3701 = vadd.xlane.f32.xlu0 %v3700
    %v3702 = vpop.xlane.xlu0 %3701
    %v3703 = vadd.f32 %v3069, %v3070
    %3704 = vadd.xlane.f32.xlu0 %v3703
    %v3705 = vpop.xlane.xlu0 %3704
    %v3706 = vadd.f32 %v3071, %v3072
    %3707 = vadd.xlane.f32.xlu0 %v3706
    %v3708 = vpop.xlane.xlu0 %3707
    %v3709 = vadd.f32 %v3073, %v3074
    %3710 = vadd.xlane.f32.xlu0 %v3709
    %v3711 = vpop.xlane.xlu0 %3710
    %v3712 = vadd.f32 %v3075, %v3076
    %3713 = vadd.xlane.f32.xlu0 %v3712
    %v3714 = vpop.xlane.xlu0 %3713
    %v3715 = vadd.f32 %v3077, %v3078
    %3716 = vadd.xlane.f32.xlu0 %v3715
    %v3717 = vpop.xlane.xlu0 %3716
    %v3718 = vadd.f32 %v3079, %v3080
    %3719 = vadd.xlane.f32.xlu0 %v3718
    %v3720 = vpop.xlane.xlu0 %3719
    %v3721 = vadd.f32 %v3081, %v3082
    %3722 = vadd.xlane.f32.xlu0 %v3721
    %v3723 = vpop.xlane.xlu0 %3722
    %v3724 = vadd.f32 %v3083, %v3084
    %3725 = vadd.xlane.f32.xlu0 %v3724
    %v3726 = vpop.xlane.xlu0 %3725
    %v3727 = vadd.f32 %v3085, %v3086
    %3728 = vadd.xlane.f32.xlu0 %v3727
    %v3729 = vpop.xlane.xlu0 %3728
    %v3730 = vadd.f32 %v3087, %v3088
    %3731 = vadd.xlane.f32.xlu0 %v3730
    %v3732 = vpop.xlane.xlu0 %3731
    %v3733 = vadd.f32 %v3089, %v3090
    %3734 = vadd.xlane.f32.xlu0 %v3733
    %v3735 = vpop.xlane.xlu0 %3734
    %v3736 = vadd.f32 %v3091, %v3092
    %3737 = vadd.xlane.f32.xlu0 %v3736
    %v3738 = vpop.xlane.xlu0 %3737
    %v3739 = vadd.f32 %v3093, %v3094
    %3740 = vadd.xlane.f32.xlu0 %v3739
    %v3741 = vpop.xlane.xlu0 %3740
    %v3742 = vadd.f32 %v3095, %v3096
    %3743 = vadd.xlane.f32.xlu0 %v3742
    %v3744 = vpop.xlane.xlu0 %3743
    %v3745 = vadd.f32 %v3097, %v3098
    %3746 = vadd.xlane.f32.xlu0 %v3745
    %v3747 = vpop.xlane.xlu0 %3746
    %v3748 = vadd.f32 %v3099, %v3100
    %3749 = vadd.xlane.f32.xlu0 %v3748
    %v3750 = vpop.xlane.xlu0 %3749
    %v3751 = vadd.f32 %v3101, %v3102
    %3752 = vadd.xlane.f32.xlu0 %v3751
    %v3753 = vpop.xlane.xlu0 %3752
    %v3754 = vadd.f32 %v3103, %v3104
    %3755 = vadd.xlane.f32.xlu0 %v3754
    %v3756 = vpop.xlane.xlu0 %3755
    %v3757 = vadd.f32 %v3105, %v3106
    %3758 = vadd.xlane.f32.xlu0 %v3757
    %v3759 = vpop.xlane.xlu0 %3758
    %v3760 = vadd.f32 %v3107, %v3108
    %3761 = vadd.xlane.f32.xlu0 %v3760
    %v3762 = vpop.xlane.xlu0 %3761
    %v3763 = vadd.f32 %v3109, %v3110
    %3764 = vadd.xlane.f32.xlu0 %v3763
    %v3765 = vpop.xlane.xlu0 %3764
    %v3766 = vadd.f32 %v3111, %v3112
    %3767 = vadd.xlane.f32.xlu0 %v3766
    %v3768 = vpop.xlane.xlu0 %3767
    %v3769 = vadd.f32 %v3113, %v3114
    %3770 = vadd.xlane.f32.xlu0 %v3769
    %v3771 = vpop.xlane.xlu0 %3770
    %v3772 = vadd.f32 %v3115, %v3116
    %3773 = vadd.xlane.f32.xlu0 %v3772
    %v3774 = vpop.xlane.xlu0 %3773
    %v3775 = vadd.f32 %v3117, %v3118
    %3776 = vadd.xlane.f32.xlu0 %v3775
    %v3777 = vpop.xlane.xlu0 %3776
    %v3778 = vadd.f32 %v3119, %v3120
    %3779 = vadd.xlane.f32.xlu0 %v3778
    %v3780 = vpop.xlane.xlu0 %3779
    %v3781 = vadd.f32 %v3121, %v3122
    %3782 = vadd.xlane.f32.xlu0 %v3781
    %v3783 = vpop.xlane.xlu0 %3782
    %v3784 = vadd.f32 %v3123, %v3124
    %3785 = vadd.xlane.f32.xlu0 %v3784
    %v3786 = vpop.xlane.xlu0 %3785
    %v3787 = vadd.f32 %v3125, %v3126
    %3788 = vadd.xlane.f32.xlu0 %v3787
    %v3789 = vpop.xlane.xlu0 %3788
    %v3790 = vadd.f32 %v3127, %v3128
    %3791 = vadd.xlane.f32.xlu0 %v3790
    %v3792 = vpop.xlane.xlu0 %3791
    %v3793 = vadd.f32 %v3129, %v3130
    %3794 = vadd.xlane.f32.xlu0 %v3793
    %v3795 = vpop.xlane.xlu0 %3794
    %v3796 = vadd.f32 %v3131, %v3132
    %3797 = vadd.xlane.f32.xlu0 %v3796
    %v3798 = vpop.xlane.xlu0 %3797
    %v3799 = vadd.f32 %v3133, %v3134
    %3800 = vadd.xlane.f32.xlu0 %v3799
    %v3801 = vpop.xlane.xlu0 %3800
    %v3802 = vadd.f32 %v3135, %v3136
    %3803 = vadd.xlane.f32.xlu0 %v3802
    %v3804 = vpop.xlane.xlu0 %3803
    %v3805 = vadd.f32 %v3137, %v3138
    %3806 = vadd.xlane.f32.xlu0 %v3805
    %v3807 = vpop.xlane.xlu0 %3806
    %v3808 = vadd.f32 %v3139, %v3140
    %3809 = vadd.xlane.f32.xlu0 %v3808
    %v3810 = vpop.xlane.xlu0 %3809
    %v3811 = vadd.f32 %v3141, %v3142
    %3812 = vadd.xlane.f32.xlu0 %v3811
    %v3813 = vpop.xlane.xlu0 %3812
    %v3814 = vadd.f32 %v3143, %v3144
    %3815 = vadd.xlane.f32.xlu0 %v3814
    %v3816 = vpop.xlane.xlu0 %3815
    %v3817 = vadd.f32 %v3145, %v3146
    %3818 = vadd.xlane.f32.xlu0 %v3817
    %v3819 = vpop.xlane.xlu0 %3818
    %v3820 = vadd.f32 %v3147, %v3148
    %3821 = vadd.xlane.f32.xlu0 %v3820
    %v3822 = vpop.xlane.xlu0 %3821
    %v3823 = vadd.f32 %v3149, %v3150
    %3824 = vadd.xlane.f32.xlu0 %v3823
    %v3825 = vpop.xlane.xlu0 %3824
    %v3826 = vadd.f32 %v3151, %v3152
    %3827 = vadd.xlane.f32.xlu0 %v3826
    %v3828 = vpop.xlane.xlu0 %3827
    %v3829 = vadd.f32 %v3153, %v3154
    %3830 = vadd.xlane.f32.xlu0 %v3829
    %v3831 = vpop.xlane.xlu0 %3830
    %v3832 = vadd.f32 %v3155, %v3156
    %3833 = vadd.xlane.f32.xlu0 %v3832
    %v3834 = vpop.xlane.xlu0 %3833
    %v3835 = vadd.f32 %v3157, %v3158
    %3836 = vadd.xlane.f32.xlu0 %v3835
    %v3837 = vpop.xlane.xlu0 %3836
    %v3838 = vadd.f32 %v3159, %v3160
    %3839 = vadd.xlane.f32.xlu0 %v3838
    %v3840 = vpop.xlane.xlu0 %3839
    %v3841 = vadd.f32 %v3161, %v3162
    %3842 = vadd.xlane.f32.xlu0 %v3841
    %v3843 = vpop.xlane.xlu0 %3842
    %v3844 = vadd.f32 %v3163, %v3164
    %3845 = vadd.xlane.f32.xlu0 %v3844
    %v3846 = vpop.xlane.xlu0 %3845
    %v3847 = vadd.f32 %v3165, %v3166
    %3848 = vadd.xlane.f32.xlu0 %v3847
    %v3849 = vpop.xlane.xlu0 %3848
    %v3850 = vadd.f32 %v3167, %v3168
    %3851 = vadd.xlane.f32.xlu0 %v3850
    %v3852 = vpop.xlane.xlu0 %3851
    %v3853 = vadd.f32 %v3169, %v3170
    %3854 = vadd.xlane.f32.xlu0 %v3853
    %v3855 = vpop.xlane.xlu0 %3854
    %v3856 = vadd.f32 %v3171, %v3172
    %3857 = vadd.xlane.f32.xlu0 %v3856
    %v3858 = vpop.xlane.xlu0 %3857
    %v3859 = vadd.f32 %v3173, %v3174
    %3860 = vadd.xlane.f32.xlu0 %v3859
    %v3861 = vpop.xlane.xlu0 %3860
    %v3862 = vadd.f32 %v3175, %v3176
    %3863 = vadd.xlane.f32.xlu0 %v3862
    %v3864 = vpop.xlane.xlu0 %3863
    %v3865 = vadd.f32 %v3177, %v3178
    %3866 = vadd.xlane.f32.xlu0 %v3865
    %v3867 = vpop.xlane.xlu0 %3866
    %v3868 = vadd.f32 %v3179, %v3180
    %3869 = vadd.xlane.f32.xlu0 %v3868
    %v3870 = vpop.xlane.xlu0 %3869
    %v3871 = vadd.f32 %v3181, %v3182
    %3872 = vadd.xlane.f32.xlu0 %v3871
    %v3873 = vpop.xlane.xlu0 %3872
    %v3874 = vadd.f32 %v3183, %v3184
    %3875 = vadd.xlane.f32.xlu0 %v3874
    %v3876 = vpop.xlane.xlu0 %3875
    %v3877 = vadd.f32 %v3185, %v3186
    %3878 = vadd.xlane.f32.xlu0 %v3877
    %v3879 = vpop.xlane.xlu0 %3878
    %v3880 = vadd.f32 %v3187, %v3188
    %3881 = vadd.xlane.f32.xlu0 %v3880
    %v3882 = vpop.xlane.xlu0 %3881
    %v3883 = vadd.f32 %v3189, %v3190
    %3884 = vadd.xlane.f32.xlu0 %v3883
    %v3885 = vpop.xlane.xlu0 %3884
    %v3886 = vadd.f32 %v3191, %v3192
    %3887 = vadd.xlane.f32.xlu0 %v3886
    %v3888 = vpop.xlane.xlu0 %3887
    %v3889 = vadd.f32 %v3193, %v3194
    %3890 = vadd.xlane.f32.xlu0 %v3889
    %v3891 = vpop.xlane.xlu0 %3890
    %v3892 = vadd.f32 %v3195, %v3196
    %3893 = vadd.xlane.f32.xlu0 %v3892
    %v3894 = vpop.xlane.xlu0 %3893
    %v3895 = vadd.f32 %v3197, %v3198
    %3896 = vadd.xlane.f32.xlu0 %v3895
    %v3897 = vpop.xlane.xlu0 %3896
    %v3898 = vadd.f32 %v3199, %v3200
    %3899 = vadd.xlane.f32.xlu0 %v3898
    %v3900 = vpop.xlane.xlu0 %3899
    %v3901 = vadd.f32 %v3201, %v3202
    %3902 = vadd.xlane.f32.xlu0 %v3901
    %v3903 = vpop.xlane.xlu0 %3902
    %v3904 = vadd.f32 %v3203, %v3204
    %3905 = vadd.xlane.f32.xlu0 %v3904
    %v3906 = vpop.xlane.xlu0 %3905
    %v3907 = vadd.f32 %v3205, %v3206
    %3908 = vadd.xlane.f32.xlu0 %v3907
    %v3909 = vpop.xlane.xlu0 %3908
    %v3910 = vadd.f32 %v3207, %v3208
    %3911 = vadd.xlane.f32.xlu0 %v3910
    %v3912 = vpop.xlane.xlu0 %3911
    %v3913 = vadd.f32 %v3209, %v3210
    %3914 = vadd.xlane.f32.xlu0 %v3913
    %v3915 = vpop.xlane.xlu0 %3914
    %v3916 = vadd.f32 %v3211, %v3212
    %3917 = vadd.xlane.f32.xlu0 %v3916
    %v3918 = vpop.xlane.xlu0 %3917
    %v3919 = vadd.f32 %v3213, %v3214
    %3920 = vadd.xlane.f32.xlu0 %v3919
    %v3921 = vpop.xlane.xlu0 %3920
    %v3922 = vadd.f32 %v3215, %v3216
    %3923 = vadd.xlane.f32.xlu0 %v3922
    %v3924 = vpop.xlane.xlu0 %3923
    %v3925 = vadd.f32 %v3217, %v3218
    %3926 = vadd.xlane.f32.xlu0 %v3925
    %v3927 = vpop.xlane.xlu0 %3926
    %v3928 = vadd.f32 %v3219, %v3220
    %3929 = vadd.xlane.f32.xlu0 %v3928
    %v3930 = vpop.xlane.xlu0 %3929
    %v3931 = vadd.f32 %v3221, %v3222
    %3932 = vadd.xlane.f32.xlu0 %v3931
    %v3933 = vpop.xlane.xlu0 %3932
    %v3934 = vadd.f32 %v3223, %v3224
    %3935 = vadd.xlane.f32.xlu0 %v3934
    %v3936 = vpop.xlane.xlu0 %3935
    %v3937 = vadd.f32 %v3225, %v3226
    %3938 = vadd.xlane.f32.xlu0 %v3937
    %v3939 = vpop.xlane.xlu0 %3938
    %v3940 = vadd.f32 %v3227, %v3228
    %3941 = vadd.xlane.f32.xlu0 %v3940
    %v3942 = vpop.xlane.xlu0 %3941
    %v3943 = vadd.f32 %v3229, %v3230
    %3944 = vadd.xlane.f32.xlu0 %v3943
    %v3945 = vpop.xlane.xlu0 %3944
    %v3946 = vadd.f32 %v3231, %v3232
    %3947 = vadd.xlane.f32.xlu0 %v3946
    %v3948 = vpop.xlane.xlu0 %3947
    %v3949 = vadd.f32 %v3233, %v3234
    %3950 = vadd.xlane.f32.xlu0 %v3949
    %v3951 = vpop.xlane.xlu0 %3950
    %v3952 = vadd.f32 %v3235, %v3236
    %3953 = vadd.xlane.f32.xlu0 %v3952
    %v3954 = vpop.xlane.xlu0 %3953
    %v3955 = vadd.f32 %v3237, %v3238
    %3956 = vadd.xlane.f32.xlu0 %v3955
    %v3957 = vpop.xlane.xlu0 %3956
    %v3958 = vadd.f32 %v3239, %v3240
    %3959 = vadd.xlane.f32.xlu0 %v3958
    %v3960 = vpop.xlane.xlu0 %3959
    %v3961 = vadd.f32 %v3241, %v3242
    %3962 = vadd.xlane.f32.xlu0 %v3961
    %v3963 = vpop.xlane.xlu0 %3962
    %v3964 = vadd.f32 %v3243, %v3244
    %3965 = vadd.xlane.f32.xlu0 %v3964
    %v3966 = vpop.xlane.xlu0 %3965
    %v3967 = vadd.f32 %v3245, %v3246
    %3968 = vadd.xlane.f32.xlu0 %v3967
    %v3969 = vpop.xlane.xlu0 %3968
    %v3970 = vadd.f32 %v3247, %v3248
    %3971 = vadd.xlane.f32.xlu0 %v3970
    %v3972 = vpop.xlane.xlu0 %3971
    %v3973 = vadd.f32 %v3249, %v3250
    %3974 = vadd.xlane.f32.xlu0 %v3973
    %v3975 = vpop.xlane.xlu0 %3974
    %v3976 = vadd.f32 %v3251, %v3252
    %3977 = vadd.xlane.f32.xlu0 %v3976
    %v3978 = vpop.xlane.xlu0 %3977
    %v3979 = vadd.f32 %v3253, %v3254
    %3980 = vadd.xlane.f32.xlu0 %v3979
    %v3981 = vpop.xlane.xlu0 %3980
    %v3982 = vadd.f32 %v3255, %v3256
    %3983 = vadd.xlane.f32.xlu0 %v3982
    %v3984 = vpop.xlane.xlu0 %3983
    %v3985 = vadd.f32 %v3257, %v3258
    %3986 = vadd.xlane.f32.xlu0 %v3985
    %v3987 = vpop.xlane.xlu0 %3986
    %v3988 = vadd.f32 %v3259, %v3260
    %3989 = vadd.xlane.f32.xlu0 %v3988
    %v3990 = vpop.xlane.xlu0 %3989
    %v3991 = vadd.f32 %v3261, %v3262
    %3992 = vadd.xlane.f32.xlu0 %v3991
    %v3993 = vpop.xlane.xlu0 %3992
    %v3994 = vadd.f32 %v3263, %v3264
    %3995 = vadd.xlane.f32.xlu0 %v3994
    %v3996 = vpop.xlane.xlu0 %3995
    %v3997 = vadd.f32 %v3265, %v3266
    %3998 = vadd.xlane.f32.xlu0 %v3997
    %v3999 = vpop.xlane.xlu0 %3998
    %v4000 = vadd.f32 %v3267, %v3268
    %4001 = vadd.xlane.f32.xlu0 %v4000
    %v4002 = vpop.xlane.xlu0 %4001
    %v4003 = vadd.f32 %v3269, %v3270
    %4004 = vadd.xlane.f32.xlu0 %v4003
    %v4005 = vpop.xlane.xlu0 %4004
    %v4006 = vadd.f32 %v3271, %v3272
    %4007 = vadd.xlane.f32.xlu0 %v4006
    %v4008 = vpop.xlane.xlu0 %4007
    %v4009 = vadd.f32 %v3273, %v3274
    %4010 = vadd.xlane.f32.xlu0 %v4009
    %v4011 = vpop.xlane.xlu0 %4010
    %v4012 = vadd.f32 %v3275, %v3276
    %4013 = vadd.xlane.f32.xlu0 %v4012
    %v4014 = vpop.xlane.xlu0 %4013
    %v4015 = vadd.f32 %v3277, %v3278
    %4016 = vadd.xlane.f32.xlu0 %v4015
    %v4017 = vpop.xlane.xlu0 %4016
    %v4018 = vadd.f32 %v3279, %v3280
    %4019 = vadd.xlane.f32.xlu0 %v4018
    %v4020 = vpop.xlane.xlu0 %4019
    %v4021 = vadd.f32 %v3281, %v3282
    %4022 = vadd.xlane.f32.xlu0 %v4021
    %v4023 = vpop.xlane.xlu0 %4022
    %v4024 = vadd.f32 %v3283, %v3284
    %4025 = vadd.xlane.f32.xlu0 %v4024
    %v4026 = vpop.xlane.xlu0 %4025
    %v4027 = vadd.f32 %v3285, %v3286
    %4028 = vadd.xlane.f32.xlu0 %v4027
    %v4029 = vpop.xlane.xlu0 %4028
    %v4030 = vadd.f32 %v3287, %v3288
    %4031 = vadd.xlane.f32.xlu0 %v4030
    %v4032 = vpop.xlane.xlu0 %4031
    %v4033 = vadd.f32 %v3289, %v3290
    %4034 = vadd.xlane.f32.xlu0 %v4033
    %v4035 = vpop.xlane.xlu0 %4034
    %v4036 = vadd.f32 %v3291, %v3292
    %4037 = vadd.xlane.f32.xlu0 %v4036
    %v4038 = vpop.xlane.xlu0 %4037
    %v4039 = vadd.f32 %v3293, %v3294
    %4040 = vadd.xlane.f32.xlu0 %v4039
    %v4041 = vpop.xlane.xlu0 %4040
    %v4042 = vadd.f32 %v3295, %v3296
    %4043 = vadd.xlane.f32.xlu0 %v4042
    %v4044 = vpop.xlane.xlu0 %4043
    %v4045 = vadd.f32 %v3297, %v3298
    %4046 = vadd.xlane.f32.xlu0 %v4045
    %v4047 = vpop.xlane.xlu0 %4046
    %v4048 = vadd.f32 %v3299, %v3300
    %4049 = vadd.xlane.f32.xlu0 %v4048
    %v4050 = vpop.xlane.xlu0 %4049
    %v4051 = vadd.f32 %v3301, %v3302
    %4052 = vadd.xlane.f32.xlu0 %v4051
    %v4053 = vpop.xlane.xlu0 %4052
    %v4054 = vadd.f32 %v3303, %v3304
    %4055 = vadd.xlane.f32.xlu0 %v4054
    %v4056 = vpop.xlane.xlu0 %4055
    %v4057 = vadd.f32 %v3305, %v3306
    %4058 = vadd.xlane.f32.xlu0 %v4057
    %v4059 = vpop.xlane.xlu0 %4058
    %v4060 = vadd.f32 %v3307, %v3308
    %4061 = vadd.xlane.f32.xlu0 %v4060
    %v4062 = vpop.xlane.xlu0 %4061
    %v4063 = vadd.f32 %v3309, %v3310
    %4064 = vadd.xlane.f32.xlu0 %v4063
    %v4065 = vpop.xlane.xlu0 %4064
    %v4066 = vadd.f32 %v3311, %v3312
    %4067 = vadd.xlane.f32.xlu0 %v4066
    %v4068 = vpop.xlane.xlu0 %4067
    %v4069 = vadd.f32 %v3313, %v3314
    %4070 = vadd.xlane.f32.xlu0 %v4069
    %v4071 = vpop.xlane.xlu0 %4070
    %v4072 = vadd.f32 %v3315, %v3316
    %4073 = vadd.xlane.f32.xlu0 %v4072
    %v4074 = vpop.xlane.xlu0 %4073
    %v4075 = vadd.f32 %v3317, %v3318
    %4076 = vadd.xlane.f32.xlu0 %v4075
    %v4077 = vpop.xlane.xlu0 %4076
    %v4078 = vadd.f32 %v3319, %v3320
    %4079 = vadd.xlane.f32.xlu0 %v4078
    %v4080 = vpop.xlane.xlu0 %4079
    %v4081 = vadd.f32 %v3321, %v3322
    %4082 = vadd.xlane.f32.xlu0 %v4081
    %v4083 = vpop.xlane.xlu0 %4082
    %v4084 = vadd.f32 %v3323, %v3324
    %4085 = vadd.xlane.f32.xlu0 %v4084
    %v4086 = vpop.xlane.xlu0 %4085
    %v4087 = vadd.f32 %v3325, %v3326
    %4088 = vadd.xlane.f32.xlu0 %v4087
    %v4089 = vpop.xlane.xlu0 %4088
    %v4090 = vadd.f32 %v3327, %v3328
    %4091 = vadd.xlane.f32.xlu0 %v4090
    %v4092 = vpop.xlane.xlu0 %4091
    %v4093 = vadd.f32 %v3329, %v3330
    %4094 = vadd.xlane.f32.xlu0 %v4093
    %v4095 = vpop.xlane.xlu0 %4094
    %v4096 = vadd.f32 %v3331, %v3332
    %4097 = vadd.xlane.f32.xlu0 %v4096
    %v4098 = vpop.xlane.xlu0 %4097
    %v4099 = vadd.f32 %v3333, %v3334
    %4100 = vadd.xlane.f32.xlu0 %v4099
    %v4101 = vpop.xlane.xlu0 %4100
    %v4102 = vadd.f32 %v3335, %v3336
    %4103 = vadd.xlane.f32.xlu0 %v4102
    %v4104 = vpop.xlane.xlu0 %4103
    %v4361 = vlaneseq
    %v4362 = vand.u32 %v4361, 127
    %v4363 = vlaneseq
    %v4364 = vshrl.u32 %v4363, 7
    %v4365 = vsub.s32 %v4362, %v4364
    %v4366 = vrot.slane %v3339, %v4365
    %v4367 = vadd.s32 %v4362, 4294967288
    %v4368 = vlaneseq
    %v4369 = vshrl.u32 %v4368, 7
    %v4370 = vsub.s32 %v4367, %v4369
    %v4371 = vrot.slane %v3342, %v4370
    %vm4372 = vcmask 130112
    %v4373 = vsel %vm4372, %v4371, %v4366
    %v4374 = vadd.s32 %v4362, 4294967280
    %v4375 = vlaneseq
    %v4376 = vshrl.u32 %v4375, 7
    %v4377 = vsub.s32 %v4374, %v4376
    %v4378 = vrot.slane %v3345, %v4377
    %vm4379 = vcmask 195712
    %v4380 = vsel %vm4379, %v4378, %v4373
    %v4381 = vadd.s32 %v4362, 4294967272
    %v4382 = vlaneseq
    %v4383 = vshrl.u32 %v4382, 7
    %v4384 = vsub.s32 %v4381, %v4383
    %v4385 = vrot.slane %v3348, %v4384
    %vm4386 = vcmask 261312
    %v4387 = vsel %vm4386, %v4385, %v4380
    %v4388 = vadd.s32 %v4362, 4294967264
    %v4389 = vlaneseq
    %v4390 = vshrl.u32 %v4389, 7
    %v4391 = vsub.s32 %v4388, %v4390
    %v4392 = vrot.slane %v3351, %v4391
    %vm4393 = vcmask 326912
    %v4394 = vsel %vm4393, %v4392, %v4387
    %v4395 = vadd.s32 %v4362, 4294967256
    %v4396 = vlaneseq
    %v4397 = vshrl.u32 %v4396, 7
    %v4398 = vsub.s32 %v4395, %v4397
    %v4399 = vrot.slane %v3354, %v4398
    %vm4400 = vcmask 392512
    %v4401 = vsel %vm4400, %v4399, %v4394
    %v4402 = vadd.s32 %v4362, 4294967248
    %v4403 = vlaneseq
    %v4404 = vshrl.u32 %v4403, 7
    %v4405 = vsub.s32 %v4402, %v4404
    %v4406 = vrot.slane %v3357, %v4405
    %vm4407 = vcmask 458112
    %v4408 = vsel %vm4407, %v4406, %v4401
    %v4409 = vadd.s32 %v4362, 4294967240
    %v4410 = vlaneseq
    %v4411 = vshrl.u32 %v4410, 7
    %v4412 = vsub.s32 %v4409, %v4411
    %v4413 = vrot.slane %v3360, %v4412
    %vm4414 = vcmask 523712
    %v4415 = vsel %vm4414, %v4413, %v4408
    %v4416 = vadd.s32 %v4362, 4294967232
    %v4417 = vlaneseq
    %v4418 = vshrl.u32 %v4417, 7
    %v4419 = vsub.s32 %v4416, %v4418
    %v4420 = vrot.slane %v3363, %v4419
    %vm4421 = vcmask 589312
    %v4422 = vsel %vm4421, %v4420, %v4415
    %v4423 = vadd.s32 %v4362, 4294967224
    %v4424 = vlaneseq
    %v4425 = vshrl.u32 %v4424, 7
    %v4426 = vsub.s32 %v4423, %v4425
    %v4427 = vrot.slane %v3366, %v4426
    %vm4428 = vcmask 654912
    %v4429 = vsel %vm4428, %v4427, %v4422
    %v4430 = vadd.s32 %v4362, 4294967216
    %v4431 = vlaneseq
    %v4432 = vshrl.u32 %v4431, 7
    %v4433 = vsub.s32 %v4430, %v4432
    %v4434 = vrot.slane %v3369, %v4433
    %vm4435 = vcmask 720512
    %v4436 = vsel %vm4435, %v4434, %v4429
    %v4437 = vadd.s32 %v4362, 4294967208
    %v4438 = vlaneseq
    %v4439 = vshrl.u32 %v4438, 7
    %v4440 = vsub.s32 %v4437, %v4439
    %v4441 = vrot.slane %v3372, %v4440
    %vm4442 = vcmask 786112
    %v4443 = vsel %vm4442, %v4441, %v4436
    %v4444 = vadd.s32 %v4362, 4294967200
    %v4445 = vlaneseq
    %v4446 = vshrl.u32 %v4445, 7
    %v4447 = vsub.s32 %v4444, %v4446
    %v4448 = vrot.slane %v3375, %v4447
    %vm4449 = vcmask 851712
    %v4450 = vsel %vm4449, %v4448, %v4443
    %v4451 = vadd.s32 %v4362, 4294967192
    %v4452 = vlaneseq
    %v4453 = vshrl.u32 %v4452, 7
    %v4454 = vsub.s32 %v4451, %v4453
    %v4455 = vrot.slane %v3378, %v4454
    %vm4456 = vcmask 917312
    %v4457 = vsel %vm4456, %v4455, %v4450
    %v4458 = vadd.s32 %v4362, 4294967184
    %v4459 = vlaneseq
    %v4460 = vshrl.u32 %v4459, 7
    %v4461 = vsub.s32 %v4458, %v4460
    %v4462 = vrot.slane %v3381, %v4461
    %vm4463 = vcmask 982912
    %v4464 = vsel %vm4463, %v4462, %v4457
    %v4465 = vadd.s32 %v4362, 4294967176
    %v4466 = vlaneseq
    %v4467 = vshrl.u32 %v4466, 7
    %v4468 = vsub.s32 %v4465, %v4467
    %v4469 = vrot.slane %v3384, %v4468
    %vm4470 = vcmask 1048512
    %v4471 = vsel %vm4470, %v4469, %v4464
    %v4472 = vlaneseq
    %v4473 = vshrl.u32 %v4472, 7
    %v4474 = vsub.s32 %v4362, %v4473
    %v4475 = vrot.slane %v3387, %v4474
    %v4476 = vlaneseq
    %v4477 = vshrl.u32 %v4476, 7
    %v4478 = vsub.s32 %v4367, %v4477
    %v4479 = vrot.slane %v3390, %v4478
    %v4480 = vsel %vm4372, %v4479, %v4475
    %v4481 = vlaneseq
    %v4482 = vshrl.u32 %v4481, 7
    %v4483 = vsub.s32 %v4374, %v4482
    %v4484 = vrot.slane %v3393, %v4483
    %v4485 = vsel %vm4379, %v4484, %v4480
    %v4486 = vlaneseq
    %v4487 = vshrl.u32 %v4486, 7
    %v4488 = vsub.s32 %v4381, %v4487
    %v4489 = vrot.slane %v3396, %v4488
    %v4490 = vsel %vm4386, %v4489, %v4485
    %v4491 = vlaneseq
    %v4492 = vshrl.u32 %v4491, 7
    %v4493 = vsub.s32 %v4388, %v4492
    %v4494 = vrot.slane %v3399, %v4493
    %v4495 = vsel %vm4393, %v4494, %v4490
    %v4496 = vlaneseq
    %v4497 = vshrl.u32 %v4496, 7
    %v4498 = vsub.s32 %v4395, %v4497
    %v4499 = vrot.slane %v3402, %v4498
    %v4500 = vsel %vm4400, %v4499, %v4495
    %v4501 = vlaneseq
    %v4502 = vshrl.u32 %v4501, 7
    %v4503 = vsub.s32 %v4402, %v4502
    %v4504 = vrot.slane %v3405, %v4503
    %v4505 = vsel %vm4407, %v4504, %v4500
    %v4506 = vlaneseq
    %v4507 = vshrl.u32 %v4506, 7
    %v4508 = vsub.s32 %v4409, %v4507
    %v4509 = vrot.slane %v3408, %v4508
    %v4510 = vsel %vm4414, %v4509, %v4505
    %v4511 = vlaneseq
    %v4512 = vshrl.u32 %v4511, 7
    %v4513 = vsub.s32 %v4416, %v4512
    %v4514 = vrot.slane %v3411, %v4513
    %v4515 = vsel %vm4421, %v4514, %v4510
    %v4516 = vlaneseq
    %v4517 = vshrl.u32 %v4516, 7
    %v4518 = vsub.s32 %v4423, %v4517
    %v4519 = vrot.slane %v3414, %v4518
    %v4520 = vsel %vm4428, %v4519, %v4515
    %v4521 = vlaneseq
    %v4522 = vshrl.u32 %v4521, 7
    %v4523 = vsub.s32 %v4430, %v4522
    %v4524 = vrot.slane %v3417, %v4523
    %v4525 = vsel %vm4435, %v4524, %v4520
    %v4526 = vlaneseq
    %v4527 = vshrl.u32 %v4526, 7
    %v4528 = vsub.s32 %v4437, %v4527
    %v4529 = vrot.slane %v3420, %v4528
    %v4530 = vsel %vm4442, %v4529, %v4525
    %v4531 = vlaneseq
    %v4532 = vshrl.u32 %v4531, 7
    %v4533 = vsub.s32 %v4444, %v4532
    %v4534 = vrot.slane %v3423, %v4533
    %v4535 = vsel %vm4449, %v4534, %v4530
    %v4536 = vlaneseq
    %v4537 = vshrl.u32 %v4536, 7
    %v4538 = vsub.s32 %v4451, %v4537
    %v4539 = vrot.slane %v3426, %v4538
    %v4540 = vsel %vm4456, %v4539, %v4535
    %v4541 = vlaneseq
    %v4542 = vshrl.u32 %v4541, 7
    %v4543 = vsub.s32 %v4458, %v4542
    %v4544 = vrot.slane %v3429, %v4543
    %v4545 = vsel %vm4463, %v4544, %v4540
    %v4546 = vlaneseq
    %v4547 = vshrl.u32 %v4546, 7
    %v4548 = vsub.s32 %v4465, %v4547
    %v4549 = vrot.slane %v3432, %v4548
    %v4550 = vsel %vm4470, %v4549, %v4545
    %v4551 = vlaneseq
    %v4552 = vshrl.u32 %v4551, 7
    %v4553 = vsub.s32 %v4362, %v4552
    %v4554 = vrot.slane %v3435, %v4553
    %v4555 = vlaneseq
    %v4556 = vshrl.u32 %v4555, 7
    %v4557 = vsub.s32 %v4367, %v4556
    %v4558 = vrot.slane %v3438, %v4557
    %v4559 = vsel %vm4372, %v4558, %v4554
    %v4560 = vlaneseq
    %v4561 = vshrl.u32 %v4560, 7
    %v4562 = vsub.s32 %v4374, %v4561
    %v4563 = vrot.slane %v3441, %v4562
    %v4564 = vsel %vm4379, %v4563, %v4559
    %v4565 = vlaneseq
    %v4566 = vshrl.u32 %v4565, 7
    %v4567 = vsub.s32 %v4381, %v4566
    %v4568 = vrot.slane %v3444, %v4567
    %v4569 = vsel %vm4386, %v4568, %v4564
    %v4570 = vlaneseq
    %v4571 = vshrl.u32 %v4570, 7
    %v4572 = vsub.s32 %v4388, %v4571
    %v4573 = vrot.slane %v3447, %v4572
    %v4574 = vsel %vm4393, %v4573, %v4569
    %v4575 = vlaneseq
    %v4576 = vshrl.u32 %v4575, 7
    %v4577 = vsub.s32 %v4395, %v4576
    %v4578 = vrot.slane %v3450, %v4577
    %v4579 = vsel %vm4400, %v4578, %v4574
    %v4580 = vlaneseq
    %v4581 = vshrl.u32 %v4580, 7
    %v4582 = vsub.s32 %v4402, %v4581
    %v4583 = vrot.slane %v3453, %v4582
    %v4584 = vsel %vm4407, %v4583, %v4579
    %v4585 = vlaneseq
    %v4586 = vshrl.u32 %v4585, 7
    %v4587 = vsub.s32 %v4409, %v4586
    %v4588 = vrot.slane %v3456, %v4587
    %v4589 = vsel %vm4414, %v4588, %v4584
    %v4590 = vlaneseq
    %v4591 = vshrl.u32 %v4590, 7
    %v4592 = vsub.s32 %v4416, %v4591
    %v4593 = vrot.slane %v3459, %v4592
    %v4594 = vsel %vm4421, %v4593, %v4589
    %v4595 = vlaneseq
    %v4596 = vshrl.u32 %v4595, 7
    %v4597 = vsub.s32 %v4423, %v4596
    %v4598 = vrot.slane %v3462, %v4597
    %v4599 = vsel %vm4428, %v4598, %v4594
    %v4600 = vlaneseq
    %v4601 = vshrl.u32 %v4600, 7
    %v4602 = vsub.s32 %v4430, %v4601
    %v4603 = vrot.slane %v3465, %v4602
    %v4604 = vsel %vm4435, %v4603, %v4599
    %v4605 = vlaneseq
    %v4606 = vshrl.u32 %v4605, 7
    %v4607 = vsub.s32 %v4437, %v4606
    %v4608 = vrot.slane %v3468, %v4607
    %v4609 = vsel %vm4442, %v4608, %v4604
    %v4610 = vlaneseq
    %v4611 = vshrl.u32 %v4610, 7
    %v4612 = vsub.s32 %v4444, %v4611
    %v4613 = vrot.slane %v3471, %v4612
    %v4614 = vsel %vm4449, %v4613, %v4609
    %v4615 = vlaneseq
    %v4616 = vshrl.u32 %v4615, 7
    %v4617 = vsub.s32 %v4451, %v4616
    %v4618 = vrot.slane %v3474, %v4617
    %v4619 = vsel %vm4456, %v4618, %v4614
    %v4620 = vlaneseq
    %v4621 = vshrl.u32 %v4620, 7
    %v4622 = vsub.s32 %v4458, %v4621
    %v4623 = vrot.slane %v3477, %v4622
    %v4624 = vsel %vm4463, %v4623, %v4619
    %v4625 = vlaneseq
    %v4626 = vshrl.u32 %v4625, 7
    %v4627 = vsub.s32 %v4465, %v4626
    %v4628 = vrot.slane %v3480, %v4627
    %v4629 = vsel %vm4470, %v4628, %v4624
    %v4630 = vlaneseq
    %v4631 = vshrl.u32 %v4630, 7
    %v4632 = vsub.s32 %v4362, %v4631
    %v4633 = vrot.slane %v3483, %v4632
    %v4634 = vlaneseq
    %v4635 = vshrl.u32 %v4634, 7
    %v4636 = vsub.s32 %v4367, %v4635
    %v4637 = vrot.slane %v3486, %v4636
    %v4638 = vsel %vm4372, %v4637, %v4633
    %v4639 = vlaneseq
    %v4640 = vshrl.u32 %v4639, 7
    %v4641 = vsub.s32 %v4374, %v4640
    %v4642 = vrot.slane %v3489, %v4641
    %v4643 = vsel %vm4379, %v4642, %v4638
    %v4644 = vlaneseq
    %v4645 = vshrl.u32 %v4644, 7
    %v4646 = vsub.s32 %v4381, %v4645
    %v4647 = vrot.slane %v3492, %v4646
    %v4648 = vsel %vm4386, %v4647, %v4643
    %v4649 = vlaneseq
    %v4650 = vshrl.u32 %v4649, 7
    %v4651 = vsub.s32 %v4388, %v4650
    %v4652 = vrot.slane %v3495, %v4651
    %v4653 = vsel %vm4393, %v4652, %v4648
    %v4654 = vlaneseq
    %v4655 = vshrl.u32 %v4654, 7
    %v4656 = vsub.s32 %v4395, %v4655
    %v4657 = vrot.slane %v3498, %v4656
    %v4658 = vsel %vm4400, %v4657, %v4653
    %v4659 = vlaneseq
    %v4660 = vshrl.u32 %v4659, 7
    %v4661 = vsub.s32 %v4402, %v4660
    %v4662 = vrot.slane %v3501, %v4661
    %v4663 = vsel %vm4407, %v4662, %v4658
    %v4664 = vlaneseq
    %v4665 = vshrl.u32 %v4664, 7
    %v4666 = vsub.s32 %v4409, %v4665
    %v4667 = vrot.slane %v3504, %v4666
    %v4668 = vsel %vm4414, %v4667, %v4663
    %v4669 = vlaneseq
    %v4670 = vshrl.u32 %v4669, 7
    %v4671 = vsub.s32 %v4416, %v4670
    %v4672 = vrot.slane %v3507, %v4671
    %v4673 = vsel %vm4421, %v4672, %v4668
    %v4674 = vlaneseq
    %v4675 = vshrl.u32 %v4674, 7
    %v4676 = vsub.s32 %v4423, %v4675
    %v4677 = vrot.slane %v3510, %v4676
    %v4678 = vsel %vm4428, %v4677, %v4673
    %v4679 = vlaneseq
    %v4680 = vshrl.u32 %v4679, 7
    %v4681 = vsub.s32 %v4430, %v4680
    %v4682 = vrot.slane %v3513, %v4681
    %v4683 = vsel %vm4435, %v4682, %v4678
    %v4684 = vlaneseq
    %v4685 = vshrl.u32 %v4684, 7
    %v4686 = vsub.s32 %v4437, %v4685
    %v4687 = vrot.slane %v3516, %v4686
    %v4688 = vsel %vm4442, %v4687, %v4683
    %v4689 = vlaneseq
    %v4690 = vshrl.u32 %v4689, 7
    %v4691 = vsub.s32 %v4444, %v4690
    %v4692 = vrot.slane %v3519, %v4691
    %v4693 = vsel %vm4449, %v4692, %v4688
    %v4694 = vlaneseq
    %v4695 = vshrl.u32 %v4694, 7
    %v4696 = vsub.s32 %v4451, %v4695
    %v4697 = vrot.slane %v3522, %v4696
    %v4698 = vsel %vm4456, %v4697, %v4693
    %v4699 = vlaneseq
    %v4700 = vshrl.u32 %v4699, 7
    %v4701 = vsub.s32 %v4458, %v4700
    %v4702 = vrot.slane %v3525, %v4701
    %v4703 = vsel %vm4463, %v4702, %v4698
    %v4704 = vlaneseq
    %v4705 = vshrl.u32 %v4704, 7
    %v4706 = vsub.s32 %v4465, %v4705
    %v4707 = vrot.slane %v3528, %v4706
    %v4708 = vsel %vm4470, %v4707, %v4703
    %v4709 = vlaneseq
    %v4710 = vshrl.u32 %v4709, 7
    %v4711 = vsub.s32 %v4362, %v4710
    %v4712 = vrot.slane %v3531, %v4711
    %v4713 = vlaneseq
    %v4714 = vshrl.u32 %v4713, 7
    %v4715 = vsub.s32 %v4367, %v4714
    %v4716 = vrot.slane %v3534, %v4715
    %v4717 = vsel %vm4372, %v4716, %v4712
    %v4718 = vlaneseq
    %v4719 = vshrl.u32 %v4718, 7
    %v4720 = vsub.s32 %v4374, %v4719
    %v4721 = vrot.slane %v3537, %v4720
    %v4722 = vsel %vm4379, %v4721, %v4717
    %v4723 = vlaneseq
    %v4724 = vshrl.u32 %v4723, 7
    %v4725 = vsub.s32 %v4381, %v4724
    %v4726 = vrot.slane %v3540, %v4725
    %v4727 = vsel %vm4386, %v4726, %v4722
    %v4728 = vlaneseq
    %v4729 = vshrl.u32 %v4728, 7
    %v4730 = vsub.s32 %v4388, %v4729
    %v4731 = vrot.slane %v3543, %v4730
    %v4732 = vsel %vm4393, %v4731, %v4727
    %v4733 = vlaneseq
    %v4734 = vshrl.u32 %v4733, 7
    %v4735 = vsub.s32 %v4395, %v4734
    %v4736 = vrot.slane %v3546, %v4735
    %v4737 = vsel %vm4400, %v4736, %v4732
    %v4738 = vlaneseq
    %v4739 = vshrl.u32 %v4738, 7
    %v4740 = vsub.s32 %v4402, %v4739
    %v4741 = vrot.slane %v3549, %v4740
    %v4742 = vsel %vm4407, %v4741, %v4737
    %v4743 = vlaneseq
    %v4744 = vshrl.u32 %v4743, 7
    %v4745 = vsub.s32 %v4409, %v4744
    %v4746 = vrot.slane %v3552, %v4745
    %v4747 = vsel %vm4414, %v4746, %v4742
    %v4748 = vlaneseq
    %v4749 = vshrl.u32 %v4748, 7
    %v4750 = vsub.s32 %v4416, %v4749
    %v4751 = vrot.slane %v3555, %v4750
    %v4752 = vsel %vm4421, %v4751, %v4747
    %v4753 = vlaneseq
    %v4754 = vshrl.u32 %v4753, 7
    %v4755 = vsub.s32 %v4423, %v4754
    %v4756 = vrot.slane %v3558, %v4755
    %v4757 = vsel %vm4428, %v4756, %v4752
    %v4758 = vlaneseq
    %v4759 = vshrl.u32 %v4758, 7
    %v4760 = vsub.s32 %v4430, %v4759
    %v4761 = vrot.slane %v3561, %v4760
    %v4762 = vsel %vm4435, %v4761, %v4757
    %v4763 = vlaneseq
    %v4764 = vshrl.u32 %v4763, 7
    %v4765 = vsub.s32 %v4437, %v4764
    %v4766 = vrot.slane %v3564, %v4765
    %v4767 = vsel %vm4442, %v4766, %v4762
    %v4768 = vlaneseq
    %v4769 = vshrl.u32 %v4768, 7
    %v4770 = vsub.s32 %v4444, %v4769
    %v4771 = vrot.slane %v3567, %v4770
    %v4772 = vsel %vm4449, %v4771, %v4767
    %v4773 = vlaneseq
    %v4774 = vshrl.u32 %v4773, 7
    %v4775 = vsub.s32 %v4451, %v4774
    %v4776 = vrot.slane %v3570, %v4775
    %v4777 = vsel %vm4456, %v4776, %v4772
    %v4778 = vlaneseq
    %v4779 = vshrl.u32 %v4778, 7
    %v4780 = vsub.s32 %v4458, %v4779
    %v4781 = vrot.slane %v3573, %v4780
    %v4782 = vsel %vm4463, %v4781, %v4777
    %v4783 = vlaneseq
    %v4784 = vshrl.u32 %v4783, 7
    %v4785 = vsub.s32 %v4465, %v4784
    %v4786 = vrot.slane %v3576, %v4785
    %v4787 = vsel %vm4470, %v4786, %v4782
    %v4788 = vlaneseq
    %v4789 = vshrl.u32 %v4788, 7
    %v4790 = vsub.s32 %v4362, %v4789
    %v4791 = vrot.slane %v3579, %v4790
    %v4792 = vlaneseq
    %v4793 = vshrl.u32 %v4792, 7
    %v4794 = vsub.s32 %v4367, %v4793
    %v4795 = vrot.slane %v3582, %v4794
    %v4796 = vsel %vm4372, %v4795, %v4791
    %v4797 = vlaneseq
    %v4798 = vshrl.u32 %v4797, 7
    %v4799 = vsub.s32 %v4374, %v4798
    %v4800 = vrot.slane %v3585, %v4799
    %v4801 = vsel %vm4379, %v4800, %v4796
    %v4802 = vlaneseq
    %v4803 = vshrl.u32 %v4802, 7
    %v4804 = vsub.s32 %v4381, %v4803
    %v4805 = vrot.slane %v3588, %v4804
    %v4806 = vsel %vm4386, %v4805, %v4801
    %v4807 = vlaneseq
    %v4808 = vshrl.u32 %v4807, 7
    %v4809 = vsub.s32 %v4388, %v4808
    %v4810 = vrot.slane %v3591, %v4809
    %v4811 = vsel %vm4393, %v4810, %v4806
    %v4812 = vlaneseq
    %v4813 = vshrl.u32 %v4812, 7
    %v4814 = vsub.s32 %v4395, %v4813
    %v4815 = vrot.slane %v3594, %v4814
    %v4816 = vsel %vm4400, %v4815, %v4811
    %v4817 = vlaneseq
    %v4818 = vshrl.u32 %v4817, 7
    %v4819 = vsub.s32 %v4402, %v4818
    %v4820 = vrot.slane %v3597, %v4819
    %v4821 = vsel %vm4407, %v4820, %v4816
    %v4822 = vlaneseq
    %v4823 = vshrl.u32 %v4822, 7
    %v4824 = vsub.s32 %v4409, %v4823
    %v4825 = vrot.slane %v3600, %v4824
    %v4826 = vsel %vm4414, %v4825, %v4821
    %v4827 = vlaneseq
    %v4828 = vshrl.u32 %v4827, 7
    %v4829 = vsub.s32 %v4416, %v4828
    %v4830 = vrot.slane %v3603, %v4829
    %v4831 = vsel %vm4421, %v4830, %v4826
    %v4832 = vlaneseq
    %v4833 = vshrl.u32 %v4832, 7
    %v4834 = vsub.s32 %v4423, %v4833
    %v4835 = vrot.slane %v3606, %v4834
    %v4836 = vsel %vm4428, %v4835, %v4831
    %v4837 = vlaneseq
    %v4838 = vshrl.u32 %v4837, 7
    %v4839 = vsub.s32 %v4430, %v4838
    %v4840 = vrot.slane %v3609, %v4839
    %v4841 = vsel %vm4435, %v4840, %v4836
    %v4842 = vlaneseq
    %v4843 = vshrl.u32 %v4842, 7
    %v4844 = vsub.s32 %v4437, %v4843
    %v4845 = vrot.slane %v3612, %v4844
    %v4846 = vsel %vm4442, %v4845, %v4841
    %v4847 = vlaneseq
    %v4848 = vshrl.u32 %v4847, 7
    %v4849 = vsub.s32 %v4444, %v4848
    %v4850 = vrot.slane %v3615, %v4849
    %v4851 = vsel %vm4449, %v4850, %v4846
    %v4852 = vlaneseq
    %v4853 = vshrl.u32 %v4852, 7
    %v4854 = vsub.s32 %v4451, %v4853
    %v4855 = vrot.slane %v3618, %v4854
    %v4856 = vsel %vm4456, %v4855, %v4851
    %v4857 = vlaneseq
    %v4858 = vshrl.u32 %v4857, 7
    %v4859 = vsub.s32 %v4458, %v4858
    %v4860 = vrot.slane %v3621, %v4859
    %v4861 = vsel %vm4463, %v4860, %v4856
    %v4862 = vlaneseq
    %v4863 = vshrl.u32 %v4862, 7
    %v4864 = vsub.s32 %v4465, %v4863
    %v4865 = vrot.slane %v3624, %v4864
    %v4866 = vsel %vm4470, %v4865, %v4861
    %v4867 = vlaneseq
    %v4868 = vshrl.u32 %v4867, 7
    %v4869 = vsub.s32 %v4362, %v4868
    %v4870 = vrot.slane %v3627, %v4869
    %v4871 = vlaneseq
    %v4872 = vshrl.u32 %v4871, 7
    %v4873 = vsub.s32 %v4367, %v4872
    %v4874 = vrot.slane %v3630, %v4873
    %v4875 = vsel %vm4372, %v4874, %v4870
    %v4876 = vlaneseq
    %v4877 = vshrl.u32 %v4876, 7
    %v4878 = vsub.s32 %v4374, %v4877
    %v4879 = vrot.slane %v3633, %v4878
    %v4880 = vsel %vm4379, %v4879, %v4875
    %v4881 = vlaneseq
    %v4882 = vshrl.u32 %v4881, 7
    %v4883 = vsub.s32 %v4381, %v4882
    %v4884 = vrot.slane %v3636, %v4883
    %v4885 = vsel %vm4386, %v4884, %v4880
    %v4886 = vlaneseq
    %v4887 = vshrl.u32 %v4886, 7
    %v4888 = vsub.s32 %v4388, %v4887
    %v4889 = vrot.slane %v3639, %v4888
    %v4890 = vsel %vm4393, %v4889, %v4885
    %v4891 = vlaneseq
    %v4892 = vshrl.u32 %v4891, 7
    %v4893 = vsub.s32 %v4395, %v4892
    %v4894 = vrot.slane %v3642, %v4893
    %v4895 = vsel %vm4400, %v4894, %v4890
    %v4896 = vlaneseq
    %v4897 = vshrl.u32 %v4896, 7
    %v4898 = vsub.s32 %v4402, %v4897
    %v4899 = vrot.slane %v3645, %v4898
    %v4900 = vsel %vm4407, %v4899, %v4895
    %v4901 = vlaneseq
    %v4902 = vshrl.u32 %v4901, 7
    %v4903 = vsub.s32 %v4409, %v4902
    %v4904 = vrot.slane %v3648, %v4903
    %v4905 = vsel %vm4414, %v4904, %v4900
    %v4906 = vlaneseq
    %v4907 = vshrl.u32 %v4906, 7
    %v4908 = vsub.s32 %v4416, %v4907
    %v4909 = vrot.slane %v3651, %v4908
    %v4910 = vsel %vm4421, %v4909, %v4905
    %v4911 = vlaneseq
    %v4912 = vshrl.u32 %v4911, 7
    %v4913 = vsub.s32 %v4423, %v4912
    %v4914 = vrot.slane %v3654, %v4913
    %v4915 = vsel %vm4428, %v4914, %v4910
    %v4916 = vlaneseq
    %v4917 = vshrl.u32 %v4916, 7
    %v4918 = vsub.s32 %v4430, %v4917
    %v4919 = vrot.slane %v3657, %v4918
    %v4920 = vsel %vm4435, %v4919, %v4915
    %v4921 = vlaneseq
    %v4922 = vshrl.u32 %v4921, 7
    %v4923 = vsub.s32 %v4437, %v4922
    %v4924 = vrot.slane %v3660, %v4923
    %v4925 = vsel %vm4442, %v4924, %v4920
    %v4926 = vlaneseq
    %v4927 = vshrl.u32 %v4926, 7
    %v4928 = vsub.s32 %v4444, %v4927
    %v4929 = vrot.slane %v3663, %v4928
    %v4930 = vsel %vm4449, %v4929, %v4925
    %v4931 = vlaneseq
    %v4932 = vshrl.u32 %v4931, 7
    %v4933 = vsub.s32 %v4451, %v4932
    %v4934 = vrot.slane %v3666, %v4933
    %v4935 = vsel %vm4456, %v4934, %v4930
    %v4936 = vlaneseq
    %v4937 = vshrl.u32 %v4936, 7
    %v4938 = vsub.s32 %v4458, %v4937
    %v4939 = vrot.slane %v3669, %v4938
    %v4940 = vsel %vm4463, %v4939, %v4935
    %v4941 = vlaneseq
    %v4942 = vshrl.u32 %v4941, 7
    %v4943 = vsub.s32 %v4465, %v4942
    %v4944 = vrot.slane %v3672, %v4943
    %v4945 = vsel %vm4470, %v4944, %v4940
    %v4946 = vlaneseq
    %v4947 = vshrl.u32 %v4946, 7
    %v4948 = vsub.s32 %v4362, %v4947
    %v4949 = vrot.slane %v3675, %v4948
    %v4950 = vlaneseq
    %v4951 = vshrl.u32 %v4950, 7
    %v4952 = vsub.s32 %v4367, %v4951
    %v4953 = vrot.slane %v3678, %v4952
    %v4954 = vsel %vm4372, %v4953, %v4949
    %v4955 = vlaneseq
    %v4956 = vshrl.u32 %v4955, 7
    %v4957 = vsub.s32 %v4374, %v4956
    %v4958 = vrot.slane %v3681, %v4957
    %v4959 = vsel %vm4379, %v4958, %v4954
    %v4960 = vlaneseq
    %v4961 = vshrl.u32 %v4960, 7
    %v4962 = vsub.s32 %v4381, %v4961
    %v4963 = vrot.slane %v3684, %v4962
    %v4964 = vsel %vm4386, %v4963, %v4959
    %v4965 = vlaneseq
    %v4966 = vshrl.u32 %v4965, 7
    %v4967 = vsub.s32 %v4388, %v4966
    %v4968 = vrot.slane %v3687, %v4967
    %v4969 = vsel %vm4393, %v4968, %v4964
    %v4970 = vlaneseq
    %v4971 = vshrl.u32 %v4970, 7
    %v4972 = vsub.s32 %v4395, %v4971
    %v4973 = vrot.slane %v3690, %v4972
    %v4974 = vsel %vm4400, %v4973, %v4969
    %v4975 = vlaneseq
    %v4976 = vshrl.u32 %v4975, 7
    %v4977 = vsub.s32 %v4402, %v4976
    %v4978 = vrot.slane %v3693, %v4977
    %v4979 = vsel %vm4407, %v4978, %v4974
    %v4980 = vlaneseq
    %v4981 = vshrl.u32 %v4980, 7
    %v4982 = vsub.s32 %v4409, %v4981
    %v4983 = vrot.slane %v3696, %v4982
    %v4984 = vsel %vm4414, %v4983, %v4979
    %v4985 = vlaneseq
    %v4986 = vshrl.u32 %v4985, 7
    %v4987 = vsub.s32 %v4416, %v4986
    %v4988 = vrot.slane %v3699, %v4987
    %v4989 = vsel %vm4421, %v4988, %v4984
    %v4990 = vlaneseq
    %v4991 = vshrl.u32 %v4990, 7
    %v4992 = vsub.s32 %v4423, %v4991
    %v4993 = vrot.slane %v3702, %v4992
    %v4994 = vsel %vm4428, %v4993, %v4989
    %v4995 = vlaneseq
    %v4996 = vshrl.u32 %v4995, 7
    %v4997 = vsub.s32 %v4430, %v4996
    %v4998 = vrot.slane %v3705, %v4997
    %v4999 = vsel %vm4435, %v4998, %v4994
    %v5000 = vlaneseq
    %v5001 = vshrl.u32 %v5000, 7
    %v5002 = vsub.s32 %v4437, %v5001
    %v5003 = vrot.slane %v3708, %v5002
    %v5004 = vsel %vm4442, %v5003, %v4999
    %v5005 = vlaneseq
    %v5006 = vshrl.u32 %v5005, 7
    %v5007 = vsub.s32 %v4444, %v5006
    %v5008 = vrot.slane %v3711, %v5007
    %v5009 = vsel %vm4449, %v5008, %v5004
    %v5010 = vlaneseq
    %v5011 = vshrl.u32 %v5010, 7
    %v5012 = vsub.s32 %v4451, %v5011
    %v5013 = vrot.slane %v3714, %v5012
    %v5014 = vsel %vm4456, %v5013, %v5009
    %v5015 = vlaneseq
    %v5016 = vshrl.u32 %v5015, 7
    %v5017 = vsub.s32 %v4458, %v5016
    %v5018 = vrot.slane %v3717, %v5017
    %v5019 = vsel %vm4463, %v5018, %v5014
    %v5020 = vlaneseq
    %v5021 = vshrl.u32 %v5020, 7
    %v5022 = vsub.s32 %v4465, %v5021
    %v5023 = vrot.slane %v3720, %v5022
    %v5024 = vsel %vm4470, %v5023, %v5019
    %v5025 = vlaneseq
    %v5026 = vshrl.u32 %v5025, 7
    %v5027 = vsub.s32 %v4362, %v5026
    %v5028 = vrot.slane %v3723, %v5027
    %v5029 = vlaneseq
    %v5030 = vshrl.u32 %v5029, 7
    %v5031 = vsub.s32 %v4367, %v5030
    %v5032 = vrot.slane %v3726, %v5031
    %v5033 = vsel %vm4372, %v5032, %v5028
    %v5034 = vlaneseq
    %v5035 = vshrl.u32 %v5034, 7
    %v5036 = vsub.s32 %v4374, %v5035
    %v5037 = vrot.slane %v3729, %v5036
    %v5038 = vsel %vm4379, %v5037, %v5033
    %v5039 = vlaneseq
    %v5040 = vshrl.u32 %v5039, 7
    %v5041 = vsub.s32 %v4381, %v5040
    %v5042 = vrot.slane %v3732, %v5041
    %v5043 = vsel %vm4386, %v5042, %v5038
    %v5044 = vlaneseq
    %v5045 = vshrl.u32 %v5044, 7
    %v5046 = vsub.s32 %v4388, %v5045
    %v5047 = vrot.slane %v3735, %v5046
    %v5048 = vsel %vm4393, %v5047, %v5043
    %v5049 = vlaneseq
    %v5050 = vshrl.u32 %v5049, 7
    %v5051 = vsub.s32 %v4395, %v5050
    %v5052 = vrot.slane %v3738, %v5051
    %v5053 = vsel %vm4400, %v5052, %v5048
    %v5054 = vlaneseq
    %v5055 = vshrl.u32 %v5054, 7
    %v5056 = vsub.s32 %v4402, %v5055
    %v5057 = vrot.slane %v3741, %v5056
    %v5058 = vsel %vm4407, %v5057, %v5053
    %v5059 = vlaneseq
    %v5060 = vshrl.u32 %v5059, 7
    %v5061 = vsub.s32 %v4409, %v5060
    %v5062 = vrot.slane %v3744, %v5061
    %v5063 = vsel %vm4414, %v5062, %v5058
    %v5064 = vlaneseq
    %v5065 = vshrl.u32 %v5064, 7
    %v5066 = vsub.s32 %v4416, %v5065
    %v5067 = vrot.slane %v3747, %v5066
    %v5068 = vsel %vm4421, %v5067, %v5063
    %v5069 = vlaneseq
    %v5070 = vshrl.u32 %v5069, 7
    %v5071 = vsub.s32 %v4423, %v5070
    %v5072 = vrot.slane %v3750, %v5071
    %v5073 = vsel %vm4428, %v5072, %v5068
    %v5074 = vlaneseq
    %v5075 = vshrl.u32 %v5074, 7
    %v5076 = vsub.s32 %v4430, %v5075
    %v5077 = vrot.slane %v3753, %v5076
    %v5078 = vsel %vm4435, %v5077, %v5073
    %v5079 = vlaneseq
    %v5080 = vshrl.u32 %v5079, 7
    %v5081 = vsub.s32 %v4437, %v5080
    %v5082 = vrot.slane %v3756, %v5081
    %v5083 = vsel %vm4442, %v5082, %v5078
    %v5084 = vlaneseq
    %v5085 = vshrl.u32 %v5084, 7
    %v5086 = vsub.s32 %v4444, %v5085
    %v5087 = vrot.slane %v3759, %v5086
    %v5088 = vsel %vm4449, %v5087, %v5083
    %v5089 = vlaneseq
    %v5090 = vshrl.u32 %v5089, 7
    %v5091 = vsub.s32 %v4451, %v5090
    %v5092 = vrot.slane %v3762, %v5091
    %v5093 = vsel %vm4456, %v5092, %v5088
    %v5094 = vlaneseq
    %v5095 = vshrl.u32 %v5094, 7
    %v5096 = vsub.s32 %v4458, %v5095
    %v5097 = vrot.slane %v3765, %v5096
    %v5098 = vsel %vm4463, %v5097, %v5093
    %v5099 = vlaneseq
    %v5100 = vshrl.u32 %v5099, 7
    %v5101 = vsub.s32 %v4465, %v5100
    %v5102 = vrot.slane %v3768, %v5101
    %v5103 = vsel %vm4470, %v5102, %v5098
    %v5104 = vlaneseq
    %v5105 = vshrl.u32 %v5104, 7
    %v5106 = vsub.s32 %v4362, %v5105
    %v5107 = vrot.slane %v3771, %v5106
    %v5108 = vlaneseq
    %v5109 = vshrl.u32 %v5108, 7
    %v5110 = vsub.s32 %v4367, %v5109
    %v5111 = vrot.slane %v3774, %v5110
    %v5112 = vsel %vm4372, %v5111, %v5107
    %v5113 = vlaneseq
    %v5114 = vshrl.u32 %v5113, 7
    %v5115 = vsub.s32 %v4374, %v5114
    %v5116 = vrot.slane %v3777, %v5115
    %v5117 = vsel %vm4379, %v5116, %v5112
    %v5118 = vlaneseq
    %v5119 = vshrl.u32 %v5118, 7
    %v5120 = vsub.s32 %v4381, %v5119
    %v5121 = vrot.slane %v3780, %v5120
    %v5122 = vsel %vm4386, %v5121, %v5117
    %v5123 = vlaneseq
    %v5124 = vshrl.u32 %v5123, 7
    %v5125 = vsub.s32 %v4388, %v5124
    %v5126 = vrot.slane %v3783, %v5125
    %v5127 = vsel %vm4393, %v5126, %v5122
    %v5128 = vlaneseq
    %v5129 = vshrl.u32 %v5128, 7
    %v5130 = vsub.s32 %v4395, %v5129
    %v5131 = vrot.slane %v3786, %v5130
    %v5132 = vsel %vm4400, %v5131, %v5127
    %v5133 = vlaneseq
    %v5134 = vshrl.u32 %v5133, 7
    %v5135 = vsub.s32 %v4402, %v5134
    %v5136 = vrot.slane %v3789, %v5135
    %v5137 = vsel %vm4407, %v5136, %v5132
    %v5138 = vlaneseq
    %v5139 = vshrl.u32 %v5138, 7
    %v5140 = vsub.s32 %v4409, %v5139
    %v5141 = vrot.slane %v3792, %v5140
    %v5142 = vsel %vm4414, %v5141, %v5137
    %v5143 = vlaneseq
    %v5144 = vshrl.u32 %v5143, 7
    %v5145 = vsub.s32 %v4416, %v5144
    %v5146 = vrot.slane %v3795, %v5145
    %v5147 = vsel %vm4421, %v5146, %v5142
    %v5148 = vlaneseq
    %v5149 = vshrl.u32 %v5148, 7
    %v5150 = vsub.s32 %v4423, %v5149
    %v5151 = vrot.slane %v3798, %v5150
    %v5152 = vsel %vm4428, %v5151, %v5147
    %v5153 = vlaneseq
    %v5154 = vshrl.u32 %v5153, 7
    %v5155 = vsub.s32 %v4430, %v5154
    %v5156 = vrot.slane %v3801, %v5155
    %v5157 = vsel %vm4435, %v5156, %v5152
    %v5158 = vlaneseq
    %v5159 = vshrl.u32 %v5158, 7
    %v5160 = vsub.s32 %v4437, %v5159
    %v5161 = vrot.slane %v3804, %v5160
    %v5162 = vsel %vm4442, %v5161, %v5157
    %v5163 = vlaneseq
    %v5164 = vshrl.u32 %v5163, 7
    %v5165 = vsub.s32 %v4444, %v5164
    %v5166 = vrot.slane %v3807, %v5165
    %v5167 = vsel %vm4449, %v5166, %v5162
    %v5168 = vlaneseq
    %v5169 = vshrl.u32 %v5168, 7
    %v5170 = vsub.s32 %v4451, %v5169
    %v5171 = vrot.slane %v3810, %v5170
    %v5172 = vsel %vm4456, %v5171, %v5167
    %v5173 = vlaneseq
    %v5174 = vshrl.u32 %v5173, 7
    %v5175 = vsub.s32 %v4458, %v5174
    %v5176 = vrot.slane %v3813, %v5175
    %v5177 = vsel %vm4463, %v5176, %v5172
    %v5178 = vlaneseq
    %v5179 = vshrl.u32 %v5178, 7
    %v5180 = vsub.s32 %v4465, %v5179
    %v5181 = vrot.slane %v3816, %v5180
    %v5182 = vsel %vm4470, %v5181, %v5177
    %v5183 = vlaneseq
    %v5184 = vshrl.u32 %v5183, 7
    %v5185 = vsub.s32 %v4362, %v5184
    %v5186 = vrot.slane %v3819, %v5185
    %v5187 = vlaneseq
    %v5188 = vshrl.u32 %v5187, 7
    %v5189 = vsub.s32 %v4367, %v5188
    %v5190 = vrot.slane %v3822, %v5189
    %v5191 = vsel %vm4372, %v5190, %v5186
    %v5192 = vlaneseq
    %v5193 = vshrl.u32 %v5192, 7
    %v5194 = vsub.s32 %v4374, %v5193
    %v5195 = vrot.slane %v3825, %v5194
    %v5196 = vsel %vm4379, %v5195, %v5191
    %v5197 = vlaneseq
    %v5198 = vshrl.u32 %v5197, 7
    %v5199 = vsub.s32 %v4381, %v5198
    %v5200 = vrot.slane %v3828, %v5199
    %v5201 = vsel %vm4386, %v5200, %v5196
    %v5202 = vlaneseq
    %v5203 = vshrl.u32 %v5202, 7
    %v5204 = vsub.s32 %v4388, %v5203
    %v5205 = vrot.slane %v3831, %v5204
    %v5206 = vsel %vm4393, %v5205, %v5201
    %v5207 = vlaneseq
    %v5208 = vshrl.u32 %v5207, 7
    %v5209 = vsub.s32 %v4395, %v5208
    %v5210 = vrot.slane %v3834, %v5209
    %v5211 = vsel %vm4400, %v5210, %v5206
    %v5212 = vlaneseq
    %v5213 = vshrl.u32 %v5212, 7
    %v5214 = vsub.s32 %v4402, %v5213
    %v5215 = vrot.slane %v3837, %v5214
    %v5216 = vsel %vm4407, %v5215, %v5211
    %v5217 = vlaneseq
    %v5218 = vshrl.u32 %v5217, 7
    %v5219 = vsub.s32 %v4409, %v5218
    %v5220 = vrot.slane %v3840, %v5219
    %v5221 = vsel %vm4414, %v5220, %v5216
    %v5222 = vlaneseq
    %v5223 = vshrl.u32 %v5222, 7
    %v5224 = vsub.s32 %v4416, %v5223
    %v5225 = vrot.slane %v3843, %v5224
    %v5226 = vsel %vm4421, %v5225, %v5221
    %v5227 = vlaneseq
    %v5228 = vshrl.u32 %v5227, 7
    %v5229 = vsub.s32 %v4423, %v5228
    %v5230 = vrot.slane %v3846, %v5229
    %v5231 = vsel %vm4428, %v5230, %v5226
    %v5232 = vlaneseq
    %v5233 = vshrl.u32 %v5232, 7
    %v5234 = vsub.s32 %v4430, %v5233
    %v5235 = vrot.slane %v3849, %v5234
    %v5236 = vsel %vm4435, %v5235, %v5231
    %v5237 = vlaneseq
    %v5238 = vshrl.u32 %v5237, 7
    %v5239 = vsub.s32 %v4437, %v5238
    %v5240 = vrot.slane %v3852, %v5239
    %v5241 = vsel %vm4442, %v5240, %v5236
    %v5242 = vlaneseq
    %v5243 = vshrl.u32 %v5242, 7
    %v5244 = vsub.s32 %v4444, %v5243
    %v5245 = vrot.slane %v3855, %v5244
    %v5246 = vsel %vm4449, %v5245, %v5241
    %v5247 = vlaneseq
    %v5248 = vshrl.u32 %v5247, 7
    %v5249 = vsub.s32 %v4451, %v5248
    %v5250 = vrot.slane %v3858, %v5249
    %v5251 = vsel %vm4456, %v5250, %v5246
    %v5252 = vlaneseq
    %v5253 = vshrl.u32 %v5252, 7
    %v5254 = vsub.s32 %v4458, %v5253
    %v5255 = vrot.slane %v3861, %v5254
    %v5256 = vsel %vm4463, %v5255, %v5251
    %v5257 = vlaneseq
    %v5258 = vshrl.u32 %v5257, 7
    %v5259 = vsub.s32 %v4465, %v5258
    %v5260 = vrot.slane %v3864, %v5259
    %v5261 = vsel %vm4470, %v5260, %v5256
    %v5262 = vlaneseq
    %v5263 = vshrl.u32 %v5262, 7
    %v5264 = vsub.s32 %v4362, %v5263
    %v5265 = vrot.slane %v3867, %v5264
    %v5266 = vlaneseq
    %v5267 = vshrl.u32 %v5266, 7
    %v5268 = vsub.s32 %v4367, %v5267
    %v5269 = vrot.slane %v3870, %v5268
    %v5270 = vsel %vm4372, %v5269, %v5265
    %v5271 = vlaneseq
    %v5272 = vshrl.u32 %v5271, 7
    %v5273 = vsub.s32 %v4374, %v5272
    %v5274 = vrot.slane %v3873, %v5273
    %v5275 = vsel %vm4379, %v5274, %v5270
    %v5276 = vlaneseq
    %v5277 = vshrl.u32 %v5276, 7
    %v5278 = vsub.s32 %v4381, %v5277
    %v5279 = vrot.slane %v3876, %v5278
    %v5280 = vsel %vm4386, %v5279, %v5275
    %v5281 = vlaneseq
    %v5282 = vshrl.u32 %v5281, 7
    %v5283 = vsub.s32 %v4388, %v5282
    %v5284 = vrot.slane %v3879, %v5283
    %v5285 = vsel %vm4393, %v5284, %v5280
    %v5286 = vlaneseq
    %v5287 = vshrl.u32 %v5286, 7
    %v5288 = vsub.s32 %v4395, %v5287
    %v5289 = vrot.slane %v3882, %v5288
    %v5290 = vsel %vm4400, %v5289, %v5285
    %v5291 = vlaneseq
    %v5292 = vshrl.u32 %v5291, 7
    %v5293 = vsub.s32 %v4402, %v5292
    %v5294 = vrot.slane %v3885, %v5293
    %v5295 = vsel %vm4407, %v5294, %v5290
    %v5296 = vlaneseq
    %v5297 = vshrl.u32 %v5296, 7
    %v5298 = vsub.s32 %v4409, %v5297
    %v5299 = vrot.slane %v3888, %v5298
    %v5300 = vsel %vm4414, %v5299, %v5295
    %v5301 = vlaneseq
    %v5302 = vshrl.u32 %v5301, 7
    %v5303 = vsub.s32 %v4416, %v5302
    %v5304 = vrot.slane %v3891, %v5303
    %v5305 = vsel %vm4421, %v5304, %v5300
    %v5306 = vlaneseq
    %v5307 = vshrl.u32 %v5306, 7
    %v5308 = vsub.s32 %v4423, %v5307
    %v5309 = vrot.slane %v3894, %v5308
    %v5310 = vsel %vm4428, %v5309, %v5305
    %v5311 = vlaneseq
    %v5312 = vshrl.u32 %v5311, 7
    %v5313 = vsub.s32 %v4430, %v5312
    %v5314 = vrot.slane %v3897, %v5313
    %v5315 = vsel %vm4435, %v5314, %v5310
    %v5316 = vlaneseq
    %v5317 = vshrl.u32 %v5316, 7
    %v5318 = vsub.s32 %v4437, %v5317
    %v5319 = vrot.slane %v3900, %v5318
    %v5320 = vsel %vm4442, %v5319, %v5315
    %v5321 = vlaneseq
    %v5322 = vshrl.u32 %v5321, 7
    %v5323 = vsub.s32 %v4444, %v5322
    %v5324 = vrot.slane %v3903, %v5323
    %v5325 = vsel %vm4449, %v5324, %v5320
    %v5326 = vlaneseq
    %v5327 = vshrl.u32 %v5326, 7
    %v5328 = vsub.s32 %v4451, %v5327
    %v5329 = vrot.slane %v3906, %v5328
    %v5330 = vsel %vm4456, %v5329, %v5325
    %v5331 = vlaneseq
    %v5332 = vshrl.u32 %v5331, 7
    %v5333 = vsub.s32 %v4458, %v5332
    %v5334 = vrot.slane %v3909, %v5333
    %v5335 = vsel %vm4463, %v5334, %v5330
    %v5336 = vlaneseq
    %v5337 = vshrl.u32 %v5336, 7
    %v5338 = vsub.s32 %v4465, %v5337
    %v5339 = vrot.slane %v3912, %v5338
    %v5340 = vsel %vm4470, %v5339, %v5335
    %v5341 = vlaneseq
    %v5342 = vshrl.u32 %v5341, 7
    %v5343 = vsub.s32 %v4362, %v5342
    %v5344 = vrot.slane %v3915, %v5343
    %v5345 = vlaneseq
    %v5346 = vshrl.u32 %v5345, 7
    %v5347 = vsub.s32 %v4367, %v5346
    %v5348 = vrot.slane %v3918, %v5347
    %v5349 = vsel %vm4372, %v5348, %v5344
    %v5350 = vlaneseq
    %v5351 = vshrl.u32 %v5350, 7
    %v5352 = vsub.s32 %v4374, %v5351
    %v5353 = vrot.slane %v3921, %v5352
    %v5354 = vsel %vm4379, %v5353, %v5349
    %v5355 = vlaneseq
    %v5356 = vshrl.u32 %v5355, 7
    %v5357 = vsub.s32 %v4381, %v5356
    %v5358 = vrot.slane %v3924, %v5357
    %v5359 = vsel %vm4386, %v5358, %v5354
    %v5360 = vlaneseq
    %v5361 = vshrl.u32 %v5360, 7
    %v5362 = vsub.s32 %v4388, %v5361
    %v5363 = vrot.slane %v3927, %v5362
    %v5364 = vsel %vm4393, %v5363, %v5359
    %v5365 = vlaneseq
    %v5366 = vshrl.u32 %v5365, 7
    %v5367 = vsub.s32 %v4395, %v5366
    %v5368 = vrot.slane %v3930, %v5367
    %v5369 = vsel %vm4400, %v5368, %v5364
    %v5370 = vlaneseq
    %v5371 = vshrl.u32 %v5370, 7
    %v5372 = vsub.s32 %v4402, %v5371
    %v5373 = vrot.slane %v3933, %v5372
    %v5374 = vsel %vm4407, %v5373, %v5369
    %v5375 = vlaneseq
    %v5376 = vshrl.u32 %v5375, 7
    %v5377 = vsub.s32 %v4409, %v5376
    %v5378 = vrot.slane %v3936, %v5377
    %v5379 = vsel %vm4414, %v5378, %v5374
    %v5380 = vlaneseq
    %v5381 = vshrl.u32 %v5380, 7
    %v5382 = vsub.s32 %v4416, %v5381
    %v5383 = vrot.slane %v3939, %v5382
    %v5384 = vsel %vm4421, %v5383, %v5379
    %v5385 = vlaneseq
    %v5386 = vshrl.u32 %v5385, 7
    %v5387 = vsub.s32 %v4423, %v5386
    %v5388 = vrot.slane %v3942, %v5387
    %v5389 = vsel %vm4428, %v5388, %v5384
    %v5390 = vlaneseq
    %v5391 = vshrl.u32 %v5390, 7
    %v5392 = vsub.s32 %v4430, %v5391
    %v5393 = vrot.slane %v3945, %v5392
    %v5394 = vsel %vm4435, %v5393, %v5389
    %v5395 = vlaneseq
    %v5396 = vshrl.u32 %v5395, 7
    %v5397 = vsub.s32 %v4437, %v5396
    %v5398 = vrot.slane %v3948, %v5397
    %v5399 = vsel %vm4442, %v5398, %v5394
    %v5400 = vlaneseq
    %v5401 = vshrl.u32 %v5400, 7
    %v5402 = vsub.s32 %v4444, %v5401
    %v5403 = vrot.slane %v3951, %v5402
    %v5404 = vsel %vm4449, %v5403, %v5399
    %v5405 = vlaneseq
    %v5406 = vshrl.u32 %v5405, 7
    %v5407 = vsub.s32 %v4451, %v5406
    %v5408 = vrot.slane %v3954, %v5407
    %v5409 = vsel %vm4456, %v5408, %v5404
    %v5410 = vlaneseq
    %v5411 = vshrl.u32 %v5410, 7
    %v5412 = vsub.s32 %v4458, %v5411
    %v5413 = vrot.slane %v3957, %v5412
    %v5414 = vsel %vm4463, %v5413, %v5409
    %v5415 = vlaneseq
    %v5416 = vshrl.u32 %v5415, 7
    %v5417 = vsub.s32 %v4465, %v5416
    %v5418 = vrot.slane %v3960, %v5417
    %v5419 = vsel %vm4470, %v5418, %v5414
    %v5420 = vlaneseq
    %v5421 = vshrl.u32 %v5420, 7
    %v5422 = vsub.s32 %v4362, %v5421
    %v5423 = vrot.slane %v3963, %v5422
    %v5424 = vlaneseq
    %v5425 = vshrl.u32 %v5424, 7
    %v5426 = vsub.s32 %v4367, %v5425
    %v5427 = vrot.slane %v3966, %v5426
    %v5428 = vsel %vm4372, %v5427, %v5423
    %v5429 = vlaneseq
    %v5430 = vshrl.u32 %v5429, 7
    %v5431 = vsub.s32 %v4374, %v5430
    %v5432 = vrot.slane %v3969, %v5431
    %v5433 = vsel %vm4379, %v5432, %v5428
    %v5434 = vlaneseq
    %v5435 = vshrl.u32 %v5434, 7
    %v5436 = vsub.s32 %v4381, %v5435
    %v5437 = vrot.slane %v3972, %v5436
    %v5438 = vsel %vm4386, %v5437, %v5433
    %v5439 = vlaneseq
    %v5440 = vshrl.u32 %v5439, 7
    %v5441 = vsub.s32 %v4388, %v5440
    %v5442 = vrot.slane %v3975, %v5441
    %v5443 = vsel %vm4393, %v5442, %v5438
    %v5444 = vlaneseq
    %v5445 = vshrl.u32 %v5444, 7
    %v5446 = vsub.s32 %v4395, %v5445
    %v5447 = vrot.slane %v3978, %v5446
    %v5448 = vsel %vm4400, %v5447, %v5443
    %v5449 = vlaneseq
    %v5450 = vshrl.u32 %v5449, 7
    %v5451 = vsub.s32 %v4402, %v5450
    %v5452 = vrot.slane %v3981, %v5451
    %v5453 = vsel %vm4407, %v5452, %v5448
    %v5454 = vlaneseq
    %v5455 = vshrl.u32 %v5454, 7
    %v5456 = vsub.s32 %v4409, %v5455
    %v5457 = vrot.slane %v3984, %v5456
    %v5458 = vsel %vm4414, %v5457, %v5453
    %v5459 = vlaneseq
    %v5460 = vshrl.u32 %v5459, 7
    %v5461 = vsub.s32 %v4416, %v5460
    %v5462 = vrot.slane %v3987, %v5461
    %v5463 = vsel %vm4421, %v5462, %v5458
    %v5464 = vlaneseq
    %v5465 = vshrl.u32 %v5464, 7
    %v5466 = vsub.s32 %v4423, %v5465
    %v5467 = vrot.slane %v3990, %v5466
    %v5468 = vsel %vm4428, %v5467, %v5463
    %v5469 = vlaneseq
    %v5470 = vshrl.u32 %v5469, 7
    %v5471 = vsub.s32 %v4430, %v5470
    %v5472 = vrot.slane %v3993, %v5471
    %v5473 = vsel %vm4435, %v5472, %v5468
    %v5474 = vlaneseq
    %v5475 = vshrl.u32 %v5474, 7
    %v5476 = vsub.s32 %v4437, %v5475
    %v5477 = vrot.slane %v3996, %v5476
    %v5478 = vsel %vm4442, %v5477, %v5473
    %v5479 = vlaneseq
    %v5480 = vshrl.u32 %v5479, 7
    %v5481 = vsub.s32 %v4444, %v5480
    %v5482 = vrot.slane %v3999, %v5481
    %v5483 = vsel %vm4449, %v5482, %v5478
    %v5484 = vlaneseq
    %v5485 = vshrl.u32 %v5484, 7
    %v5486 = vsub.s32 %v4451, %v5485
    %v5487 = vrot.slane %v4002, %v5486
    %v5488 = vsel %vm4456, %v5487, %v5483
    %v5489 = vlaneseq
    %v5490 = vshrl.u32 %v5489, 7
    %v5491 = vsub.s32 %v4458, %v5490
    %v5492 = vrot.slane %v4005, %v5491
    %v5493 = vsel %vm4463, %v5492, %v5488
    %v5494 = vlaneseq
    %v5495 = vshrl.u32 %v5494, 7
    %v5496 = vsub.s32 %v4465, %v5495
    %v5497 = vrot.slane %v4008, %v5496
    %v5498 = vsel %vm4470, %v5497, %v5493
    %v5499 = vlaneseq
    %v5500 = vshrl.u32 %v5499, 7
    %v5501 = vsub.s32 %v4362, %v5500
    %v5502 = vrot.slane %v4011, %v5501
    %v5503 = vlaneseq
    %v5504 = vshrl.u32 %v5503, 7
    %v5505 = vsub.s32 %v4367, %v5504
    %v5506 = vrot.slane %v4014, %v5505
    %v5507 = vsel %vm4372, %v5506, %v5502
    %v5508 = vlaneseq
    %v5509 = vshrl.u32 %v5508, 7
    %v5510 = vsub.s32 %v4374, %v5509
    %v5511 = vrot.slane %v4017, %v5510
    %v5512 = vsel %vm4379, %v5511, %v5507
    %v5513 = vlaneseq
    %v5514 = vshrl.u32 %v5513, 7
    %v5515 = vsub.s32 %v4381, %v5514
    %v5516 = vrot.slane %v4020, %v5515
    %v5517 = vsel %vm4386, %v5516, %v5512
    %v5518 = vlaneseq
    %v5519 = vshrl.u32 %v5518, 7
    %v5520 = vsub.s32 %v4388, %v5519
    %v5521 = vrot.slane %v4023, %v5520
    %v5522 = vsel %vm4393, %v5521, %v5517
    %v5523 = vlaneseq
    %v5524 = vshrl.u32 %v5523, 7
    %v5525 = vsub.s32 %v4395, %v5524
    %v5526 = vrot.slane %v4026, %v5525
    %v5527 = vsel %vm4400, %v5526, %v5522
    %v5528 = vlaneseq
    %v5529 = vshrl.u32 %v5528, 7
    %v5530 = vsub.s32 %v4402, %v5529
    %v5531 = vrot.slane %v4029, %v5530
    %v5532 = vsel %vm4407, %v5531, %v5527
    %v5533 = vlaneseq
    %v5534 = vshrl.u32 %v5533, 7
    %v5535 = vsub.s32 %v4409, %v5534
    %v5536 = vrot.slane %v4032, %v5535
    %v5537 = vsel %vm4414, %v5536, %v5532
    %v5538 = vlaneseq
    %v5539 = vshrl.u32 %v5538, 7
    %v5540 = vsub.s32 %v4416, %v5539
    %v5541 = vrot.slane %v4035, %v5540
    %v5542 = vsel %vm4421, %v5541, %v5537
    %v5543 = vlaneseq
    %v5544 = vshrl.u32 %v5543, 7
    %v5545 = vsub.s32 %v4423, %v5544
    %v5546 = vrot.slane %v4038, %v5545
    %v5547 = vsel %vm4428, %v5546, %v5542
    %v5548 = vlaneseq
    %v5549 = vshrl.u32 %v5548, 7
    %v5550 = vsub.s32 %v4430, %v5549
    %v5551 = vrot.slane %v4041, %v5550
    %v5552 = vsel %vm4435, %v5551, %v5547
    %v5553 = vlaneseq
    %v5554 = vshrl.u32 %v5553, 7
    %v5555 = vsub.s32 %v4437, %v5554
    %v5556 = vrot.slane %v4044, %v5555
    %v5557 = vsel %vm4442, %v5556, %v5552
    %v5558 = vlaneseq
    %v5559 = vshrl.u32 %v5558, 7
    %v5560 = vsub.s32 %v4444, %v5559
    %v5561 = vrot.slane %v4047, %v5560
    %v5562 = vsel %vm4449, %v5561, %v5557
    %v5563 = vlaneseq
    %v5564 = vshrl.u32 %v5563, 7
    %v5565 = vsub.s32 %v4451, %v5564
    %v5566 = vrot.slane %v4050, %v5565
    %v5567 = vsel %vm4456, %v5566, %v5562
    %v5568 = vlaneseq
    %v5569 = vshrl.u32 %v5568, 7
    %v5570 = vsub.s32 %v4458, %v5569
    %v5571 = vrot.slane %v4053, %v5570
    %v5572 = vsel %vm4463, %v5571, %v5567
    %v5573 = vlaneseq
    %v5574 = vshrl.u32 %v5573, 7
    %v5575 = vsub.s32 %v4465, %v5574
    %v5576 = vrot.slane %v4056, %v5575
    %v5577 = vsel %vm4470, %v5576, %v5572
    %v5578 = vlaneseq
    %v5579 = vshrl.u32 %v5578, 7
    %v5580 = vsub.s32 %v4362, %v5579
    %v5581 = vrot.slane %v4059, %v5580
    %v5582 = vlaneseq
    %v5583 = vshrl.u32 %v5582, 7
    %v5584 = vsub.s32 %v4367, %v5583
    %v5585 = vrot.slane %v4062, %v5584
    %v5586 = vsel %vm4372, %v5585, %v5581
    %v5587 = vlaneseq
    %v5588 = vshrl.u32 %v5587, 7
    %v5589 = vsub.s32 %v4374, %v5588
    %v5590 = vrot.slane %v4065, %v5589
    %v5591 = vsel %vm4379, %v5590, %v5586
    %v5592 = vlaneseq
    %v5593 = vshrl.u32 %v5592, 7
    %v5594 = vsub.s32 %v4381, %v5593
    %v5595 = vrot.slane %v4068, %v5594
    %v5596 = vsel %vm4386, %v5595, %v5591
    %v5597 = vlaneseq
    %v5598 = vshrl.u32 %v5597, 7
    %v5599 = vsub.s32 %v4388, %v5598
    %v5600 = vrot.slane %v4071, %v5599
    %v5601 = vsel %vm4393, %v5600, %v5596
    %v5602 = vlaneseq
    %v5603 = vshrl.u32 %v5602, 7
    %v5604 = vsub.s32 %v4395, %v5603
    %v5605 = vrot.slane %v4074, %v5604
    %v5606 = vsel %vm4400, %v5605, %v5601
    %v5607 = vlaneseq
    %v5608 = vshrl.u32 %v5607, 7
    %v5609 = vsub.s32 %v4402, %v5608
    %v5610 = vrot.slane %v4077, %v5609
    %v5611 = vsel %vm4407, %v5610, %v5606
    %v5612 = vlaneseq
    %v5613 = vshrl.u32 %v5612, 7
    %v5614 = vsub.s32 %v4409, %v5613
    %v5615 = vrot.slane %v4080, %v5614
    %v5616 = vsel %vm4414, %v5615, %v5611
    %v5617 = vlaneseq
    %v5618 = vshrl.u32 %v5617, 7
    %v5619 = vsub.s32 %v4416, %v5618
    %v5620 = vrot.slane %v4083, %v5619
    %v5621 = vsel %vm4421, %v5620, %v5616
    %v5622 = vlaneseq
    %v5623 = vshrl.u32 %v5622, 7
    %v5624 = vsub.s32 %v4423, %v5623
    %v5625 = vrot.slane %v4086, %v5624
    %v5626 = vsel %vm4428, %v5625, %v5621
    %v5627 = vlaneseq
    %v5628 = vshrl.u32 %v5627, 7
    %v5629 = vsub.s32 %v4430, %v5628
    %v5630 = vrot.slane %v4089, %v5629
    %v5631 = vsel %vm4435, %v5630, %v5626
    %v5632 = vlaneseq
    %v5633 = vshrl.u32 %v5632, 7
    %v5634 = vsub.s32 %v4437, %v5633
    %v5635 = vrot.slane %v4092, %v5634
    %v5636 = vsel %vm4442, %v5635, %v5631
    %v5637 = vlaneseq
    %v5638 = vshrl.u32 %v5637, 7
    %v5639 = vsub.s32 %v4444, %v5638
    %v5640 = vrot.slane %v4095, %v5639
    %v5641 = vsel %vm4449, %v5640, %v5636
    %v5642 = vlaneseq
    %v5643 = vshrl.u32 %v5642, 7
    %v5644 = vsub.s32 %v4451, %v5643
    %v5645 = vrot.slane %v4098, %v5644
    %v5646 = vsel %vm4456, %v5645, %v5641
    %v5647 = vlaneseq
    %v5648 = vshrl.u32 %v5647, 7
    %v5649 = vsub.s32 %v4458, %v5648
    %v5650 = vrot.slane %v4101, %v5649
    %v5651 = vsel %vm4463, %v5650, %v5646
    %v5652 = vlaneseq
    %v5653 = vshrl.u32 %v5652, 7
    %v5654 = vsub.s32 %v4465, %v5653
    %v5655 = vrot.slane %v4104, %v5654
    %v5656 = vsel %vm4470, %v5655, %v5651
    %v5657 = vsel %vm1877, %v4550, %v4471
    %v5658 = vsel %vm1879, %v4629, %v5657
    %v5659 = vsel %vm1881, %v4708, %v5658
    %v5660 = vsel %vm1883, %v4787, %v5659
    %v5661 = vsel %vm1885, %v4866, %v5660
    %v5662 = vsel %vm1887, %v4945, %v5661
    %v5663 = vsel %vm1889, %v5024, %v5662
    %v5664 = vsel %vm1877, %v5182, %v5103
    %v5665 = vsel %vm1879, %v5261, %v5664
    %v5666 = vsel %vm1881, %v5340, %v5665
    %v5667 = vsel %vm1883, %v5419, %v5666
    %v5668 = vsel %vm1885, %v5498, %v5667
    %v5669 = vsel %vm1887, %v5577, %v5668
    %v5670 = vsel %vm1889, %v5656, %v5669
    %v5673 = vadd.f32 %v2183, %v5663
    %v5674 = vadd.f32 %v2184, %v5670
    %5675 = vst [vmem:[#allocation4] sm:$0xff] %v5673
    %5676 = vst [vmem:[#allocation4 + $0x8] sm:$0xff] %v5674
    %5677 = vst.msk [vmem:[#allocation2] sm:$0xff] %vm2168, %v1922
    %5678 = vst.msk [vmem:[#allocation2 + $0x8] sm:$0xff] %vm2168, %v1923
    // Predicated region
    $region22: #{tpu_custom_call.1} parent=1 // pred_check
      %p5679 = pneg %p40
    $region23: #{tpu_custom_call.1} parent=1 // pred_check_branch
      %5681 = sbr.rel (%p5679) target = $region25
    $region24: #{tpu_custom_call.1} parent=1 // pred_region
      %v5682 = vld [vmem:[#allocation3] sm:$0xff]
      %v5683 = vld [vmem:[#allocation3 + $0x8] sm:$0xff]
      %v5684 = vrcp.pop %v5682
      %v5685 = vrcp.pop %v5683
      %v5686 = vld [vmem:[#allocation4] sm:$0xff]
      %v5687 = vld [vmem:[#allocation4 + $0x8] sm:$0xff]
      %5689 = vset.pattern.permute.xlu0 0
      %5690 = vperm.xlu0 %5689, %v5684
      %v5691 = vpop.permute.xlu0 %5690
      %5694 = vset.pattern.permute.xlu0 0
      %5695 = vperm.xlu0 %5694, %v5685
      %v5696 = vpop.permute.xlu0 %5695
      %v5698 = vmul.f32 %v5686, %v5691
      %v5699 = vmul.f32 %v5687, %v5696
      %5700 = vst [vmem:[#allocation10] sm:$0xff] %v5698
      %5701 = vst [vmem:[#allocation10 + $0x8] sm:$0xff] %v5699
    $region25: #{tpu_custom_call.1} parent=1 // pred_fallthru
      _
    // Predicated region
    $region26: #{tpu_custom_call.1} parent=1 // pred_check
      _
    $region27: #{tpu_custom_call.1} parent=1 // pred_check_branch
      %5703 = sbr.rel (0) target = $region29
    $region28: #{tpu_custom_call.1} parent=1 // pred_region
      %s5705 = ssub.s32 256, 256
      %5706 = vsyncadd [#allocation7], %s5705
      %s5707 = sshll.u32 [#allocation10], 4
      %s5708 = int_to_ptr.vmem [resolvable:$true] %s5707
      %5713 = dma.vmem_to_hbm [thread:$0]  %s5708, 256, %s2, [#allocation7], 128, 128, 8
    $region29: #{tpu_custom_call.1} parent=1 // pred_fallthru
      _
    // Predicated region
    $region30: #{tpu_custom_call.1} parent=1 // pred_check
      _
    $region31: #{tpu_custom_call.1} parent=1 // pred_check_branch
      %5715 = sbr.rel (0) target = $region33
    $region32: #{tpu_custom_call.1} parent=1 // pred_region
      %5716 = dma.done [#allocation7], 256
    $region33: #{tpu_custom_call.1} parent=1 // pred_fallthru
      _
    %5717 = vsyncpa [#allocation6], 1
    %5718 = vsyncpa [#allocation9], 1
    %5719 = vsyncpa [#allocation7], 1

</llo_original>
